<compile_context>
chip_gen: v7x
topology: tpu7x:2x2x1
jax: 0.10.0
libtpu: 0.0.40
codegen_flags: <defaults>
</compile_context>

<pallas_src>
import math

import jax
import jax.numpy as jnp
from jax.experimental import pallas as pl
from jax.experimental.pallas import tpu as pltpu

# ----------------------------- model config ---------------------------------
B = 2            # batch
S = 8            # sequence length
H = 32           # hidden size
NH = 4           # attention heads
DH = H // NH     # head dim
FF = 64          # intermediate (FFN) size
L = 2            # number of encoder layers
VOCAB = 100
MAX_POS = 64
NUM_CLASSES = 3
CLS_PAD = 128    # lane-dense padded classifier output width
LN_EPS = 1e-5
PAD_IDX = 1      # RoBERTa padding idx (position offset)

# packed-slab column offsets inside layer_w (per layer, H rows x 256 cols)
_C_QKV = 0              # [0,   96)  fused Q|K|V projection (scale folded into Q)
_C_O = 3 * H            # [96, 128)  attention output projection
_C_I = 4 * H            # [128,192)  FFN in  (H -> FF)
_C_F = 4 * H + FF       # [192,256)  FFN out, stored transposed (H x FF)
_WCOL = 4 * H + 2 * FF  # 256
_BVEC = 3 * H           # 96, width of the per-layer bias/LN slab


# ------------------------------ in-kernel math -------------------------------
def _erf(x):
    # Abramowitz & Stegun 7.1.26 rational approximation, |err| <= 1.5e-7.
    # Matches PyTorch's exact erf-based GELU to ~fp32 precision using only
    # VPU/EUP ops that lower cleanly in Mosaic.  (pl.reciprocal(approx=True)
    # would be cheaper but degrades the error bound; kept exact for parity.)
    p = 0.3275911
    a1, a2, a3, a4, a5 = (0.254829592, -0.284496736, 1.421413741,
                          -1.453152027, 1.061405429)
    s = jnp.where(x < 0.0, -1.0, 1.0)
    z = jnp.abs(x)
    t = 1.0 / (1.0 + p * z)
    poly = ((((a5 * t + a4) * t + a3) * t + a2) * t + a1) * t
    return s * (1.0 - poly * jnp.exp(-z * z))


def _gelu_exact(x):
    return 0.5 * x * (1.0 + _erf(x * 0.7071067811865476))


def _layernorm(x, g, b):
    mean = jnp.mean(x, axis=-1, keepdims=True)
    var = jnp.mean(jnp.square(x - mean), axis=-1, keepdims=True)
    return (x - mean) * jax.lax.rsqrt(var + LN_EPS) * g + b


# ------------------------------ fused kernel ---------------------------------
def _herbert_kernel(emb_ref, mask_ref, lw_ref, lb_ref, hw_ref, hv_ref,
                    out_ref, ctx_scr):
    """Full model forward, single invocation (no grid): whole batch at once."""
    hv = hv_ref[...]                       # (8, 128) head vectors
    mask_add = mask_ref[...]               # (B*NH*S, S) additive key mask (hoisted)

    # Embedding LayerNorm over the flattened (B*S, H) slab
    # (word+pos+type gather-sum is done in XLA).
    h = _layernorm(emb_ref[...], hv[0:1, :H], hv[1:2, :H])

    for l in range(L):                     # static unrolled layer loop
        lw = lw_ref[l]                     # (H, 256) packed weight slab
        lb = lb_ref[l]                     # (8, 96)  packed bias/LN slab

        # Fused QKV projection over ALL tokens of ALL batch elements at once.
        qkv = (jnp.dot(h, lw[:, _C_QKV:_C_O], preferred_element_type=jnp.float32)
               + lb[0:1, :3 * H])          # (B*S, 3H); Q already pre-scaled

        # Per-(batch, head) Q@K^T blocks, stacked on the SUBLANE axis so the
        # softmax statistics run once over the whole (B*NH*S, S) stack.
        blocks = []
        for b in range(B):
            for hd in range(NH):
                q = qkv[b * S:(b + 1) * S, hd * DH:(hd + 1) * DH]
                k = qkv[b * S:(b + 1) * S, H + hd * DH:H + (hd + 1) * DH]
                blocks.append(jax.lax.dot_general(
                    q, k, (((1,), (1,)), ((), ())),
                    preferred_element_type=jnp.float32))           # (S, S)
        sc = jnp.concatenate(blocks, axis=0) + mask_add             # (B*NH*S, S)
        sc = sc - jnp.max(sc, axis=-1, keepdims=True)
        pr = jnp.exp(sc)
        pr = pr / jnp.sum(pr, axis=-1, keepdims=True)               # exact divide

        # P @ V per (batch, head); results land directly in a VMEM scratch laid
        # out as (B*S, H), so no lane-axis concatenate is needed.
        for b in range(B):
            for hd in range(NH):
                r = (b * NH + hd) * S
                v = qkv[b * S:(b + 1) * S, 2 * H + hd * DH:2 * H + (hd + 1) * DH]
                ctx_scr[b * S:(b + 1) * S, hd * DH:(hd + 1) * DH] = jnp.dot(
                    pr[r:r + S, :], v, preferred_element_type=jnp.float32)
        ctx = ctx_scr[...]                                          # (B*S, H)

        attn = (jnp.dot(ctx, lw[:, _C_O:_C_I], preferred_element_type=jnp.float32)
                + lb[1:2, :H])
        h1 = _layernorm(attn + h, lb[2:3, :H], lb[3:4, :H])

        ff = _gelu_exact(
            jnp.dot(h1, lw[:, _C_I:_C_F], preferred_element_type=jnp.float32)
            + lb[4:5, :FF])
        # FFN output weight stored transposed (H, FF): contract last dims.
        ff2 = (jax.lax.dot_general(ff, lw[:, _C_F:_WCOL],
                                   (((1,), (1,)), ((), ())),
                                   preferred_element_type=jnp.float32)
               + lb[5:6, :H])
        h = _layernorm(ff2 + h1, lb[6:7, :H], lb[7:8, :H])

    # Pooler: tanh(Linear(h[CLS])) on the CLS row of every batch element,
    # then classifier + sigmoid on a lane-dense 128-wide padded slab.
    hw = hw_ref[...]                                                # (H, 160)
    cls_tok = jnp.concatenate([h[b * S:b * S + 1, :] for b in range(B)], axis=0)
    pooled = jnp.tanh(
        jnp.dot(cls_tok, hw[:, :H], preferred_element_type=jnp.float32)
        + hv[2:3, :H])                                              # (B, H)
    # TODO(synk): dropout on pooled output omitted (eval mode, identity).
    logits = (jnp.dot(pooled, hw[:, H:H + CLS_PAD],
                      preferred_element_type=jnp.float32)
              + hv[3:4, :CLS_PAD])                                  # (B, CLS_PAD)
    out_ref[...] = jax.nn.sigmoid(logits)


# --------------------------- parameter creation -------------------------------
def init_params(key):
    def nrm(key, shape):
        return jax.random.normal(key, shape, jnp.float32) * 0.02

    keys = iter(jax.random.split(key, 64))
    p = {
        "word_emb": nrm(next(keys), (VOCAB, H)),
        "pos_emb": nrm(next(keys), (MAX_POS, H)),
        "type_emb": nrm(next(keys), (1, H)),
        "emb_ln_g": jnp.ones((H,), jnp.float32),
        "emb_ln_b": jnp.zeros((H,), jnp.float32),
        "pool_w": nrm(next(keys), (H, H)),
        "pool_b": jnp.zeros((H,), jnp.float32),
        "cls_w": nrm(next(keys), (H, NUM_CLASSES)),
        "cls_b": jnp.zeros((NUM_CLASSES,), jnp.float32),
        "layers": [],
    }
    for _ in range(L):
        lyr = {
            "q_w": nrm(next(keys), (H, H)), "q_b": jnp.zeros((H,), jnp.float32),
            "k_w": nrm(next(keys), (H, H)), "k_b": jnp.zeros((H,), jnp.float32),
            "v_w": nrm(next(keys), (H, H)), "v_b": jnp.zeros((H,), jnp.float32),
            "o_w": nrm(next(keys), (H, H)), "o_b": jnp.zeros((H,), jnp.float32),
            "ln1_g": jnp.ones((H,), jnp.float32), "ln1_b": jnp.zeros((H,), jnp.float32),
            "i_w": nrm(next(keys), (H, FF)), "i_b": jnp.zeros((FF,), jnp.float32),
            "f_w": nrm(next(keys), (FF, H)), "f_b": jnp.zeros((H,), jnp.float32),
            "ln2_g": jnp.ones((H,), jnp.float32), "ln2_b": jnp.zeros((H,), jnp.float32),
        }
        p["layers"].append(lyr)
    return p


def pack_params(p):
    """One-time repack into 4 VMEM slabs (+ embedding tables for XLA gathers).

    The 1/sqrt(DH) attention scale is folded into the Q weight & bias columns,
    the FFN output matrix is stored transposed so it shares the H-row layout,
    and the classifier is zero-padded to a lane-dense 128-wide output.
    """
    scale = 1.0 / math.sqrt(DH)
    layer_w, layer_b = [], []
    for lyr in p["layers"]:
        qkv_w = jnp.concatenate(
            [lyr["q_w"] * scale, lyr["k_w"], lyr["v_w"]], axis=1)      # (H, 3H)
        w = jnp.concatenate(
            [qkv_w, lyr["o_w"], lyr["i_w"], lyr["f_w"].T], axis=1)     # (H, 256)
        layer_w.append(w)

        b = jnp.zeros((8, _BVEC), jnp.float32)
        qkv_b = jnp.concatenate([lyr["q_b"] * scale, lyr["k_b"], lyr["v_b"]])
        b = b.at[0, :3 * H].set(qkv_b)
        b = b.at[1, :H].set(lyr["o_b"])
        b = b.at[2, :H].set(lyr["ln1_g"])
        b = b.at[3, :H].set(lyr["ln1_b"])
        b = b.at[4, :FF].set(lyr["i_b"])
        b = b.at[5, :H].set(lyr["f_b"])
        b = b.at[6, :H].set(lyr["ln2_g"])
        b = b.at[7, :H].set(lyr["ln2_b"])
        layer_b.append(b)

    head_w = jnp.zeros((H, H + CLS_PAD), jnp.float32)
    head_w = head_w.at[:, :H].set(p["pool_w"])
    head_w = head_w.at[:, H:H + NUM_CLASSES].set(p["cls_w"])

    head_vec = jnp.zeros((8, CLS_PAD), jnp.float32)
    head_vec = head_vec.at[0, :H].set(p["emb_ln_g"])
    head_vec = head_vec.at[1, :H].set(p["emb_ln_b"])
    head_vec = head_vec.at[2, :H].set(p["pool_b"])
    head_vec = head_vec.at[3, :NUM_CLASSES].set(p["cls_b"])

    return {
        "word_emb": p["word_emb"],
        "pos_emb": p["pos_emb"],
        "type_emb": p["type_emb"],
        "layer_w": jnp.stack(layer_w),     # (L, H, 256)
        "layer_b": jnp.stack(layer_b),     # (L, 8, 96)
        "head_w": head_w,                  # (H, 160)
        "head_vec": head_vec,              # (8, 128)
    }


# ------------------------------ forward pass ----------------------------------
def herbert_forward(pk, input_ids, attention_mask):
    mask_f = attention_mask.astype(jnp.float32)                        # (B, S)
    # RoBERTa position ids: cumsum over non-pad tokens + padding_idx.
    pos_ids = (jnp.cumsum(mask_f, axis=1) * mask_f).astype(jnp.int32) + PAD_IDX
    # Embedding gathers stay in XLA (tiny tables, no Pallas gather needed).
    # TODO(synk): token_type embedding hard-coded to type id 0 row.
    emb = (pk["word_emb"][input_ids]
           + pk["pos_emb"][pos_ids]
           + pk["type_emb"][0][None, None, :])                          # (B, S, H)
    emb = emb.reshape(B * S, H)                                         # flat slab

    # Additive key mask, pre-broadcast to the stacked (B*NH*S, S) score layout
    # (hoisted out of the head/layer loops entirely).
    mask_add = (1.0 - mask_f) * -1e9                                    # (B, S)
    mask_slab = jnp.broadcast_to(mask_add[:, None, None, :],
                                 (B, NH, S, S)).reshape(B * NH * S, S)

    vmem = pl.BlockSpec(memory_space=pltpu.MemorySpace.VMEM)
    out = pl.pallas_call(
        _herbert_kernel,
        out_shape=jax.ShapeDtypeStruct((B, CLS_PAD), jnp.float32),
        # No grid: single fused step for the whole batch (per perf review the
        # per-grid-step fixed cost dominates at these sizes; v7x CORE_PARALLEL
        # sharding would only help if a batch axis were kept).
        in_specs=[vmem] * 6,
        out_specs=vmem,
        scratch_shapes=[pltpu.VMEM((B * S, H), jnp.float32)],            # ctx slab
    )(emb, mask_slab, pk["layer_w"], pk["layer_b"], pk["head_w"], pk["head_vec"])

    return out[:, :NUM_CLASSES]                                          # (B, C)


herbert_forward_jit = jax.jit(herbert_forward)


# ----------------------------------- main --------------------------------------
if __name__ == "__main__":
    key = jax.random.PRNGKey(0)
    pkey, ikey = jax.random.split(key)
    params = init_params(pkey)
    packed = pack_params(params)

    input_ids = jax.random.randint(ikey, (B, S), 2, VOCAB, dtype=jnp.int32)
    attention_mask = jnp.ones((B, S), jnp.int32)
    attention_mask = attention_mask.at[1, -2:].set(0)   # pad tail of 2nd example

    out = herbert_forward_jit(packed, input_ids, attention_mask)
    out = jax.block_until_ready(out)

    assert out.shape == (B, NUM_CLASSES)
    assert bool(jnp.all(jnp.isfinite(out)))
    assert bool(jnp.all((out >= 0.0) & (out <= 1.0)))
    print("KERNEL_OK")
</pallas_src>

<mosaic_0001>
module attributes {stable_mosaic.version = 11 : i64} {
  func.func @_herbert_kernel(%arg0: memref<16x32xf32, #tpu.memory_space<vmem>>, %arg1: memref<64x8xf32, #tpu.memory_space<vmem>>, %arg2: memref<2x32x256xf32, #tpu.memory_space<vmem>>, %arg3: memref<2x8x96xf32, #tpu.memory_space<vmem>>, %arg4: memref<32x160xf32, #tpu.memory_space<vmem>>, %arg5: memref<8x128xf32, #tpu.memory_space<vmem>>, %arg6: memref<2x128xf32, #tpu.memory_space<vmem>>, %arg7: memref<16x32xf32, #tpu.memory_space<vmem>>) attributes {dimension_semantics = [], scalar_prefetch = 0 : i64, scratch_operands = 1 : i64, tpu.core_type = #tpu.core_type<tc>} {
    %c0 = arith.constant 0 : index
    %c0_0 = arith.constant 0 : index
    %0 = vector.load %arg5[%c0, %c0_0] : memref<8x128xf32, #tpu.memory_space<vmem>>, vector<8x128xf32>
    %c0_1 = arith.constant 0 : index
    %c0_2 = arith.constant 0 : index
    %1 = vector.load %arg1[%c0_1, %c0_2] : memref<64x8xf32, #tpu.memory_space<vmem>>, vector<64x8xf32>
    %c0_3 = arith.constant 0 : index
    %c0_4 = arith.constant 0 : index
    %2 = vector.load %arg0[%c0_3, %c0_4] : memref<16x32xf32, #tpu.memory_space<vmem>>, vector<16x32xf32>
    %3 = vector.extract_strided_slice %0 {offsets = [0, 0], sizes = [1, 32], strides = [1, 1]} : vector<8x128xf32> to vector<1x32xf32>
    %4 = vector.extract_strided_slice %0 {offsets = [1, 0], sizes = [1, 32], strides = [1, 1]} : vector<8x128xf32> to vector<1x32xf32>
    %cst = arith.constant dense<0.000000e+00> : vector<16xf32>
    %5 = vector.multi_reduction <add>, %2, %cst [1] : vector<16x32xf32> to vector<16xf32>
    %6 = vector.shape_cast %5 : vector<16xf32> to vector<16x1xf32>
    %cst_5 = arith.constant 3.200000e+01 : f32
    %7 = vector.broadcast %cst_5 : f32 to vector<16x1xf32>
    %8 = arith.divf %6, %7 : vector<16x1xf32>
    %9 = vector.broadcast %8 : vector<16x1xf32> to vector<16x32xf32>
    %10 = arith.subf %2, %9 : vector<16x32xf32>
    %11 = arith.mulf %10, %10 : vector<16x32xf32>
    %cst_6 = arith.constant dense<0.000000e+00> : vector<16xf32>
    %12 = vector.multi_reduction <add>, %11, %cst_6 [1] : vector<16x32xf32> to vector<16xf32>
    %13 = vector.shape_cast %12 : vector<16xf32> to vector<16x1xf32>
    %cst_7 = arith.constant 3.200000e+01 : f32
    %14 = vector.broadcast %cst_7 : f32 to vector<16x1xf32>
    %15 = arith.divf %13, %14 : vector<16x1xf32>
    %16 = vector.broadcast %8 : vector<16x1xf32> to vector<16x32xf32>
    %17 = arith.subf %2, %16 : vector<16x32xf32>
    %cst_8 = arith.constant 9.99999974E-6 : f32
    %18 = vector.broadcast %cst_8 : f32 to vector<16x1xf32>
    %19 = arith.addf %15, %18 : vector<16x1xf32>
    %20 = math.rsqrt %19 : vector<16x1xf32>
    %21 = vector.broadcast %20 : vector<16x1xf32> to vector<16x32xf32>
    %22 = arith.mulf %17, %21 : vector<16x32xf32>
    %23 = vector.broadcast %3 : vector<1x32xf32> to vector<16x32xf32>
    %24 = arith.mulf %22, %23 : vector<16x32xf32>
    %25 = vector.broadcast %4 : vector<1x32xf32> to vector<16x32xf32>
    %26 = arith.addf %24, %25 : vector<16x32xf32>
    %c0_9 = arith.constant 0 : index
    %c0_10 = arith.constant 0 : index
    %c0_11 = arith.constant 0 : index
    %27 = vector.load %arg2[%c0_9, %c0_10, %c0_11] : memref<2x32x256xf32, #tpu.memory_space<vmem>>, vector<1x32x256xf32>
    %28 = vector.shape_cast %27 : vector<1x32x256xf32> to vector<32x256xf32>
    %c0_12 = arith.constant 0 : index
    %c0_13 = arith.constant 0 : index
    %c0_14 = arith.constant 0 : index
    %29 = vector.load %arg3[%c0_12, %c0_13, %c0_14] : memref<2x8x96xf32, #tpu.memory_space<vmem>>, vector<1x8x96xf32>
    %30 = vector.shape_cast %29 : vector<1x8x96xf32> to vector<8x96xf32>
    %31 = vector.extract_strided_slice %28 {offsets = [0, 0], sizes = [32, 96], strides = [1, 1]} : vector<32x256xf32> to vector<32x96xf32>
    %cst_15 = arith.constant dense<0.000000e+00> : vector<16x96xf32>
    %32 = tpu.matmul %26, %31, %cst_15 {dimension_numbers = #tpu.dot_dimension_numbers<[1], [0], [0], [1], [0, 0, 1, 1], [], []>} : vector<16x32xf32>, vector<32x96xf32>, vector<16x96xf32> -> vector<16x96xf32>
    %33 = vector.extract_strided_slice %30 {offsets = [0, 0], sizes = [1, 96], strides = [1, 1]} : vector<8x96xf32> to vector<1x96xf32>
    %34 = vector.broadcast %33 : vector<1x96xf32> to vector<16x96xf32>
    %35 = arith.addf %32, %34 : vector<16x96xf32>
    %36 = vector.extract_strided_slice %35 {offsets = [0, 0], sizes = [8, 8], strides = [1, 1]} : vector<16x96xf32> to vector<8x8xf32>
    %37 = vector.extract_strided_slice %35 {offsets = [0, 32], sizes = [8, 8], strides = [1, 1]} : vector<16x96xf32> to vector<8x8xf32>
    %cst_16 = arith.constant dense<0.000000e+00> : vector<8x8xf32>
    %38 = tpu.matmul %36, %37, %cst_16 {dimension_numbers = #tpu.dot_dimension_numbers<[1], [1], [0], [0], [0, 0, 1, 0], [], []>} : vector<8x8xf32>, vector<8x8xf32>, vector<8x8xf32> -> vector<8x8xf32>
    %39 = vector.extract_strided_slice %35 {offsets = [0, 8], sizes = [8, 8], strides = [1, 1]} : vector<16x96xf32> to vector<8x8xf32>
    %40 = vector.extract_strided_slice %35 {offsets = [0, 40], sizes = [8, 8], strides = [1, 1]} : vector<16x96xf32> to vector<8x8xf32>
    %cst_17 = arith.constant dense<0.000000e+00> : vector<8x8xf32>
    %41 = tpu.matmul %39, %40, %cst_17 {dimension_numbers = #tpu.dot_dimension_numbers<[1], [1], [0], [0], [0, 0, 1, 0], [], []>} : vector<8x8xf32>, vector<8x8xf32>, vector<8x8xf32> -> vector<8x8xf32>
    %42 = vector.extract_strided_slice %35 {offsets = [0, 16], sizes = [8, 8], strides = [1, 1]} : vector<16x96xf32> to vector<8x8xf32>
    %43 = vector.extract_strided_slice %35 {offsets = [0, 48], sizes = [8, 8], strides = [1, 1]} : vector<16x96xf32> to vector<8x8xf32>
    %cst_18 = arith.constant dense<0.000000e+00> : vector<8x8xf32>
    %44 = tpu.matmul %42, %43, %cst_18 {dimension_numbers = #tpu.dot_dimension_numbers<[1], [1], [0], [0], [0, 0, 1, 0], [], []>} : vector<8x8xf32>, vector<8x8xf32>, vector<8x8xf32> -> vector<8x8xf32>
    %45 = vector.extract_strided_slice %35 {offsets = [0, 24], sizes = [8, 8], strides = [1, 1]} : vector<16x96xf32> to vector<8x8xf32>
    %46 = vector.extract_strided_slice %35 {offsets = [0, 56], sizes = [8, 8], strides = [1, 1]} : vector<16x96xf32> to vector<8x8xf32>
    %cst_19 = arith.constant dense<0.000000e+00> : vector<8x8xf32>
    %47 = tpu.matmul %45, %46, %cst_19 {dimension_numbers = #tpu.dot_dimension_numbers<[1], [1], [0], [0], [0, 0, 1, 0], [], []>} : vector<8x8xf32>, vector<8x8xf32>, vector<8x8xf32> -> vector<8x8xf32>
    %48 = vector.extract_strided_slice %35 {offsets = [8, 0], sizes = [8, 8], strides = [1, 1]} : vector<16x96xf32> to vector<8x8xf32>
    %49 = vector.extract_strided_slice %35 {offsets = [8, 32], sizes = [8, 8], strides = [1, 1]} : vector<16x96xf32> to vector<8x8xf32>
    %cst_20 = arith.constant dense<0.000000e+00> : vector<8x8xf32>
    %50 = tpu.matmul %48, %49, %cst_20 {dimension_numbers = #tpu.dot_dimension_numbers<[1], [1], [0], [0], [0, 0, 1, 0], [], []>} : vector<8x8xf32>, vector<8x8xf32>, vector<8x8xf32> -> vector<8x8xf32>
    %51 = vector.extract_strided_slice %35 {offsets = [8, 8], sizes = [8, 8], strides = [1, 1]} : vector<16x96xf32> to vector<8x8xf32>
    %52 = vector.extract_strided_slice %35 {offsets = [8, 40], sizes = [8, 8], strides = [1, 1]} : vector<16x96xf32> to vector<8x8xf32>
    %cst_21 = arith.constant dense<0.000000e+00> : vector<8x8xf32>
    %53 = tpu.matmul %51, %52, %cst_21 {dimension_numbers = #tpu.dot_dimension_numbers<[1], [1], [0], [0], [0, 0, 1, 0], [], []>} : vector<8x8xf32>, vector<8x8xf32>, vector<8x8xf32> -> vector<8x8xf32>
    %54 = vector.extract_strided_slice %35 {offsets = [8, 16], sizes = [8, 8], strides = [1, 1]} : vector<16x96xf32> to vector<8x8xf32>
    %55 = vector.extract_strided_slice %35 {offsets = [8, 48], sizes = [8, 8], strides = [1, 1]} : vector<16x96xf32> to vector<8x8xf32>
    %cst_22 = arith.constant dense<0.000000e+00> : vector<8x8xf32>
    %56 = tpu.matmul %54, %55, %cst_22 {dimension_numbers = #tpu.dot_dimension_numbers<[1], [1], [0], [0], [0, 0, 1, 0], [], []>} : vector<8x8xf32>, vector<8x8xf32>, vector<8x8xf32> -> vector<8x8xf32>
    %57 = vector.extract_strided_slice %35 {offsets = [8, 24], sizes = [8, 8], strides = [1, 1]} : vector<16x96xf32> to vector<8x8xf32>
    %58 = vector.extract_strided_slice %35 {offsets = [8, 56], sizes = [8, 8], strides = [1, 1]} : vector<16x96xf32> to vector<8x8xf32>
    %cst_23 = arith.constant dense<0.000000e+00> : vector<8x8xf32>
    %59 = tpu.matmul %57, %58, %cst_23 {dimension_numbers = #tpu.dot_dimension_numbers<[1], [1], [0], [0], [0, 0, 1, 0], [], []>} : vector<8x8xf32>, vector<8x8xf32>, vector<8x8xf32> -> vector<8x8xf32>
    %60 = tpu.concatenate %38, %41, %44, %47, %50, %53, %56, %59 in 0 : vector<8x8xf32>, vector<8x8xf32>, vector<8x8xf32>, vector<8x8xf32>, vector<8x8xf32>, vector<8x8xf32>, vector<8x8xf32>, vector<8x8xf32> -> vector<64x8xf32>
    %61 = arith.addf %60, %1 : vector<64x8xf32>
    %cst_24 = arith.constant dense<0xFF800000> : vector<64xf32>
    %62 = vector.multi_reduction <maximumf>, %61, %cst_24 [1] : vector<64x8xf32> to vector<64xf32>
    %63 = vector.shape_cast %62 : vector<64xf32> to vector<64x1xf32>
    %64 = vector.broadcast %63 : vector<64x1xf32> to vector<64x8xf32>
    %65 = arith.subf %61, %64 : vector<64x8xf32>
    %66 = math.exp %65 : vector<64x8xf32>
    %cst_25 = arith.constant dense<0.000000e+00> : vector<64xf32>
    %67 = vector.multi_reduction <add>, %66, %cst_25 [1] : vector<64x8xf32> to vector<64xf32>
    %68 = vector.shape_cast %67 : vector<64xf32> to vector<64x1xf32>
    %69 = vector.broadcast %68 : vector<64x1xf32> to vector<64x8xf32>
    %70 = arith.divf %66, %69 : vector<64x8xf32>
    %71 = vector.extract_strided_slice %35 {offsets = [0, 64], sizes = [8, 8], strides = [1, 1]} : vector<16x96xf32> to vector<8x8xf32>
    %72 = vector.extract_strided_slice %70 {offsets = [0, 0], sizes = [8, 8], strides = [1, 1]} : vector<64x8xf32> to vector<8x8xf32>
    %cst_26 = arith.constant dense<0.000000e+00> : vector<8x8xf32>
    %73 = tpu.matmul %72, %71, %cst_26 {dimension_numbers = #tpu.dot_dimension_numbers<[1], [0], [0], [1], [0, 0, 1, 1], [], []>} : vector<8x8xf32>, vector<8x8xf32>, vector<8x8xf32> -> vector<8x8xf32>
    %c0_27 = arith.constant 0 : index
    %c0_28 = arith.constant 0 : index
    %74 = vector.load %arg7[%c0_27, %c0_28] : memref<16x32xf32, #tpu.memory_space<vmem>>, vector<8x8xf32>
    tpu.vector_store %arg7[%c0_27, %c0_28], %73 {strides = array<i32>} : memref<16x32xf32, #tpu.memory_space<vmem>>, vector<8x8xf32>,
    %75 = vector.extract_strided_slice %35 {offsets = [0, 72], sizes = [8, 8], strides = [1, 1]} : vector<16x96xf32> to vector<8x8xf32>
    %76 = vector.extract_strided_slice %70 {offsets = [8, 0], sizes = [8, 8], strides = [1, 1]} : vector<64x8xf32> to vector<8x8xf32>
    %cst_29 = arith.constant dense<0.000000e+00> : vector<8x8xf32>
    %77 = tpu.matmul %76, %75, %cst_29 {dimension_numbers = #tpu.dot_dimension_numbers<[1], [0], [0], [1], [0, 0, 1, 1], [], []>} : vector<8x8xf32>, vector<8x8xf32>, vector<8x8xf32> -> vector<8x8xf32>
    %c0_30 = arith.constant 0 : index
    %c8 = arith.constant 8 : index
    %78 = vector.load %arg7[%c0_30, %c8] : memref<16x32xf32, #tpu.memory_space<vmem>>, vector<8x8xf32>
    tpu.vector_store %arg7[%c0_30, %c8], %77 {strides = array<i32>} : memref<16x32xf32, #tpu.memory_space<vmem>>, vector<8x8xf32>,
    %79 = vector.extract_strided_slice %35 {offsets = [0, 80], sizes = [8, 8], strides = [1, 1]} : vector<16x96xf32> to vector<8x8xf32>
    %80 = vector.extract_strided_slice %70 {offsets = [16, 0], sizes = [8, 8], strides = [1, 1]} : vector<64x8xf32> to vector<8x8xf32>
    %cst_31 = arith.constant dense<0.000000e+00> : vector<8x8xf32>
    %81 = tpu.matmul %80, %79, %cst_31 {dimension_numbers = #tpu.dot_dimension_numbers<[1], [0], [0], [1], [0, 0, 1, 1], [], []>} : vector<8x8xf32>, vector<8x8xf32>, vector<8x8xf32> -> vector<8x8xf32>
    %c0_32 = arith.constant 0 : index
    %c16 = arith.constant 16 : index
    %82 = vector.load %arg7[%c0_32, %c16] : memref<16x32xf32, #tpu.memory_space<vmem>>, vector<8x8xf32>
    tpu.vector_store %arg7[%c0_32, %c16], %81 {strides = array<i32>} : memref<16x32xf32, #tpu.memory_space<vmem>>, vector<8x8xf32>,
    %83 = vector.extract_strided_slice %35 {offsets = [0, 88], sizes = [8, 8], strides = [1, 1]} : vector<16x96xf32> to vector<8x8xf32>
    %84 = vector.extract_strided_slice %70 {offsets = [24, 0], sizes = [8, 8], strides = [1, 1]} : vector<64x8xf32> to vector<8x8xf32>
    %cst_33 = arith.constant dense<0.000000e+00> : vector<8x8xf32>
    %85 = tpu.matmul %84, %83, %cst_33 {dimension_numbers = #tpu.dot_dimension_numbers<[1], [0], [0], [1], [0, 0, 1, 1], [], []>} : vector<8x8xf32>, vector<8x8xf32>, vector<8x8xf32> -> vector<8x8xf32>
    %c0_34 = arith.constant 0 : index
    %c24 = arith.constant 24 : index
    %86 = vector.load %arg7[%c0_34, %c24] : memref<16x32xf32, #tpu.memory_space<vmem>>, vector<8x8xf32>
    tpu.vector_store %arg7[%c0_34, %c24], %85 {strides = array<i32>} : memref<16x32xf32, #tpu.memory_space<vmem>>, vector<8x8xf32>,
    %87 = vector.extract_strided_slice %35 {offsets = [8, 64], sizes = [8, 8], strides = [1, 1]} : vector<16x96xf32> to vector<8x8xf32>
    %88 = vector.extract_strided_slice %70 {offsets = [32, 0], sizes = [8, 8], strides = [1, 1]} : vector<64x8xf32> to vector<8x8xf32>
    %cst_35 = arith.constant dense<0.000000e+00> : vector<8x8xf32>
    %89 = tpu.matmul %88, %87, %cst_35 {dimension_numbers = #tpu.dot_dimension_numbers<[1], [0], [0], [1], [0, 0, 1, 1], [], []>} : vector<8x8xf32>, vector<8x8xf32>, vector<8x8xf32> -> vector<8x8xf32>
    %c8_36 = arith.constant 8 : index
    %c0_37 = arith.constant 0 : index
    %90 = vector.load %arg7[%c8_36, %c0_37] : memref<16x32xf32, #tpu.memory_space<vmem>>, vector<8x8xf32>
    tpu.vector_store %arg7[%c8_36, %c0_37], %89 {strides = array<i32>} : memref<16x32xf32, #tpu.memory_space<vmem>>, vector<8x8xf32>,
    %91 = vector.extract_strided_slice %35 {offsets = [8, 72], sizes = [8, 8], strides = [1, 1]} : vector<16x96xf32> to vector<8x8xf32>
    %92 = vector.extract_strided_slice %70 {offsets = [40, 0], sizes = [8, 8], strides = [1, 1]} : vector<64x8xf32> to vector<8x8xf32>
    %cst_38 = arith.constant dense<0.000000e+00> : vector<8x8xf32>
    %93 = tpu.matmul %92, %91, %cst_38 {dimension_numbers = #tpu.dot_dimension_numbers<[1], [0], [0], [1], [0, 0, 1, 1], [], []>} : vector<8x8xf32>, vector<8x8xf32>, vector<8x8xf32> -> vector<8x8xf32>
    %c8_39 = arith.constant 8 : index
    %c8_40 = arith.constant 8 : index
    %94 = vector.load %arg7[%c8_39, %c8_40] : memref<16x32xf32, #tpu.memory_space<vmem>>, vector<8x8xf32>
    tpu.vector_store %arg7[%c8_39, %c8_40], %93 {strides = array<i32>} : memref<16x32xf32, #tpu.memory_space<vmem>>, vector<8x8xf32>,
    %95 = vector.extract_strided_slice %35 {offsets = [8, 80], sizes = [8, 8], strides = [1, 1]} : vector<16x96xf32> to vector<8x8xf32>
    %96 = vector.extract_strided_slice %70 {offsets = [48, 0], sizes = [8, 8], strides = [1, 1]} : vector<64x8xf32> to vector<8x8xf32>
    %cst_41 = arith.constant dense<0.000000e+00> : vector<8x8xf32>
    %97 = tpu.matmul %96, %95, %cst_41 {dimension_numbers = #tpu.dot_dimension_numbers<[1], [0], [0], [1], [0, 0, 1, 1], [], []>} : vector<8x8xf32>, vector<8x8xf32>, vector<8x8xf32> -> vector<8x8xf32>
    %c8_42 = arith.constant 8 : index
    %c16_43 = arith.constant 16 : index
    %98 = vector.load %arg7[%c8_42, %c16_43] : memref<16x32xf32, #tpu.memory_space<vmem>>, vector<8x8xf32>
    tpu.vector_store %arg7[%c8_42, %c16_43], %97 {strides = array<i32>} : memref<16x32xf32, #tpu.memory_space<vmem>>, vector<8x8xf32>,
    %99 = vector.extract_strided_slice %35 {offsets = [8, 88], sizes = [8, 8], strides = [1, 1]} : vector<16x96xf32> to vector<8x8xf32>
    %100 = vector.extract_strided_slice %70 {offsets = [56, 0], sizes = [8, 8], strides = [1, 1]} : vector<64x8xf32> to vector<8x8xf32>
    %cst_44 = arith.constant dense<0.000000e+00> : vector<8x8xf32>
    %101 = tpu.matmul %100, %99, %cst_44 {dimension_numbers = #tpu.dot_dimension_numbers<[1], [0], [0], [1], [0, 0, 1, 1], [], []>} : vector<8x8xf32>, vector<8x8xf32>, vector<8x8xf32> -> vector<8x8xf32>
    %c8_45 = arith.constant 8 : index
    %c24_46 = arith.constant 24 : index
    %102 = vector.load %arg7[%c8_45, %c24_46] : memref<16x32xf32, #tpu.memory_space<vmem>>, vector<8x8xf32>
    tpu.vector_store %arg7[%c8_45, %c24_46], %101 {strides = array<i32>} : memref<16x32xf32, #tpu.memory_space<vmem>>, vector<8x8xf32>,
    %c0_47 = arith.constant 0 : index
    %c0_48 = arith.constant 0 : index
    %103 = vector.load %arg7[%c0_47, %c0_48] : memref<16x32xf32, #tpu.memory_space<vmem>>, vector<16x32xf32>
    %104 = vector.extract_strided_slice %28 {offsets = [0, 96], sizes = [32, 32], strides = [1, 1]} : vector<32x256xf32> to vector<32x32xf32>
    %cst_49 = arith.constant dense<0.000000e+00> : vector<16x32xf32>
    %105 = tpu.matmul %103, %104, %cst_49 {dimension_numbers = #tpu.dot_dimension_numbers<[1], [0], [0], [1], [0, 0, 1, 1], [], []>} : vector<16x32xf32>, vector<32x32xf32>, vector<16x32xf32> -> vector<16x32xf32>
    %106 = vector.extract_strided_slice %30 {offsets = [1, 0], sizes = [1, 32], strides = [1, 1]} : vector<8x96xf32> to vector<1x32xf32>
    %107 = vector.broadcast %106 : vector<1x32xf32> to vector<16x32xf32>
    %108 = arith.addf %105, %107 : vector<16x32xf32>
    %109 = arith.addf %108, %26 : vector<16x32xf32>
    %110 = vector.extract_strided_slice %30 {offsets = [2, 0], sizes = [1, 32], strides = [1, 1]} : vector<8x96xf32> to vector<1x32xf32>
    %111 = vector.extract_strided_slice %30 {offsets = [3, 0], sizes = [1, 32], strides = [1, 1]} : vector<8x96xf32> to vector<1x32xf32>
    %cst_50 = arith.constant dense<0.000000e+00> : vector<16xf32>
    %112 = vector.multi_reduction <add>, %109, %cst_50 [1] : vector<16x32xf32> to vector<16xf32>
    %113 = vector.shape_cast %112 : vector<16xf32> to vector<16x1xf32>
    %cst_51 = arith.constant 3.200000e+01 : f32
    %114 = vector.broadcast %cst_51 : f32 to vector<16x1xf32>
    %115 = arith.divf %113, %114 : vector<16x1xf32>
    %116 = vector.broadcast %115 : vector<16x1xf32> to vector<16x32xf32>
    %117 = arith.subf %109, %116 : vector<16x32xf32>
    %118 = arith.mulf %117, %117 : vector<16x32xf32>
    %cst_52 = arith.constant dense<0.000000e+00> : vector<16xf32>
    %119 = vector.multi_reduction <add>, %118, %cst_52 [1] : vector<16x32xf32> to vector<16xf32>
    %120 = vector.shape_cast %119 : vector<16xf32> to vector<16x1xf32>
    %cst_53 = arith.constant 3.200000e+01 : f32
    %121 = vector.broadcast %cst_53 : f32 to vector<16x1xf32>
    %122 = arith.divf %120, %121 : vector<16x1xf32>
    %123 = vector.broadcast %115 : vector<16x1xf32> to vector<16x32xf32>
    %124 = arith.subf %109, %123 : vector<16x32xf32>
    %cst_54 = arith.constant 9.99999974E-6 : f32
    %125 = vector.broadcast %cst_54 : f32 to vector<16x1xf32>
    %126 = arith.addf %122, %125 : vector<16x1xf32>
    %127 = math.rsqrt %126 : vector<16x1xf32>
    %128 = vector.broadcast %127 : vector<16x1xf32> to vector<16x32xf32>
    %129 = arith.mulf %124, %128 : vector<16x32xf32>
    %130 = vector.broadcast %110 : vector<1x32xf32> to vector<16x32xf32>
    %131 = arith.mulf %129, %130 : vector<16x32xf32>
    %132 = vector.broadcast %111 : vector<1x32xf32> to vector<16x32xf32>
    %133 = arith.addf %131, %132 : vector<16x32xf32>
    %134 = vector.extract_strided_slice %28 {offsets = [0, 128], sizes = [32, 64], strides = [1, 1]} : vector<32x256xf32> to vector<32x64xf32>
    %cst_55 = arith.constant dense<0.000000e+00> : vector<16x64xf32>
    %135 = tpu.matmul %133, %134, %cst_55 {dimension_numbers = #tpu.dot_dimension_numbers<[1], [0], [0], [1], [0, 0, 1, 1], [], []>} : vector<16x32xf32>, vector<32x64xf32>, vector<16x64xf32> -> vector<16x64xf32>
    %136 = vector.extract_strided_slice %30 {offsets = [4, 0], sizes = [1, 64], strides = [1, 1]} : vector<8x96xf32> to vector<1x64xf32>
    %137 = vector.broadcast %136 : vector<1x64xf32> to vector<16x64xf32>
    %138 = arith.addf %135, %137 : vector<16x64xf32>
    %cst_56 = arith.constant 5.000000e-01 : f32
    %139 = vector.broadcast %cst_56 : f32 to vector<16x64xf32>
    %140 = arith.mulf %139, %138 : vector<16x64xf32>
    %cst_57 = arith.constant 0.707106769 : f32
    %141 = vector.broadcast %cst_57 : f32 to vector<16x64xf32>
    %142 = arith.mulf %138, %141 : vector<16x64xf32>
    %cst_58 = arith.constant 0.000000e+00 : f32
    %143 = vector.broadcast %cst_58 : f32 to vector<16x64xf32>
    %144 = arith.cmpf olt, %142, %143 : vector<16x64xf32>
    %cst_59 = arith.constant -1.000000e+00 : f32
    %cst_60 = arith.constant 1.000000e+00 : f32
    %145 = vector.broadcast %cst_59 : f32 to vector<16x64xf32>
    %146 = vector.broadcast %cst_60 : f32 to vector<16x64xf32>
    %147 = arith.select %144, %145, %146 : vector<16x64xi1>, vector<16x64xf32>
    %148 = math.absf %142 : vector<16x64xf32>
    %cst_61 = arith.constant 0.327591091 : f32
    %149 = vector.broadcast %cst_61 : f32 to vector<16x64xf32>
    %150 = arith.mulf %149, %148 : vector<16x64xf32>
    %cst_62 = arith.constant 1.000000e+00 : f32
    %151 = vector.broadcast %cst_62 : f32 to vector<16x64xf32>
    %152 = arith.addf %151, %150 : vector<16x64xf32>
    %cst_63 = arith.constant 1.000000e+00 : f32
    %153 = vector.broadcast %cst_63 : f32 to vector<16x64xf32>
    %154 = arith.divf %153, %152 : vector<16x64xf32>
    %cst_64 = arith.constant 1.06140542 : f32
    %155 = vector.broadcast %cst_64 : f32 to vector<16x64xf32>
    %156 = arith.mulf %155, %154 : vector<16x64xf32>
    %cst_65 = arith.constant -1.45315206 : f32
    %157 = vector.broadcast %cst_65 : f32 to vector<16x64xf32>
    %158 = arith.addf %156, %157 : vector<16x64xf32>
    %159 = arith.mulf %158, %154 : vector<16x64xf32>
    %cst_66 = arith.constant 1.42141378 : f32
    %160 = vector.broadcast %cst_66 : f32 to vector<16x64xf32>
    %161 = arith.addf %159, %160 : vector<16x64xf32>
    %162 = arith.mulf %161, %154 : vector<16x64xf32>
    %cst_67 = arith.constant -0.284496725 : f32
    %163 = vector.broadcast %cst_67 : f32 to vector<16x64xf32>
    %164 = arith.addf %162, %163 : vector<16x64xf32>
    %165 = arith.mulf %164, %154 : vector<16x64xf32>
    %cst_68 = arith.constant 0.254829586 : f32
    %166 = vector.broadcast %cst_68 : f32 to vector<16x64xf32>
    %167 = arith.addf %165, %166 : vector<16x64xf32>
    %168 = arith.mulf %167, %154 : vector<16x64xf32>
    %cst_69 = arith.constant 0.000000e+00 : f32
    %169 = vector.broadcast %cst_69 : f32 to vector<16x64xf32>
    %170 = arith.subf %169, %148 : vector<16x64xf32>
    %171 = arith.mulf %170, %148 : vector<16x64xf32>
    %172 = math.exp %171 : vector<16x64xf32>
    %173 = arith.mulf %168, %172 : vector<16x64xf32>
    %cst_70 = arith.constant 1.000000e+00 : f32
    %174 = vector.broadcast %cst_70 : f32 to vector<16x64xf32>
    %175 = arith.subf %174, %173 : vector<16x64xf32>
    %176 = arith.mulf %147, %175 : vector<16x64xf32>
    %cst_71 = arith.constant 1.000000e+00 : f32
    %177 = vector.broadcast %cst_71 : f32 to vector<16x64xf32>
    %178 = arith.addf %177, %176 : vector<16x64xf32>
    %179 = arith.mulf %140, %178 : vector<16x64xf32>
    %180 = vector.extract_strided_slice %28 {offsets = [0, 192], sizes = [32, 64], strides = [1, 1]} : vector<32x256xf32> to vector<32x64xf32>
    %cst_72 = arith.constant dense<0.000000e+00> : vector<16x32xf32>
    %181 = tpu.matmul %179, %180, %cst_72 {dimension_numbers = #tpu.dot_dimension_numbers<[1], [1], [0], [0], [0, 0, 1, 0], [], []>} : vector<16x64xf32>, vector<32x64xf32>, vector<16x32xf32> -> vector<16x32xf32>
    %182 = vector.extract_strided_slice %30 {offsets = [5, 0], sizes = [1, 32], strides = [1, 1]} : vector<8x96xf32> to vector<1x32xf32>
    %183 = vector.broadcast %182 : vector<1x32xf32> to vector<16x32xf32>
    %184 = arith.addf %181, %183 : vector<16x32xf32>
    %185 = arith.addf %184, %133 : vector<16x32xf32>
    %186 = vector.extract_strided_slice %30 {offsets = [6, 0], sizes = [1, 32], strides = [1, 1]} : vector<8x96xf32> to vector<1x32xf32>
    %187 = vector.extract_strided_slice %30 {offsets = [7, 0], sizes = [1, 32], strides = [1, 1]} : vector<8x96xf32> to vector<1x32xf32>
    %cst_73 = arith.constant dense<0.000000e+00> : vector<16xf32>
    %188 = vector.multi_reduction <add>, %185, %cst_73 [1] : vector<16x32xf32> to vector<16xf32>
    %189 = vector.shape_cast %188 : vector<16xf32> to vector<16x1xf32>
    %cst_74 = arith.constant 3.200000e+01 : f32
    %190 = vector.broadcast %cst_74 : f32 to vector<16x1xf32>
    %191 = arith.divf %189, %190 : vector<16x1xf32>
    %192 = vector.broadcast %191 : vector<16x1xf32> to vector<16x32xf32>
    %193 = arith.subf %185, %192 : vector<16x32xf32>
    %194 = arith.mulf %193, %193 : vector<16x32xf32>
    %cst_75 = arith.constant dense<0.000000e+00> : vector<16xf32>
    %195 = vector.multi_reduction <add>, %194, %cst_75 [1] : vector<16x32xf32> to vector<16xf32>
    %196 = vector.shape_cast %195 : vector<16xf32> to vector<16x1xf32>
    %cst_76 = arith.constant 3.200000e+01 : f32
    %197 = vector.broadcast %cst_76 : f32 to vector<16x1xf32>
    %198 = arith.divf %196, %197 : vector<16x1xf32>
    %199 = vector.broadcast %191 : vector<16x1xf32> to vector<16x32xf32>
    %200 = arith.subf %185, %199 : vector<16x32xf32>
    %cst_77 = arith.constant 9.99999974E-6 : f32
    %201 = vector.broadcast %cst_77 : f32 to vector<16x1xf32>
    %202 = arith.addf %198, %201 : vector<16x1xf32>
    %203 = math.rsqrt %202 : vector<16x1xf32>
    %204 = vector.broadcast %203 : vector<16x1xf32> to vector<16x32xf32>
    %205 = arith.mulf %200, %204 : vector<16x32xf32>
    %206 = vector.broadcast %186 : vector<1x32xf32> to vector<16x32xf32>
    %207 = arith.mulf %205, %206 : vector<16x32xf32>
    %208 = vector.broadcast %187 : vector<1x32xf32> to vector<16x32xf32>
    %209 = arith.addf %207, %208 : vector<16x32xf32>
    %c1 = arith.constant 1 : index
    %c0_78 = arith.constant 0 : index
    %c0_79 = arith.constant 0 : index
    %210 = vector.load %arg2[%c1, %c0_78, %c0_79] : memref<2x32x256xf32, #tpu.memory_space<vmem>>, vector<1x32x256xf32>
    %211 = vector.shape_cast %210 : vector<1x32x256xf32> to vector<32x256xf32>
    %c1_80 = arith.constant 1 : index
    %c0_81 = arith.constant 0 : index
    %c0_82 = arith.constant 0 : index
    %212 = vector.load %arg3[%c1_80, %c0_81, %c0_82] : memref<2x8x96xf32, #tpu.memory_space<vmem>>, vector<1x8x96xf32>
    %213 = vector.shape_cast %212 : vector<1x8x96xf32> to vector<8x96xf32>
    %214 = vector.extract_strided_slice %211 {offsets = [0, 0], sizes = [32, 96], strides = [1, 1]} : vector<32x256xf32> to vector<32x96xf32>
    %cst_83 = arith.constant dense<0.000000e+00> : vector<16x96xf32>
    %215 = tpu.matmul %209, %214, %cst_83 {dimension_numbers = #tpu.dot_dimension_numbers<[1], [0], [0], [1], [0, 0, 1, 1], [], []>} : vector<16x32xf32>, vector<32x96xf32>, vector<16x96xf32> -> vector<16x96xf32>
    %216 = vector.extract_strided_slice %213 {offsets = [0, 0], sizes = [1, 96], strides = [1, 1]} : vector<8x96xf32> to vector<1x96xf32>
    %217 = vector.broadcast %216 : vector<1x96xf32> to vector<16x96xf32>
    %218 = arith.addf %215, %217 : vector<16x96xf32>
    %219 = vector.extract_strided_slice %218 {offsets = [0, 0], sizes = [8, 8], strides = [1, 1]} : vector<16x96xf32> to vector<8x8xf32>
    %220 = vector.extract_strided_slice %218 {offsets = [0, 32], sizes = [8, 8], strides = [1, 1]} : vector<16x96xf32> to vector<8x8xf32>
    %cst_84 = arith.constant dense<0.000000e+00> : vector<8x8xf32>
    %221 = tpu.matmul %219, %220, %cst_84 {dimension_numbers = #tpu.dot_dimension_numbers<[1], [1], [0], [0], [0, 0, 1, 0], [], []>} : vector<8x8xf32>, vector<8x8xf32>, vector<8x8xf32> -> vector<8x8xf32>
    %222 = vector.extract_strided_slice %218 {offsets = [0, 8], sizes = [8, 8], strides = [1, 1]} : vector<16x96xf32> to vector<8x8xf32>
    %223 = vector.extract_strided_slice %218 {offsets = [0, 40], sizes = [8, 8], strides = [1, 1]} : vector<16x96xf32> to vector<8x8xf32>
    %cst_85 = arith.constant dense<0.000000e+00> : vector<8x8xf32>
    %224 = tpu.matmul %222, %223, %cst_85 {dimension_numbers = #tpu.dot_dimension_numbers<[1], [1], [0], [0], [0, 0, 1, 0], [], []>} : vector<8x8xf32>, vector<8x8xf32>, vector<8x8xf32> -> vector<8x8xf32>
    %225 = vector.extract_strided_slice %218 {offsets = [0, 16], sizes = [8, 8], strides = [1, 1]} : vector<16x96xf32> to vector<8x8xf32>
    %226 = vector.extract_strided_slice %218 {offsets = [0, 48], sizes = [8, 8], strides = [1, 1]} : vector<16x96xf32> to vector<8x8xf32>
    %cst_86 = arith.constant dense<0.000000e+00> : vector<8x8xf32>
    %227 = tpu.matmul %225, %226, %cst_86 {dimension_numbers = #tpu.dot_dimension_numbers<[1], [1], [0], [0], [0, 0, 1, 0], [], []>} : vector<8x8xf32>, vector<8x8xf32>, vector<8x8xf32> -> vector<8x8xf32>
    %228 = vector.extract_strided_slice %218 {offsets = [0, 24], sizes = [8, 8], strides = [1, 1]} : vector<16x96xf32> to vector<8x8xf32>
    %229 = vector.extract_strided_slice %218 {offsets = [0, 56], sizes = [8, 8], strides = [1, 1]} : vector<16x96xf32> to vector<8x8xf32>
    %cst_87 = arith.constant dense<0.000000e+00> : vector<8x8xf32>
    %230 = tpu.matmul %228, %229, %cst_87 {dimension_numbers = #tpu.dot_dimension_numbers<[1], [1], [0], [0], [0, 0, 1, 0], [], []>} : vector<8x8xf32>, vector<8x8xf32>, vector<8x8xf32> -> vector<8x8xf32>
    %231 = vector.extract_strided_slice %218 {offsets = [8, 0], sizes = [8, 8], strides = [1, 1]} : vector<16x96xf32> to vector<8x8xf32>
    %232 = vector.extract_strided_slice %218 {offsets = [8, 32], sizes = [8, 8], strides = [1, 1]} : vector<16x96xf32> to vector<8x8xf32>
    %cst_88 = arith.constant dense<0.000000e+00> : vector<8x8xf32>
    %233 = tpu.matmul %231, %232, %cst_88 {dimension_numbers = #tpu.dot_dimension_numbers<[1], [1], [0], [0], [0, 0, 1, 0], [], []>} : vector<8x8xf32>, vector<8x8xf32>, vector<8x8xf32> -> vector<8x8xf32>
    %234 = vector.extract_strided_slice %218 {offsets = [8, 8], sizes = [8, 8], strides = [1, 1]} : vector<16x96xf32> to vector<8x8xf32>
    %235 = vector.extract_strided_slice %218 {offsets = [8, 40], sizes = [8, 8], strides = [1, 1]} : vector<16x96xf32> to vector<8x8xf32>
    %cst_89 = arith.constant dense<0.000000e+00> : vector<8x8xf32>
    %236 = tpu.matmul %234, %235, %cst_89 {dimension_numbers = #tpu.dot_dimension_numbers<[1], [1], [0], [0], [0, 0, 1, 0], [], []>} : vector<8x8xf32>, vector<8x8xf32>, vector<8x8xf32> -> vector<8x8xf32>
    %237 = vector.extract_strided_slice %218 {offsets = [8, 16], sizes = [8, 8], strides = [1, 1]} : vector<16x96xf32> to vector<8x8xf32>
    %238 = vector.extract_strided_slice %218 {offsets = [8, 48], sizes = [8, 8], strides = [1, 1]} : vector<16x96xf32> to vector<8x8xf32>
    %cst_90 = arith.constant dense<0.000000e+00> : vector<8x8xf32>
    %239 = tpu.matmul %237, %238, %cst_90 {dimension_numbers = #tpu.dot_dimension_numbers<[1], [1], [0], [0], [0, 0, 1, 0], [], []>} : vector<8x8xf32>, vector<8x8xf32>, vector<8x8xf32> -> vector<8x8xf32>
    %240 = vector.extract_strided_slice %218 {offsets = [8, 24], sizes = [8, 8], strides = [1, 1]} : vector<16x96xf32> to vector<8x8xf32>
    %241 = vector.extract_strided_slice %218 {offsets = [8, 56], sizes = [8, 8], strides = [1, 1]} : vector<16x96xf32> to vector<8x8xf32>
    %cst_91 = arith.constant dense<0.000000e+00> : vector<8x8xf32>
    %242 = tpu.matmul %240, %241, %cst_91 {dimension_numbers = #tpu.dot_dimension_numbers<[1], [1], [0], [0], [0, 0, 1, 0], [], []>} : vector<8x8xf32>, vector<8x8xf32>, vector<8x8xf32> -> vector<8x8xf32>
    %243 = tpu.concatenate %221, %224, %227, %230, %233, %236, %239, %242 in 0 : vector<8x8xf32>, vector<8x8xf32>, vector<8x8xf32>, vector<8x8xf32>, vector<8x8xf32>, vector<8x8xf32>, vector<8x8xf32>, vector<8x8xf32> -> vector<64x8xf32>
    %244 = arith.addf %243, %1 : vector<64x8xf32>
    %cst_92 = arith.constant dense<0xFF800000> : vector<64xf32>
    %245 = vector.multi_reduction <maximumf>, %244, %cst_92 [1] : vector<64x8xf32> to vector<64xf32>
    %246 = vector.shape_cast %245 : vector<64xf32> to vector<64x1xf32>
    %247 = vector.broadcast %246 : vector<64x1xf32> to vector<64x8xf32>
    %248 = arith.subf %244, %247 : vector<64x8xf32>
    %249 = math.exp %248 : vector<64x8xf32>
    %cst_93 = arith.constant dense<0.000000e+00> : vector<64xf32>
    %250 = vector.multi_reduction <add>, %249, %cst_93 [1] : vector<64x8xf32> to vector<64xf32>
    %251 = vector.shape_cast %250 : vector<64xf32> to vector<64x1xf32>
    %252 = vector.broadcast %251 : vector<64x1xf32> to vector<64x8xf32>
    %253 = arith.divf %249, %252 : vector<64x8xf32>
    %254 = vector.extract_strided_slice %218 {offsets = [0, 64], sizes = [8, 8], strides = [1, 1]} : vector<16x96xf32> to vector<8x8xf32>
    %255 = vector.extract_strided_slice %253 {offsets = [0, 0], sizes = [8, 8], strides = [1, 1]} : vector<64x8xf32> to vector<8x8xf32>
    %cst_94 = arith.constant dense<0.000000e+00> : vector<8x8xf32>
    %256 = tpu.matmul %255, %254, %cst_94 {dimension_numbers = #tpu.dot_dimension_numbers<[1], [0], [0], [1], [0, 0, 1, 1], [], []>} : vector<8x8xf32>, vector<8x8xf32>, vector<8x8xf32> -> vector<8x8xf32>
    %c0_95 = arith.constant 0 : index
    %c0_96 = arith.constant 0 : index
    %257 = vector.load %arg7[%c0_95, %c0_96] : memref<16x32xf32, #tpu.memory_space<vmem>>, vector<8x8xf32>
    tpu.vector_store %arg7[%c0_95, %c0_96], %256 {strides = array<i32>} : memref<16x32xf32, #tpu.memory_space<vmem>>, vector<8x8xf32>,
    %258 = vector.extract_strided_slice %218 {offsets = [0, 72], sizes = [8, 8], strides = [1, 1]} : vector<16x96xf32> to vector<8x8xf32>
    %259 = vector.extract_strided_slice %253 {offsets = [8, 0], sizes = [8, 8], strides = [1, 1]} : vector<64x8xf32> to vector<8x8xf32>
    %cst_97 = arith.constant dense<0.000000e+00> : vector<8x8xf32>
    %260 = tpu.matmul %259, %258, %cst_97 {dimension_numbers = #tpu.dot_dimension_numbers<[1], [0], [0], [1], [0, 0, 1, 1], [], []>} : vector<8x8xf32>, vector<8x8xf32>, vector<8x8xf32> -> vector<8x8xf32>
    %c0_98 = arith.constant 0 : index
    %c8_99 = arith.constant 8 : index
    %261 = vector.load %arg7[%c0_98, %c8_99] : memref<16x32xf32, #tpu.memory_space<vmem>>, vector<8x8xf32>
    tpu.vector_store %arg7[%c0_98, %c8_99], %260 {strides = array<i32>} : memref<16x32xf32, #tpu.memory_space<vmem>>, vector<8x8xf32>,
    %262 = vector.extract_strided_slice %218 {offsets = [0, 80], sizes = [8, 8], strides = [1, 1]} : vector<16x96xf32> to vector<8x8xf32>
    %263 = vector.extract_strided_slice %253 {offsets = [16, 0], sizes = [8, 8], strides = [1, 1]} : vector<64x8xf32> to vector<8x8xf32>
    %cst_100 = arith.constant dense<0.000000e+00> : vector<8x8xf32>
    %264 = tpu.matmul %263, %262, %cst_100 {dimension_numbers = #tpu.dot_dimension_numbers<[1], [0], [0], [1], [0, 0, 1, 1], [], []>} : vector<8x8xf32>, vector<8x8xf32>, vector<8x8xf32> -> vector<8x8xf32>
    %c0_101 = arith.constant 0 : index
    %c16_102 = arith.constant 16 : index
    %265 = vector.load %arg7[%c0_101, %c16_102] : memref<16x32xf32, #tpu.memory_space<vmem>>, vector<8x8xf32>
    tpu.vector_store %arg7[%c0_101, %c16_102], %264 {strides = array<i32>} : memref<16x32xf32, #tpu.memory_space<vmem>>, vector<8x8xf32>,
    %266 = vector.extract_strided_slice %218 {offsets = [0, 88], sizes = [8, 8], strides = [1, 1]} : vector<16x96xf32> to vector<8x8xf32>
    %267 = vector.extract_strided_slice %253 {offsets = [24, 0], sizes = [8, 8], strides = [1, 1]} : vector<64x8xf32> to vector<8x8xf32>
    %cst_103 = arith.constant dense<0.000000e+00> : vector<8x8xf32>
    %268 = tpu.matmul %267, %266, %cst_103 {dimension_numbers = #tpu.dot_dimension_numbers<[1], [0], [0], [1], [0, 0, 1, 1], [], []>} : vector<8x8xf32>, vector<8x8xf32>, vector<8x8xf32> -> vector<8x8xf32>
    %c0_104 = arith.constant 0 : index
    %c24_105 = arith.constant 24 : index
    %269 = vector.load %arg7[%c0_104, %c24_105] : memref<16x32xf32, #tpu.memory_space<vmem>>, vector<8x8xf32>
    tpu.vector_store %arg7[%c0_104, %c24_105], %268 {strides = array<i32>} : memref<16x32xf32, #tpu.memory_space<vmem>>, vector<8x8xf32>,
    %270 = vector.extract_strided_slice %218 {offsets = [8, 64], sizes = [8, 8], strides = [1, 1]} : vector<16x96xf32> to vector<8x8xf32>
    %271 = vector.extract_strided_slice %253 {offsets = [32, 0], sizes = [8, 8], strides = [1, 1]} : vector<64x8xf32> to vector<8x8xf32>
    %cst_106 = arith.constant dense<0.000000e+00> : vector<8x8xf32>
    %272 = tpu.matmul %271, %270, %cst_106 {dimension_numbers = #tpu.dot_dimension_numbers<[1], [0], [0], [1], [0, 0, 1, 1], [], []>} : vector<8x8xf32>, vector<8x8xf32>, vector<8x8xf32> -> vector<8x8xf32>
    %c8_107 = arith.constant 8 : index
    %c0_108 = arith.constant 0 : index
    %273 = vector.load %arg7[%c8_107, %c0_108] : memref<16x32xf32, #tpu.memory_space<vmem>>, vector<8x8xf32>
    tpu.vector_store %arg7[%c8_107, %c0_108], %272 {strides = array<i32>} : memref<16x32xf32, #tpu.memory_space<vmem>>, vector<8x8xf32>,
    %274 = vector.extract_strided_slice %218 {offsets = [8, 72], sizes = [8, 8], strides = [1, 1]} : vector<16x96xf32> to vector<8x8xf32>
    %275 = vector.extract_strided_slice %253 {offsets = [40, 0], sizes = [8, 8], strides = [1, 1]} : vector<64x8xf32> to vector<8x8xf32>
    %cst_109 = arith.constant dense<0.000000e+00> : vector<8x8xf32>
    %276 = tpu.matmul %275, %274, %cst_109 {dimension_numbers = #tpu.dot_dimension_numbers<[1], [0], [0], [1], [0, 0, 1, 1], [], []>} : vector<8x8xf32>, vector<8x8xf32>, vector<8x8xf32> -> vector<8x8xf32>
    %c8_110 = arith.constant 8 : index
    %c8_111 = arith.constant 8 : index
    %277 = vector.load %arg7[%c8_110, %c8_111] : memref<16x32xf32, #tpu.memory_space<vmem>>, vector<8x8xf32>
    tpu.vector_store %arg7[%c8_110, %c8_111], %276 {strides = array<i32>} : memref<16x32xf32, #tpu.memory_space<vmem>>, vector<8x8xf32>,
    %278 = vector.extract_strided_slice %218 {offsets = [8, 80], sizes = [8, 8], strides = [1, 1]} : vector<16x96xf32> to vector<8x8xf32>
    %279 = vector.extract_strided_slice %253 {offsets = [48, 0], sizes = [8, 8], strides = [1, 1]} : vector<64x8xf32> to vector<8x8xf32>
    %cst_112 = arith.constant dense<0.000000e+00> : vector<8x8xf32>
    %280 = tpu.matmul %279, %278, %cst_112 {dimension_numbers = #tpu.dot_dimension_numbers<[1], [0], [0], [1], [0, 0, 1, 1], [], []>} : vector<8x8xf32>, vector<8x8xf32>, vector<8x8xf32> -> vector<8x8xf32>
    %c8_113 = arith.constant 8 : index
    %c16_114 = arith.constant 16 : index
    %281 = vector.load %arg7[%c8_113, %c16_114] : memref<16x32xf32, #tpu.memory_space<vmem>>, vector<8x8xf32>
    tpu.vector_store %arg7[%c8_113, %c16_114], %280 {strides = array<i32>} : memref<16x32xf32, #tpu.memory_space<vmem>>, vector<8x8xf32>,
    %282 = vector.extract_strided_slice %218 {offsets = [8, 88], sizes = [8, 8], strides = [1, 1]} : vector<16x96xf32> to vector<8x8xf32>
    %283 = vector.extract_strided_slice %253 {offsets = [56, 0], sizes = [8, 8], strides = [1, 1]} : vector<64x8xf32> to vector<8x8xf32>
    %cst_115 = arith.constant dense<0.000000e+00> : vector<8x8xf32>
    %284 = tpu.matmul %283, %282, %cst_115 {dimension_numbers = #tpu.dot_dimension_numbers<[1], [0], [0], [1], [0, 0, 1, 1], [], []>} : vector<8x8xf32>, vector<8x8xf32>, vector<8x8xf32> -> vector<8x8xf32>
    %c8_116 = arith.constant 8 : index
    %c24_117 = arith.constant 24 : index
    %285 = vector.load %arg7[%c8_116, %c24_117] : memref<16x32xf32, #tpu.memory_space<vmem>>, vector<8x8xf32>
    tpu.vector_store %arg7[%c8_116, %c24_117], %284 {strides = array<i32>} : memref<16x32xf32, #tpu.memory_space<vmem>>, vector<8x8xf32>,
    %c0_118 = arith.constant 0 : index
    %c0_119 = arith.constant 0 : index
    %286 = vector.load %arg7[%c0_118, %c0_119] : memref<16x32xf32, #tpu.memory_space<vmem>>, vector<16x32xf32>
    %287 = vector.extract_strided_slice %211 {offsets = [0, 96], sizes = [32, 32], strides = [1, 1]} : vector<32x256xf32> to vector<32x32xf32>
    %cst_120 = arith.constant dense<0.000000e+00> : vector<16x32xf32>
    %288 = tpu.matmul %286, %287, %cst_120 {dimension_numbers = #tpu.dot_dimension_numbers<[1], [0], [0], [1], [0, 0, 1, 1], [], []>} : vector<16x32xf32>, vector<32x32xf32>, vector<16x32xf32> -> vector<16x32xf32>
    %289 = vector.extract_strided_slice %213 {offsets = [1, 0], sizes = [1, 32], strides = [1, 1]} : vector<8x96xf32> to vector<1x32xf32>
    %290 = vector.broadcast %289 : vector<1x32xf32> to vector<16x32xf32>
    %291 = arith.addf %288, %290 : vector<16x32xf32>
    %292 = arith.addf %291, %209 : vector<16x32xf32>
    %293 = vector.extract_strided_slice %213 {offsets = [2, 0], sizes = [1, 32], strides = [1, 1]} : vector<8x96xf32> to vector<1x32xf32>
    %294 = vector.extract_strided_slice %213 {offsets = [3, 0], sizes = [1, 32], strides = [1, 1]} : vector<8x96xf32> to vector<1x32xf32>
    %cst_121 = arith.constant dense<0.000000e+00> : vector<16xf32>
    %295 = vector.multi_reduction <add>, %292, %cst_121 [1] : vector<16x32xf32> to vector<16xf32>
    %296 = vector.shape_cast %295 : vector<16xf32> to vector<16x1xf32>
    %cst_122 = arith.constant 3.200000e+01 : f32
    %297 = vector.broadcast %cst_122 : f32 to vector<16x1xf32>
    %298 = arith.divf %296, %297 : vector<16x1xf32>
    %299 = vector.broadcast %298 : vector<16x1xf32> to vector<16x32xf32>
    %300 = arith.subf %292, %299 : vector<16x32xf32>
    %301 = arith.mulf %300, %300 : vector<16x32xf32>
    %cst_123 = arith.constant dense<0.000000e+00> : vector<16xf32>
    %302 = vector.multi_reduction <add>, %301, %cst_123 [1] : vector<16x32xf32> to vector<16xf32>
    %303 = vector.shape_cast %302 : vector<16xf32> to vector<16x1xf32>
    %cst_124 = arith.constant 3.200000e+01 : f32
    %304 = vector.broadcast %cst_124 : f32 to vector<16x1xf32>
    %305 = arith.divf %303, %304 : vector<16x1xf32>
    %306 = vector.broadcast %298 : vector<16x1xf32> to vector<16x32xf32>
    %307 = arith.subf %292, %306 : vector<16x32xf32>
    %cst_125 = arith.constant 9.99999974E-6 : f32
    %308 = vector.broadcast %cst_125 : f32 to vector<16x1xf32>
    %309 = arith.addf %305, %308 : vector<16x1xf32>
    %310 = math.rsqrt %309 : vector<16x1xf32>
    %311 = vector.broadcast %310 : vector<16x1xf32> to vector<16x32xf32>
    %312 = arith.mulf %307, %311 : vector<16x32xf32>
    %313 = vector.broadcast %293 : vector<1x32xf32> to vector<16x32xf32>
    %314 = arith.mulf %312, %313 : vector<16x32xf32>
    %315 = vector.broadcast %294 : vector<1x32xf32> to vector<16x32xf32>
    %316 = arith.addf %314, %315 : vector<16x32xf32>
    %317 = vector.extract_strided_slice %211 {offsets = [0, 128], sizes = [32, 64], strides = [1, 1]} : vector<32x256xf32> to vector<32x64xf32>
    %cst_126 = arith.constant dense<0.000000e+00> : vector<16x64xf32>
    %318 = tpu.matmul %316, %317, %cst_126 {dimension_numbers = #tpu.dot_dimension_numbers<[1], [0], [0], [1], [0, 0, 1, 1], [], []>} : vector<16x32xf32>, vector<32x64xf32>, vector<16x64xf32> -> vector<16x64xf32>
    %319 = vector.extract_strided_slice %213 {offsets = [4, 0], sizes = [1, 64], strides = [1, 1]} : vector<8x96xf32> to vector<1x64xf32>
    %320 = vector.broadcast %319 : vector<1x64xf32> to vector<16x64xf32>
    %321 = arith.addf %318, %320 : vector<16x64xf32>
    %cst_127 = arith.constant 5.000000e-01 : f32
    %322 = vector.broadcast %cst_127 : f32 to vector<16x64xf32>
    %323 = arith.mulf %322, %321 : vector<16x64xf32>
    %cst_128 = arith.constant 0.707106769 : f32
    %324 = vector.broadcast %cst_128 : f32 to vector<16x64xf32>
    %325 = arith.mulf %321, %324 : vector<16x64xf32>
    %cst_129 = arith.constant 0.000000e+00 : f32
    %326 = vector.broadcast %cst_129 : f32 to vector<16x64xf32>
    %327 = arith.cmpf olt, %325, %326 : vector<16x64xf32>
    %cst_130 = arith.constant -1.000000e+00 : f32
    %cst_131 = arith.constant 1.000000e+00 : f32
    %328 = vector.broadcast %cst_130 : f32 to vector<16x64xf32>
    %329 = vector.broadcast %cst_131 : f32 to vector<16x64xf32>
    %330 = arith.select %327, %328, %329 : vector<16x64xi1>, vector<16x64xf32>
    %331 = math.absf %325 : vector<16x64xf32>
    %cst_132 = arith.constant 0.327591091 : f32
    %332 = vector.broadcast %cst_132 : f32 to vector<16x64xf32>
    %333 = arith.mulf %332, %331 : vector<16x64xf32>
    %cst_133 = arith.constant 1.000000e+00 : f32
    %334 = vector.broadcast %cst_133 : f32 to vector<16x64xf32>
    %335 = arith.addf %334, %333 : vector<16x64xf32>
    %cst_134 = arith.constant 1.000000e+00 : f32
    %336 = vector.broadcast %cst_134 : f32 to vector<16x64xf32>
    %337 = arith.divf %336, %335 : vector<16x64xf32>
    %cst_135 = arith.constant 1.06140542 : f32
    %338 = vector.broadcast %cst_135 : f32 to vector<16x64xf32>
    %339 = arith.mulf %338, %337 : vector<16x64xf32>
    %cst_136 = arith.constant -1.45315206 : f32
    %340 = vector.broadcast %cst_136 : f32 to vector<16x64xf32>
    %341 = arith.addf %339, %340 : vector<16x64xf32>
    %342 = arith.mulf %341, %337 : vector<16x64xf32>
    %cst_137 = arith.constant 1.42141378 : f32
    %343 = vector.broadcast %cst_137 : f32 to vector<16x64xf32>
    %344 = arith.addf %342, %343 : vector<16x64xf32>
    %345 = arith.mulf %344, %337 : vector<16x64xf32>
    %cst_138 = arith.constant -0.284496725 : f32
    %346 = vector.broadcast %cst_138 : f32 to vector<16x64xf32>
    %347 = arith.addf %345, %346 : vector<16x64xf32>
    %348 = arith.mulf %347, %337 : vector<16x64xf32>
    %cst_139 = arith.constant 0.254829586 : f32
    %349 = vector.broadcast %cst_139 : f32 to vector<16x64xf32>
    %350 = arith.addf %348, %349 : vector<16x64xf32>
    %351 = arith.mulf %350, %337 : vector<16x64xf32>
    %cst_140 = arith.constant 0.000000e+00 : f32
    %352 = vector.broadcast %cst_140 : f32 to vector<16x64xf32>
    %353 = arith.subf %352, %331 : vector<16x64xf32>
    %354 = arith.mulf %353, %331 : vector<16x64xf32>
    %355 = math.exp %354 : vector<16x64xf32>
    %356 = arith.mulf %351, %355 : vector<16x64xf32>
    %cst_141 = arith.constant 1.000000e+00 : f32
    %357 = vector.broadcast %cst_141 : f32 to vector<16x64xf32>
    %358 = arith.subf %357, %356 : vector<16x64xf32>
    %359 = arith.mulf %330, %358 : vector<16x64xf32>
    %cst_142 = arith.constant 1.000000e+00 : f32
    %360 = vector.broadcast %cst_142 : f32 to vector<16x64xf32>
    %361 = arith.addf %360, %359 : vector<16x64xf32>
    %362 = arith.mulf %323, %361 : vector<16x64xf32>
    %363 = vector.extract_strided_slice %211 {offsets = [0, 192], sizes = [32, 64], strides = [1, 1]} : vector<32x256xf32> to vector<32x64xf32>
    %cst_143 = arith.constant dense<0.000000e+00> : vector<16x32xf32>
    %364 = tpu.matmul %362, %363, %cst_143 {dimension_numbers = #tpu.dot_dimension_numbers<[1], [1], [0], [0], [0, 0, 1, 0], [], []>} : vector<16x64xf32>, vector<32x64xf32>, vector<16x32xf32> -> vector<16x32xf32>
    %365 = vector.extract_strided_slice %213 {offsets = [5, 0], sizes = [1, 32], strides = [1, 1]} : vector<8x96xf32> to vector<1x32xf32>
    %366 = vector.broadcast %365 : vector<1x32xf32> to vector<16x32xf32>
    %367 = arith.addf %364, %366 : vector<16x32xf32>
    %368 = arith.addf %367, %316 : vector<16x32xf32>
    %369 = vector.extract_strided_slice %213 {offsets = [6, 0], sizes = [1, 32], strides = [1, 1]} : vector<8x96xf32> to vector<1x32xf32>
    %370 = vector.extract_strided_slice %213 {offsets = [7, 0], sizes = [1, 32], strides = [1, 1]} : vector<8x96xf32> to vector<1x32xf32>
    %cst_144 = arith.constant dense<0.000000e+00> : vector<16xf32>
    %371 = vector.multi_reduction <add>, %368, %cst_144 [1] : vector<16x32xf32> to vector<16xf32>
    %372 = vector.shape_cast %371 : vector<16xf32> to vector<16x1xf32>
    %cst_145 = arith.constant 3.200000e+01 : f32
    %373 = vector.broadcast %cst_145 : f32 to vector<16x1xf32>
    %374 = arith.divf %372, %373 : vector<16x1xf32>
    %375 = vector.broadcast %374 : vector<16x1xf32> to vector<16x32xf32>
    %376 = arith.subf %368, %375 : vector<16x32xf32>
    %377 = arith.mulf %376, %376 : vector<16x32xf32>
    %cst_146 = arith.constant dense<0.000000e+00> : vector<16xf32>
    %378 = vector.multi_reduction <add>, %377, %cst_146 [1] : vector<16x32xf32> to vector<16xf32>
    %379 = vector.shape_cast %378 : vector<16xf32> to vector<16x1xf32>
    %cst_147 = arith.constant 3.200000e+01 : f32
    %380 = vector.broadcast %cst_147 : f32 to vector<16x1xf32>
    %381 = arith.divf %379, %380 : vector<16x1xf32>
    %382 = vector.broadcast %374 : vector<16x1xf32> to vector<16x32xf32>
    %383 = arith.subf %368, %382 : vector<16x32xf32>
    %cst_148 = arith.constant 9.99999974E-6 : f32
    %384 = vector.broadcast %cst_148 : f32 to vector<16x1xf32>
    %385 = arith.addf %381, %384 : vector<16x1xf32>
    %386 = math.rsqrt %385 : vector<16x1xf32>
    %387 = vector.broadcast %386 : vector<16x1xf32> to vector<16x32xf32>
    %388 = arith.mulf %383, %387 : vector<16x32xf32>
    %389 = vector.broadcast %369 : vector<1x32xf32> to vector<16x32xf32>
    %390 = arith.mulf %388, %389 : vector<16x32xf32>
    %391 = vector.broadcast %370 : vector<1x32xf32> to vector<16x32xf32>
    %392 = arith.addf %390, %391 : vector<16x32xf32>
    %c0_149 = arith.constant 0 : index
    %c0_150 = arith.constant 0 : index
    %393 = vector.load %arg4[%c0_149, %c0_150] : memref<32x160xf32, #tpu.memory_space<vmem>>, vector<32x160xf32>
    %394 = vector.extract_strided_slice %392 {offsets = [0, 0], sizes = [1, 32], strides = [1, 1]} : vector<16x32xf32> to vector<1x32xf32>
    %395 = vector.extract_strided_slice %392 {offsets = [8, 0], sizes = [1, 32], strides = [1, 1]} : vector<16x32xf32> to vector<1x32xf32>
    %396 = tpu.concatenate %394, %395 in 0 : vector<1x32xf32>, vector<1x32xf32> -> vector<2x32xf32>
    %397 = vector.extract_strided_slice %393 {offsets = [0, 0], sizes = [32, 32], strides = [1, 1]} : vector<32x160xf32> to vector<32x32xf32>
    %cst_151 = arith.constant dense<0.000000e+00> : vector<2x32xf32>
    %398 = tpu.matmul %396, %397, %cst_151 {dimension_numbers = #tpu.dot_dimension_numbers<[1], [0], [0], [1], [0, 0, 1, 1], [], []>} : vector<2x32xf32>, vector<32x32xf32>, vector<2x32xf32> -> vector<2x32xf32>
    %399 = vector.extract_strided_slice %0 {offsets = [2, 0], sizes = [1, 32], strides = [1, 1]} : vector<8x128xf32> to vector<1x32xf32>
    %400 = vector.broadcast %399 : vector<1x32xf32> to vector<2x32xf32>
    %401 = arith.addf %398, %400 : vector<2x32xf32>
    %402 = math.tanh %401 : vector<2x32xf32>
    %403 = vector.extract_strided_slice %393 {offsets = [0, 32], sizes = [32, 128], strides = [1, 1]} : vector<32x160xf32> to vector<32x128xf32>
    %cst_152 = arith.constant dense<0.000000e+00> : vector<2x128xf32>
    %404 = tpu.matmul %402, %403, %cst_152 {dimension_numbers = #tpu.dot_dimension_numbers<[1], [0], [0], [1], [0, 0, 1, 1], [], []>} : vector<2x32xf32>, vector<32x128xf32>, vector<2x128xf32> -> vector<2x128xf32>
    %405 = vector.extract_strided_slice %0 {offsets = [3, 0], sizes = [1, 128], strides = [1, 1]} : vector<8x128xf32> to vector<1x128xf32>
    %406 = vector.broadcast %405 : vector<1x128xf32> to vector<2x128xf32>
    %407 = arith.addf %404, %406 : vector<2x128xf32>
    %408 = arith.negf %407 : vector<2x128xf32>
    %409 = math.exp %408 : vector<2x128xf32>
    %cst_153 = arith.constant 1.000000e+00 : f32
    %410 = vector.broadcast %cst_153 : f32 to vector<2x128xf32>
    %411 = arith.addf %410, %409 : vector<2x128xf32>
    %412 = arith.divf %410, %411 : vector<2x128xf32>
    %c0_154 = arith.constant 0 : index
    %c0_155 = arith.constant 0 : index
    %413 = vector.load %arg6[%c0_154, %c0_155] : memref<2x128xf32, #tpu.memory_space<vmem>>, vector<2x128xf32>
    tpu.vector_store %arg6[%c0_154, %c0_155], %412 {strides = array<i32>} : memref<2x128xf32, #tpu.memory_space<vmem>>, vector<2x128xf32>,
    return
  }
}

</mosaic_0001>

<llo_original>
// kernel: herbert_forward.1
$region0: #{herbert_forward.1}
  #allocation0 [shape = 'u32[]', space=smem, size = 0x4, offset = 0x4, fixed_abs, tag = 'smem constant byte address 0x4 - core index']
  #allocation1 [shape = 'u32[144,128]{1,0:T(1,128)}', space=vmem, size = 0x12000, scoped, tag = 'internal scratch']
  #allocation2 [shape = 'f32[16,32]{1,0:T(8,128)}', space=vmem, size = 0x2000, scoped, tag = 'scratch operand']
  %s0 = inlined_call_operand.vmem [shape: f32[16,32], index: 0, kind: input, shape index: {}]
  %s1 = inlined_call_operand.vmem [shape: f32[64,8], index: 1, kind: input, shape index: {}]
  %s2 = inlined_call_operand.vmem [shape: f32[2,32,256], index: 2, kind: input, shape index: {}]
  %s3 = inlined_call_operand.vmem [shape: f32[2,8,96], index: 3, kind: input, shape index: {}]
  %s4 = inlined_call_operand.vmem [shape: f32[32,160], index: 4, kind: input, shape index: {}]
  %s5 = inlined_call_operand.vmem [shape: f32[8,128], index: 5, kind: input, shape index: {}]
  %s6 = inlined_call_operand.hbm [shape: f32[2,128], index: 6, kind: output, shape index: {}]
  %s7 = sld [smem:[#allocation0]]
  $region34: #{herbert_forward.1} parent=0
    _
  %s9 = ssub.s32 1, %s7
  %s10 = scalar_select 0, %s9, %s7
  $region1: #{herbert_forward.1} parent=0
    #allocation3 [shape = 'u8[1024]{0}', space=vmem, size = 0x400, scoped, tag = 'output window, operand 0, single buffered']
    #allocation4 [shape = 's32[1]{0}', space=sflag, size = 0x4, scoped, tag = 'scoped memory for herbert_forward.1']
    %11 = vsyncpa [#allocation4], 0
    // Predicated region
    $region2: #{herbert_forward.1} parent=1 // pred_check
      _
    $region3: #{herbert_forward.1} parent=1 // pred_check_branch
      %13 = sbr.rel (0) target = $region5
    $region4: #{herbert_forward.1} parent=1 // pred_region
      _
    $region5: #{herbert_forward.1} parent=1 // pred_fallthru
      _
    // Predicated region
    $region6: #{herbert_forward.1} parent=1 // pred_check
      _
    $region7: #{herbert_forward.1} parent=1 // pred_check_branch
      %15 = sbr.rel (0) target = $region9
    $region8: #{herbert_forward.1} parent=1 // pred_region
      _
    $region9: #{herbert_forward.1} parent=1 // pred_fallthru
      _
    // Predicated region
    $region10: #{herbert_forward.1} parent=1 // pred_check
      _
    $region11: #{herbert_forward.1} parent=1 // pred_check_branch
      %17 = sbr.rel (0) target = $region13
    $region12: #{herbert_forward.1} parent=1 // pred_region
      _
    $region13: #{herbert_forward.1} parent=1 // pred_fallthru
      _
    // Predicated region
    $region14: #{herbert_forward.1} parent=1 // pred_check
      _
    $region15: #{herbert_forward.1} parent=1 // pred_check_branch
      %19 = sbr.rel (0) target = $region17
    $region16: #{herbert_forward.1} parent=1 // pred_region
      _
    $region17: #{herbert_forward.1} parent=1 // pred_fallthru
      _
    // Predicated region
    $region18: #{herbert_forward.1} parent=1 // pred_check
      _
    $region19: #{herbert_forward.1} parent=1 // pred_check_branch
      %21 = sbr.rel (0) target = $region21
    $region20: #{herbert_forward.1} parent=1 // pred_region
      _
    $region21: #{herbert_forward.1} parent=1 // pred_fallthru
      _
    // Predicated region
    $region22: #{herbert_forward.1} parent=1 // pred_check
      _
    $region23: #{herbert_forward.1} parent=1 // pred_check_branch
      %23 = sbr.rel (0) target = $region25
    $region24: #{herbert_forward.1} parent=1 // pred_region
      _
    $region25: #{herbert_forward.1} parent=1 // pred_fallthru
      _
    %v24 = vld [vmem:[%s5] sm:$0xff]
    %v25 = vld [vmem:[%s1] sm:$0xff]
    %v26 = vld [vmem:[%s1 + $0x8] sm:$0xff]
    %v27 = vld [vmem:[%s1 + $0x10] sm:$0xff]
    %v28 = vld [vmem:[%s1 + $0x18] sm:$0xff]
    %v29 = vld [vmem:[%s1 + $0x20] sm:$0xff]
    %v30 = vld [vmem:[%s1 + $0x28] sm:$0xff]
    %v31 = vld [vmem:[%s1 + $0x30] sm:$0xff]
    %v32 = vld [vmem:[%s1 + $0x38] sm:$0xff]
    %v33 = vld [vmem:[%s0] sm:$0xff]
    %v34 = vld [vmem:[%s0 + $0x8] sm:$0xff]
    %vm35 = vcmask 261120
    %v36 = vsel %vm35, %v33, 0.0
    %37 = vadd.xlane.f32.xlu0 %v36
    %v38 = vpop.xlane.xlu0 %37
    %v39 = vsel %vm35, %v34, 0.0
    %40 = vadd.xlane.f32.xlu0 %v39
    %v41 = vpop.xlane.xlu0 %40
    %v42 = vrcp.pop 32.0
    %v43 = vmul.f32 %v38, %v42
    %v44 = vmul.f32 %v41, %v42
    %v45 = vsub.f32 %v33, %v43
    %v46 = vsub.f32 %v34, %v44
    %v47 = vmul.f32 %v45, %v45
    %v48 = vmul.f32 %v46, %v46
    %v49 = vsel %vm35, %v47, 0.0
    %50 = vadd.xlane.f32.xlu0 %v49
    %v51 = vpop.xlane.xlu0 %50
    %v52 = vsel %vm35, %v48, 0.0
    %53 = vadd.xlane.f32.xlu0 %v52
    %v54 = vpop.xlane.xlu0 %53
    %v55 = vmul.f32 %v51, %v42
    %v56 = vmul.f32 %v54, %v42
    %v57 = vadd.f32 %v55, 1e-05
    %v58 = vadd.f32 %v56, 1e-05
    %v59 = vrsqrt.pop %v57
    %v60 = vrsqrt.pop %v58
    %v61 = vmul.f32 %v45, %v59
    %v62 = vmul.f32 %v46, %v60
    %v63 = vlaneseq
    %v64 = vshrl.u32 %v63, 7
    %v65 = vsub.s32 0, %v64
    %v66 = vrot.slane %v24, %v65
    %v67 = vmul.f32 %v61, %v66
    %v68 = vmul.f32 %v62, %v66
    %v69 = vlaneseq
    %v70 = vshrl.u32 %v69, 7
    %v71 = vsub.s32 1, %v70
    %v72 = vrot.slane %v24, %v71
    %v73 = vadd.f32 %v67, %v72
    %v74 = vadd.f32 %v68, %v72
    %v75 = vld [vmem:[%s2] sm:$0xff]
    %v76 = vld [vmem:[%s2 + $0x8] sm:$0xff]
    %v77 = vld [vmem:[%s2 + $0x10] sm:$0xff]
    %v78 = vld [vmem:[%s2 + $0x18] sm:$0xff]
    %v79 = vld [vmem:[%s2 + $0x20] sm:$0xff]
    %v80 = vld [vmem:[%s2 + $0x28] sm:$0xff]
    %v81 = vld [vmem:[%s2 + $0x30] sm:$0xff]
    %v82 = vld [vmem:[%s2 + $0x38] sm:$0xff]
    %v83 = vld [vmem:[%s3] sm:$0xff]
    %v84 = vlaneseq
    %v85 = vshrl.u32 %v84, 7
    %v86 = vsub.s32 0, %v85
    %v87 = vrot.slane %v83, %v86
    %v89 = vsel %vm35, %v73, 0
    %v92 = vsel %vm35, %v74, 0
    %94 = vmatprep.subr.mxu0 0.0
    %95 = vmatpush1.msra.mxu0 %v75
    %96 = vmatprep.subr.mxu0 0.0
    %97 = vmatpush1.msra.mxu0 %v77
    %98 = vmatprep.subr.mxu0 0.0
    %99 = vmatpush1.msra.mxu0 %v79
    %100 = vmatprep.subr.mxu0 0.0
    %101 = vmatpush1.msra.mxu0 %v81
    %102 = vmatprep.subr.mxu0 0.0
    %103 = vmatpush1.msra.mxu0 0.0
    %104 = vmatprep.subr.mxu0 0.0
    %105 = vmatpush1.msra.mxu0 0.0
    %106 = vmatprep.subr.mxu0 0.0
    %107 = vmatpush1.msra.mxu0 0.0
    %108 = vmatprep.subr.mxu0 0.0
    %109 = vmatpush1.msra.mxu0 0.0
    %110 = vmatprep.subr.mxu0 0.0
    %111 = vmatpush1.msra.mxu0 0.0
    %112 = vmatprep.subr.mxu0 0.0
    %113 = vmatpush1.msra.mxu0 0.0
    %114 = vmatprep.subr.mxu0 0.0
    %115 = vmatpush1.msra.mxu0 0.0
    %116 = vmatprep.subr.mxu0 0.0
    %117 = vmatpush1.msra.mxu0 0.0
    %118 = vmatprep.subr.mxu0 0.0
    %119 = vmatpush1.msra.mxu0 0.0
    %120 = vmatprep.subr.mxu0 0.0
    %121 = vmatpush1.msra.mxu0 0.0
    %122 = vmatprep.subr.mxu0 0.0
    %123 = vmatpush1.msra.mxu0 0.0
    %124 = vmatprep.subr.mxu0 0.0
    %125 = vmatpush1.msra.mxu0 0.0
    %126 = vmatprep.subr.mxu0 0.0
    %127 = vmatpush1.msra.mxu0 0.0
    %128 = vmatprep.subr.mxu0 0.0
    %129 = vmatpush1.msra.mxu0 0.0
    %130 = vmatprep.subr.mxu0 0.0
    %131 = vmatpush1.msra.mxu0 0.0
    %132 = vmatprep.subr.mxu0 0.0
    %133 = vmatpush1.msra.mxu0 0.0
    %134 = vmatprep.subr.mxu0 0.0
    %135 = vmatpush1.msra.mxu0 0.0
    %136 = vmatprep.subr.mxu0 0.0
    %137 = vmatpush1.msra.mxu0 0.0
    %138 = vmatprep.subr.mxu0 0.0
    %139 = vmatpush1.msra.mxu0 0.0
    %140 = vmatprep.subr.mxu0 0.0
    %141 = vmatpush1.msra.mxu0 0.0
    %142 = vmatprep.subr.mxu0 0.0
    %143 = vmatpush1.msra.mxu0 0.0
    %144 = vmatprep.subr.mxu0 0.0
    %145 = vmatpush1.msra.mxu0 0.0
    %146 = vmatprep.subr.mxu0 0.0
    %147 = vmatpush1.msra.mxu0 0.0
    %148 = vmatprep.subr.mxu0 0.0
    %149 = vmatpush1.msra.mxu0 0.0
    %150 = vmatprep.subr.mxu0 0.0
    %151 = vmatpush1.msra.mxu0 0.0
    %152 = vmatprep.subr.mxu0 0.0
    %153 = vmatpush1.msra.mxu0 0.0
    %154 = vmatprep.subr.mxu0 0.0
    %155 = vmatpush1.msra.mxu0 0.0
    %156 = vmatprep.subr.mxu0 0.0
    %157 = vmatpush1.msra.mxu0 0.0
    %158 = vmatprep.mubr.f32.mxu0 0.0
    %159 = vmatmul.mubr.f32.gmra.mrb[0].mxu0 %v89
    %v160 = vpop.f32.mrb[0].mxu0
    %v161 = vadd.f32 %v87, %v160
    %v162 = vpop.f32.mrb[0].mxu0
    %163 = vmatprep.mubr.f32.mxu0 0.0
    %164 = vmatmul.mubr.f32.gmra.mrb[0].mxu0 %v92
    %v165 = vpop.f32.mrb[0].mxu0
    %v166 = vadd.f32 %v87, %v165
    %v167 = vpop.f32.mrb[0].mxu0
    %168 = vdwg.mxu0
    %170 = vrot.lane.b32.xlu0 %v161, 96
    %v171 = vpop.permute.xlu0 %170
    %vm172 = vcmask 64512
    %v173 = vsel %vm172, %v161, 0
    %v175 = vsel %vm172, %v171, 0
    %177 = vmatprep.subr.mxu0 0.0
    %178 = vmatpush1.xpose.msra.mxu0 %v175
    %179 = vmatprep.subr.mxu0 0.0
    %180 = vmatpush1.xpose.msra.mxu0 0.0
    %181 = vmatprep.subr.mxu0 0.0
    %182 = vmatpush1.xpose.msra.mxu0 0.0
    %183 = vmatprep.subr.mxu0 0.0
    %184 = vmatpush1.xpose.msra.mxu0 0.0
    %185 = vmatprep.subr.mxu0 0.0
    %186 = vmatpush1.xpose.msra.mxu0 0.0
    %187 = vmatprep.subr.mxu0 0.0
    %188 = vmatpush1.xpose.msra.mxu0 0.0
    %189 = vmatprep.subr.mxu0 0.0
    %190 = vmatpush1.xpose.msra.mxu0 0.0
    %191 = vmatprep.subr.mxu0 0.0
    %192 = vmatpush1.xpose.msra.mxu0 0.0
    %193 = vmatprep.subr.mxu0 0.0
    %194 = vmatpush1.xpose.msra.mxu0 0.0
    %195 = vmatprep.subr.mxu0 0.0
    %196 = vmatpush1.xpose.msra.mxu0 0.0
    %197 = vmatprep.subr.mxu0 0.0
    %198 = vmatpush1.xpose.msra.mxu0 0.0
    %199 = vmatprep.subr.mxu0 0.0
    %200 = vmatpush1.xpose.msra.mxu0 0.0
    %201 = vmatprep.subr.mxu0 0.0
    %202 = vmatpush1.xpose.msra.mxu0 0.0
    %203 = vmatprep.subr.mxu0 0.0
    %204 = vmatpush1.xpose.msra.mxu0 0.0
    %205 = vmatprep.subr.mxu0 0.0
    %206 = vmatpush1.xpose.msra.mxu0 0.0
    %207 = vmatprep.subr.mxu0 0.0
    %208 = vmatpush1.xpose.msra.mxu0 0.0
    %209 = vmatprep.subr.mxu0 0.0
    %210 = vmatpush1.xpose.msra.mxu0 0.0
    %211 = vmatprep.subr.mxu0 0.0
    %212 = vmatpush1.xpose.msra.mxu0 0.0
    %213 = vmatprep.subr.mxu0 0.0
    %214 = vmatpush1.xpose.msra.mxu0 0.0
    %215 = vmatprep.subr.mxu0 0.0
    %216 = vmatpush1.xpose.msra.mxu0 0.0
    %217 = vmatprep.subr.mxu0 0.0
    %218 = vmatpush1.xpose.msra.mxu0 0.0
    %219 = vmatprep.subr.mxu0 0.0
    %220 = vmatpush1.xpose.msra.mxu0 0.0
    %221 = vmatprep.subr.mxu0 0.0
    %222 = vmatpush1.xpose.msra.mxu0 0.0
    %223 = vmatprep.subr.mxu0 0.0
    %224 = vmatpush1.xpose.msra.mxu0 0.0
    %225 = vmatprep.subr.mxu0 0.0
    %226 = vmatpush1.xpose.msra.mxu0 0.0
    %227 = vmatprep.subr.mxu0 0.0
    %228 = vmatpush1.xpose.msra.mxu0 0.0
    %229 = vmatprep.subr.mxu0 0.0
    %230 = vmatpush1.xpose.msra.mxu0 0.0
    %231 = vmatprep.subr.mxu0 0.0
    %232 = vmatpush1.xpose.msra.mxu0 0.0
    %233 = vmatprep.subr.mxu0 0.0
    %234 = vmatpush1.xpose.msra.mxu0 0.0
    %235 = vmatprep.subr.mxu0 0.0
    %236 = vmatpush1.xpose.msra.mxu0 0.0
    %237 = vmatprep.subr.mxu0 0.0
    %238 = vmatpush1.xpose.msra.mxu0 0.0
    %239 = vmatprep.subr.mxu0 0.0
    %240 = vmatpush1.xpose.msra.mxu0 0.0
    %241 = vmatprep.mubr.f32.mxu0 0.0
    %242 = vmatmul.mubr.f32.gmra.mrb[0].mxu0 %v173
    %v243 = vpop.f32.mrb[0].mxu0
    %v244 = vadd.f32 0.0, %v243
    %v245 = vpop.f32.mrb[0].mxu0
    %246 = vdwg.mxu0
    %247 = vrot.lane.b32.xlu0 %v161, 120
    %v248 = vpop.permute.xlu0 %247
    %249 = vrot.lane.b32.xlu0 %v161, 88
    %v250 = vpop.permute.xlu0 %249
    %v251 = vsel %vm172, %v248, 0
    %v253 = vsel %vm172, %v250, 0
    %255 = vmatprep.subr.mxu0 0.0
    %256 = vmatpush1.xpose.msra.mxu0 %v253
    %257 = vmatprep.subr.mxu0 0.0
    %258 = vmatpush1.xpose.msra.mxu0 0.0
    %259 = vmatprep.subr.mxu0 0.0
    %260 = vmatpush1.xpose.msra.mxu0 0.0
    %261 = vmatprep.subr.mxu0 0.0
    %262 = vmatpush1.xpose.msra.mxu0 0.0
    %263 = vmatprep.subr.mxu0 0.0
    %264 = vmatpush1.xpose.msra.mxu0 0.0
    %265 = vmatprep.subr.mxu0 0.0
    %266 = vmatpush1.xpose.msra.mxu0 0.0
    %267 = vmatprep.subr.mxu0 0.0
    %268 = vmatpush1.xpose.msra.mxu0 0.0
    %269 = vmatprep.subr.mxu0 0.0
    %270 = vmatpush1.xpose.msra.mxu0 0.0
    %271 = vmatprep.subr.mxu0 0.0
    %272 = vmatpush1.xpose.msra.mxu0 0.0
    %273 = vmatprep.subr.mxu0 0.0
    %274 = vmatpush1.xpose.msra.mxu0 0.0
    %275 = vmatprep.subr.mxu0 0.0
    %276 = vmatpush1.xpose.msra.mxu0 0.0
    %277 = vmatprep.subr.mxu0 0.0
    %278 = vmatpush1.xpose.msra.mxu0 0.0
    %279 = vmatprep.subr.mxu0 0.0
    %280 = vmatpush1.xpose.msra.mxu0 0.0
    %281 = vmatprep.subr.mxu0 0.0
    %282 = vmatpush1.xpose.msra.mxu0 0.0
    %283 = vmatprep.subr.mxu0 0.0
    %284 = vmatpush1.xpose.msra.mxu0 0.0
    %285 = vmatprep.subr.mxu0 0.0
    %286 = vmatpush1.xpose.msra.mxu0 0.0
    %287 = vmatprep.subr.mxu0 0.0
    %288 = vmatpush1.xpose.msra.mxu0 0.0
    %289 = vmatprep.subr.mxu0 0.0
    %290 = vmatpush1.xpose.msra.mxu0 0.0
    %291 = vmatprep.subr.mxu0 0.0
    %292 = vmatpush1.xpose.msra.mxu0 0.0
    %293 = vmatprep.subr.mxu0 0.0
    %294 = vmatpush1.xpose.msra.mxu0 0.0
    %295 = vmatprep.subr.mxu0 0.0
    %296 = vmatpush1.xpose.msra.mxu0 0.0
    %297 = vmatprep.subr.mxu0 0.0
    %298 = vmatpush1.xpose.msra.mxu0 0.0
    %299 = vmatprep.subr.mxu0 0.0
    %300 = vmatpush1.xpose.msra.mxu0 0.0
    %301 = vmatprep.subr.mxu0 0.0
    %302 = vmatpush1.xpose.msra.mxu0 0.0
    %303 = vmatprep.subr.mxu0 0.0
    %304 = vmatpush1.xpose.msra.mxu0 0.0
    %305 = vmatprep.subr.mxu0 0.0
    %306 = vmatpush1.xpose.msra.mxu0 0.0
    %307 = vmatprep.subr.mxu0 0.0
    %308 = vmatpush1.xpose.msra.mxu0 0.0
    %309 = vmatprep.subr.mxu0 0.0
    %310 = vmatpush1.xpose.msra.mxu0 0.0
    %311 = vmatprep.subr.mxu0 0.0
    %312 = vmatpush1.xpose.msra.mxu0 0.0
    %313 = vmatprep.subr.mxu0 0.0
    %314 = vmatpush1.xpose.msra.mxu0 0.0
    %315 = vmatprep.subr.mxu0 0.0
    %316 = vmatpush1.xpose.msra.mxu0 0.0
    %317 = vmatprep.subr.mxu0 0.0
    %318 = vmatpush1.xpose.msra.mxu0 0.0
    %319 = vmatprep.mubr.f32.mxu0 0.0
    %320 = vmatmul.mubr.f32.gmra.mrb[0].mxu0 %v251
    %v321 = vpop.f32.mrb[0].mxu0
    %v322 = vadd.f32 0.0, %v321
    %v323 = vpop.f32.mrb[0].mxu0
    %324 = vdwg.mxu0
    %325 = vrot.lane.b32.xlu0 %v161, 112
    %v326 = vpop.permute.xlu0 %325
    %327 = vrot.lane.b32.xlu0 %v161, 80
    %v328 = vpop.permute.xlu0 %327
    %v329 = vsel %vm172, %v326, 0
    %v331 = vsel %vm172, %v328, 0
    %333 = vmatprep.subr.mxu0 0.0
    %334 = vmatpush1.xpose.msra.mxu0 %v331
    %335 = vmatprep.subr.mxu0 0.0
    %336 = vmatpush1.xpose.msra.mxu0 0.0
    %337 = vmatprep.subr.mxu0 0.0
    %338 = vmatpush1.xpose.msra.mxu0 0.0
    %339 = vmatprep.subr.mxu0 0.0
    %340 = vmatpush1.xpose.msra.mxu0 0.0
    %341 = vmatprep.subr.mxu0 0.0
    %342 = vmatpush1.xpose.msra.mxu0 0.0
    %343 = vmatprep.subr.mxu0 0.0
    %344 = vmatpush1.xpose.msra.mxu0 0.0
    %345 = vmatprep.subr.mxu0 0.0
    %346 = vmatpush1.xpose.msra.mxu0 0.0
    %347 = vmatprep.subr.mxu0 0.0
    %348 = vmatpush1.xpose.msra.mxu0 0.0
    %349 = vmatprep.subr.mxu0 0.0
    %350 = vmatpush1.xpose.msra.mxu0 0.0
    %351 = vmatprep.subr.mxu0 0.0
    %352 = vmatpush1.xpose.msra.mxu0 0.0
    %353 = vmatprep.subr.mxu0 0.0
    %354 = vmatpush1.xpose.msra.mxu0 0.0
    %355 = vmatprep.subr.mxu0 0.0
    %356 = vmatpush1.xpose.msra.mxu0 0.0
    %357 = vmatprep.subr.mxu0 0.0
    %358 = vmatpush1.xpose.msra.mxu0 0.0
    %359 = vmatprep.subr.mxu0 0.0
    %360 = vmatpush1.xpose.msra.mxu0 0.0
    %361 = vmatprep.subr.mxu0 0.0
    %362 = vmatpush1.xpose.msra.mxu0 0.0
    %363 = vmatprep.subr.mxu0 0.0
    %364 = vmatpush1.xpose.msra.mxu0 0.0
    %365 = vmatprep.subr.mxu0 0.0
    %366 = vmatpush1.xpose.msra.mxu0 0.0
    %367 = vmatprep.subr.mxu0 0.0
    %368 = vmatpush1.xpose.msra.mxu0 0.0
    %369 = vmatprep.subr.mxu0 0.0
    %370 = vmatpush1.xpose.msra.mxu0 0.0
    %371 = vmatprep.subr.mxu0 0.0
    %372 = vmatpush1.xpose.msra.mxu0 0.0
    %373 = vmatprep.subr.mxu0 0.0
    %374 = vmatpush1.xpose.msra.mxu0 0.0
    %375 = vmatprep.subr.mxu0 0.0
    %376 = vmatpush1.xpose.msra.mxu0 0.0
    %377 = vmatprep.subr.mxu0 0.0
    %378 = vmatpush1.xpose.msra.mxu0 0.0
    %379 = vmatprep.subr.mxu0 0.0
    %380 = vmatpush1.xpose.msra.mxu0 0.0
    %381 = vmatprep.subr.mxu0 0.0
    %382 = vmatpush1.xpose.msra.mxu0 0.0
    %383 = vmatprep.subr.mxu0 0.0
    %384 = vmatpush1.xpose.msra.mxu0 0.0
    %385 = vmatprep.subr.mxu0 0.0
    %386 = vmatpush1.xpose.msra.mxu0 0.0
    %387 = vmatprep.subr.mxu0 0.0
    %388 = vmatpush1.xpose.msra.mxu0 0.0
    %389 = vmatprep.subr.mxu0 0.0
    %390 = vmatpush1.xpose.msra.mxu0 0.0
    %391 = vmatprep.subr.mxu0 0.0
    %392 = vmatpush1.xpose.msra.mxu0 0.0
    %393 = vmatprep.subr.mxu0 0.0
    %394 = vmatpush1.xpose.msra.mxu0 0.0
    %395 = vmatprep.subr.mxu0 0.0
    %396 = vmatpush1.xpose.msra.mxu0 0.0
    %397 = vmatprep.mubr.f32.mxu0 0.0
    %398 = vmatmul.mubr.f32.gmra.mrb[0].mxu0 %v329
    %v399 = vpop.f32.mrb[0].mxu0
    %v400 = vadd.f32 0.0, %v399
    %v401 = vpop.f32.mrb[0].mxu0
    %402 = vdwg.mxu0
    %403 = vrot.lane.b32.xlu0 %v161, 104
    %v404 = vpop.permute.xlu0 %403
    %405 = vrot.lane.b32.xlu0 %v161, 72
    %v406 = vpop.permute.xlu0 %405
    %v407 = vsel %vm172, %v404, 0
    %v409 = vsel %vm172, %v406, 0
    %411 = vmatprep.subr.mxu0 0.0
    %412 = vmatpush1.xpose.msra.mxu0 %v409
    %413 = vmatprep.subr.mxu0 0.0
    %414 = vmatpush1.xpose.msra.mxu0 0.0
    %415 = vmatprep.subr.mxu0 0.0
    %416 = vmatpush1.xpose.msra.mxu0 0.0
    %417 = vmatprep.subr.mxu0 0.0
    %418 = vmatpush1.xpose.msra.mxu0 0.0
    %419 = vmatprep.subr.mxu0 0.0
    %420 = vmatpush1.xpose.msra.mxu0 0.0
    %421 = vmatprep.subr.mxu0 0.0
    %422 = vmatpush1.xpose.msra.mxu0 0.0
    %423 = vmatprep.subr.mxu0 0.0
    %424 = vmatpush1.xpose.msra.mxu0 0.0
    %425 = vmatprep.subr.mxu0 0.0
    %426 = vmatpush1.xpose.msra.mxu0 0.0
    %427 = vmatprep.subr.mxu0 0.0
    %428 = vmatpush1.xpose.msra.mxu0 0.0
    %429 = vmatprep.subr.mxu0 0.0
    %430 = vmatpush1.xpose.msra.mxu0 0.0
    %431 = vmatprep.subr.mxu0 0.0
    %432 = vmatpush1.xpose.msra.mxu0 0.0
    %433 = vmatprep.subr.mxu0 0.0
    %434 = vmatpush1.xpose.msra.mxu0 0.0
    %435 = vmatprep.subr.mxu0 0.0
    %436 = vmatpush1.xpose.msra.mxu0 0.0
    %437 = vmatprep.subr.mxu0 0.0
    %438 = vmatpush1.xpose.msra.mxu0 0.0
    %439 = vmatprep.subr.mxu0 0.0
    %440 = vmatpush1.xpose.msra.mxu0 0.0
    %441 = vmatprep.subr.mxu0 0.0
    %442 = vmatpush1.xpose.msra.mxu0 0.0
    %443 = vmatprep.subr.mxu0 0.0
    %444 = vmatpush1.xpose.msra.mxu0 0.0
    %445 = vmatprep.subr.mxu0 0.0
    %446 = vmatpush1.xpose.msra.mxu0 0.0
    %447 = vmatprep.subr.mxu0 0.0
    %448 = vmatpush1.xpose.msra.mxu0 0.0
    %449 = vmatprep.subr.mxu0 0.0
    %450 = vmatpush1.xpose.msra.mxu0 0.0
    %451 = vmatprep.subr.mxu0 0.0
    %452 = vmatpush1.xpose.msra.mxu0 0.0
    %453 = vmatprep.subr.mxu0 0.0
    %454 = vmatpush1.xpose.msra.mxu0 0.0
    %455 = vmatprep.subr.mxu0 0.0
    %456 = vmatpush1.xpose.msra.mxu0 0.0
    %457 = vmatprep.subr.mxu0 0.0
    %458 = vmatpush1.xpose.msra.mxu0 0.0
    %459 = vmatprep.subr.mxu0 0.0
    %460 = vmatpush1.xpose.msra.mxu0 0.0
    %461 = vmatprep.subr.mxu0 0.0
    %462 = vmatpush1.xpose.msra.mxu0 0.0
    %463 = vmatprep.subr.mxu0 0.0
    %464 = vmatpush1.xpose.msra.mxu0 0.0
    %465 = vmatprep.subr.mxu0 0.0
    %466 = vmatpush1.xpose.msra.mxu0 0.0
    %467 = vmatprep.subr.mxu0 0.0
    %468 = vmatpush1.xpose.msra.mxu0 0.0
    %469 = vmatprep.subr.mxu0 0.0
    %470 = vmatpush1.xpose.msra.mxu0 0.0
    %471 = vmatprep.subr.mxu0 0.0
    %472 = vmatpush1.xpose.msra.mxu0 0.0
    %473 = vmatprep.subr.mxu0 0.0
    %474 = vmatpush1.xpose.msra.mxu0 0.0
    %475 = vmatprep.mubr.f32.mxu0 0.0
    %476 = vmatmul.mubr.f32.gmra.mrb[0].mxu0 %v407
    %v477 = vpop.f32.mrb[0].mxu0
    %v478 = vadd.f32 0.0, %v477
    %v479 = vpop.f32.mrb[0].mxu0
    %480 = vdwg.mxu0
    %482 = vrot.lane.b32.xlu0 %v166, 96
    %v483 = vpop.permute.xlu0 %482
    %v484 = vsel %vm172, %v166, 0
    %v486 = vsel %vm172, %v483, 0
    %488 = vmatprep.subr.mxu0 0.0
    %489 = vmatpush1.xpose.msra.mxu0 %v486
    %490 = vmatprep.subr.mxu0 0.0
    %491 = vmatpush1.xpose.msra.mxu0 0.0
    %492 = vmatprep.subr.mxu0 0.0
    %493 = vmatpush1.xpose.msra.mxu0 0.0
    %494 = vmatprep.subr.mxu0 0.0
    %495 = vmatpush1.xpose.msra.mxu0 0.0
    %496 = vmatprep.subr.mxu0 0.0
    %497 = vmatpush1.xpose.msra.mxu0 0.0
    %498 = vmatprep.subr.mxu0 0.0
    %499 = vmatpush1.xpose.msra.mxu0 0.0
    %500 = vmatprep.subr.mxu0 0.0
    %501 = vmatpush1.xpose.msra.mxu0 0.0
    %502 = vmatprep.subr.mxu0 0.0
    %503 = vmatpush1.xpose.msra.mxu0 0.0
    %504 = vmatprep.subr.mxu0 0.0
    %505 = vmatpush1.xpose.msra.mxu0 0.0
    %506 = vmatprep.subr.mxu0 0.0
    %507 = vmatpush1.xpose.msra.mxu0 0.0
    %508 = vmatprep.subr.mxu0 0.0
    %509 = vmatpush1.xpose.msra.mxu0 0.0
    %510 = vmatprep.subr.mxu0 0.0
    %511 = vmatpush1.xpose.msra.mxu0 0.0
    %512 = vmatprep.subr.mxu0 0.0
    %513 = vmatpush1.xpose.msra.mxu0 0.0
    %514 = vmatprep.subr.mxu0 0.0
    %515 = vmatpush1.xpose.msra.mxu0 0.0
    %516 = vmatprep.subr.mxu0 0.0
    %517 = vmatpush1.xpose.msra.mxu0 0.0
    %518 = vmatprep.subr.mxu0 0.0
    %519 = vmatpush1.xpose.msra.mxu0 0.0
    %520 = vmatprep.subr.mxu0 0.0
    %521 = vmatpush1.xpose.msra.mxu0 0.0
    %522 = vmatprep.subr.mxu0 0.0
    %523 = vmatpush1.xpose.msra.mxu0 0.0
    %524 = vmatprep.subr.mxu0 0.0
    %525 = vmatpush1.xpose.msra.mxu0 0.0
    %526 = vmatprep.subr.mxu0 0.0
    %527 = vmatpush1.xpose.msra.mxu0 0.0
    %528 = vmatprep.subr.mxu0 0.0
    %529 = vmatpush1.xpose.msra.mxu0 0.0
    %530 = vmatprep.subr.mxu0 0.0
    %531 = vmatpush1.xpose.msra.mxu0 0.0
    %532 = vmatprep.subr.mxu0 0.0
    %533 = vmatpush1.xpose.msra.mxu0 0.0
    %534 = vmatprep.subr.mxu0 0.0
    %535 = vmatpush1.xpose.msra.mxu0 0.0
    %536 = vmatprep.subr.mxu0 0.0
    %537 = vmatpush1.xpose.msra.mxu0 0.0
    %538 = vmatprep.subr.mxu0 0.0
    %539 = vmatpush1.xpose.msra.mxu0 0.0
    %540 = vmatprep.subr.mxu0 0.0
    %541 = vmatpush1.xpose.msra.mxu0 0.0
    %542 = vmatprep.subr.mxu0 0.0
    %543 = vmatpush1.xpose.msra.mxu0 0.0
    %544 = vmatprep.subr.mxu0 0.0
    %545 = vmatpush1.xpose.msra.mxu0 0.0
    %546 = vmatprep.subr.mxu0 0.0
    %547 = vmatpush1.xpose.msra.mxu0 0.0
    %548 = vmatprep.subr.mxu0 0.0
    %549 = vmatpush1.xpose.msra.mxu0 0.0
    %550 = vmatprep.subr.mxu0 0.0
    %551 = vmatpush1.xpose.msra.mxu0 0.0
    %552 = vmatprep.mubr.f32.mxu0 0.0
    %553 = vmatmul.mubr.f32.gmra.mrb[0].mxu0 %v484
    %v554 = vpop.f32.mrb[0].mxu0
    %v555 = vadd.f32 0.0, %v554
    %v556 = vpop.f32.mrb[0].mxu0
    %557 = vdwg.mxu0
    %558 = vrot.lane.b32.xlu0 %v166, 120
    %v559 = vpop.permute.xlu0 %558
    %560 = vrot.lane.b32.xlu0 %v166, 88
    %v561 = vpop.permute.xlu0 %560
    %v562 = vsel %vm172, %v559, 0
    %v564 = vsel %vm172, %v561, 0
    %566 = vmatprep.subr.mxu0 0.0
    %567 = vmatpush1.xpose.msra.mxu0 %v564
    %568 = vmatprep.subr.mxu0 0.0
    %569 = vmatpush1.xpose.msra.mxu0 0.0
    %570 = vmatprep.subr.mxu0 0.0
    %571 = vmatpush1.xpose.msra.mxu0 0.0
    %572 = vmatprep.subr.mxu0 0.0
    %573 = vmatpush1.xpose.msra.mxu0 0.0
    %574 = vmatprep.subr.mxu0 0.0
    %575 = vmatpush1.xpose.msra.mxu0 0.0
    %576 = vmatprep.subr.mxu0 0.0
    %577 = vmatpush1.xpose.msra.mxu0 0.0
    %578 = vmatprep.subr.mxu0 0.0
    %579 = vmatpush1.xpose.msra.mxu0 0.0
    %580 = vmatprep.subr.mxu0 0.0
    %581 = vmatpush1.xpose.msra.mxu0 0.0
    %582 = vmatprep.subr.mxu0 0.0
    %583 = vmatpush1.xpose.msra.mxu0 0.0
    %584 = vmatprep.subr.mxu0 0.0
    %585 = vmatpush1.xpose.msra.mxu0 0.0
    %586 = vmatprep.subr.mxu0 0.0
    %587 = vmatpush1.xpose.msra.mxu0 0.0
    %588 = vmatprep.subr.mxu0 0.0
    %589 = vmatpush1.xpose.msra.mxu0 0.0
    %590 = vmatprep.subr.mxu0 0.0
    %591 = vmatpush1.xpose.msra.mxu0 0.0
    %592 = vmatprep.subr.mxu0 0.0
    %593 = vmatpush1.xpose.msra.mxu0 0.0
    %594 = vmatprep.subr.mxu0 0.0
    %595 = vmatpush1.xpose.msra.mxu0 0.0
    %596 = vmatprep.subr.mxu0 0.0
    %597 = vmatpush1.xpose.msra.mxu0 0.0
    %598 = vmatprep.subr.mxu0 0.0
    %599 = vmatpush1.xpose.msra.mxu0 0.0
    %600 = vmatprep.subr.mxu0 0.0
    %601 = vmatpush1.xpose.msra.mxu0 0.0
    %602 = vmatprep.subr.mxu0 0.0
    %603 = vmatpush1.xpose.msra.mxu0 0.0
    %604 = vmatprep.subr.mxu0 0.0
    %605 = vmatpush1.xpose.msra.mxu0 0.0
    %606 = vmatprep.subr.mxu0 0.0
    %607 = vmatpush1.xpose.msra.mxu0 0.0
    %608 = vmatprep.subr.mxu0 0.0
    %609 = vmatpush1.xpose.msra.mxu0 0.0
    %610 = vmatprep.subr.mxu0 0.0
    %611 = vmatpush1.xpose.msra.mxu0 0.0
    %612 = vmatprep.subr.mxu0 0.0
    %613 = vmatpush1.xpose.msra.mxu0 0.0
    %614 = vmatprep.subr.mxu0 0.0
    %615 = vmatpush1.xpose.msra.mxu0 0.0
    %616 = vmatprep.subr.mxu0 0.0
    %617 = vmatpush1.xpose.msra.mxu0 0.0
    %618 = vmatprep.subr.mxu0 0.0
    %619 = vmatpush1.xpose.msra.mxu0 0.0
    %620 = vmatprep.subr.mxu0 0.0
    %621 = vmatpush1.xpose.msra.mxu0 0.0
    %622 = vmatprep.subr.mxu0 0.0
    %623 = vmatpush1.xpose.msra.mxu0 0.0
    %624 = vmatprep.subr.mxu0 0.0
    %625 = vmatpush1.xpose.msra.mxu0 0.0
    %626 = vmatprep.subr.mxu0 0.0
    %627 = vmatpush1.xpose.msra.mxu0 0.0
    %628 = vmatprep.subr.mxu0 0.0
    %629 = vmatpush1.xpose.msra.mxu0 0.0
    %630 = vmatprep.mubr.f32.mxu0 0.0
    %631 = vmatmul.mubr.f32.gmra.mrb[0].mxu0 %v562
    %v632 = vpop.f32.mrb[0].mxu0
    %v633 = vadd.f32 0.0, %v632
    %v634 = vpop.f32.mrb[0].mxu0
    %635 = vdwg.mxu0
    %636 = vrot.lane.b32.xlu0 %v166, 112
    %v637 = vpop.permute.xlu0 %636
    %638 = vrot.lane.b32.xlu0 %v166, 80
    %v639 = vpop.permute.xlu0 %638
    %v640 = vsel %vm172, %v637, 0
    %v642 = vsel %vm172, %v639, 0
    %644 = vmatprep.subr.mxu0 0.0
    %645 = vmatpush1.xpose.msra.mxu0 %v642
    %646 = vmatprep.subr.mxu0 0.0
    %647 = vmatpush1.xpose.msra.mxu0 0.0
    %648 = vmatprep.subr.mxu0 0.0
    %649 = vmatpush1.xpose.msra.mxu0 0.0
    %650 = vmatprep.subr.mxu0 0.0
    %651 = vmatpush1.xpose.msra.mxu0 0.0
    %652 = vmatprep.subr.mxu0 0.0
    %653 = vmatpush1.xpose.msra.mxu0 0.0
    %654 = vmatprep.subr.mxu0 0.0
    %655 = vmatpush1.xpose.msra.mxu0 0.0
    %656 = vmatprep.subr.mxu0 0.0
    %657 = vmatpush1.xpose.msra.mxu0 0.0
    %658 = vmatprep.subr.mxu0 0.0
    %659 = vmatpush1.xpose.msra.mxu0 0.0
    %660 = vmatprep.subr.mxu0 0.0
    %661 = vmatpush1.xpose.msra.mxu0 0.0
    %662 = vmatprep.subr.mxu0 0.0
    %663 = vmatpush1.xpose.msra.mxu0 0.0
    %664 = vmatprep.subr.mxu0 0.0
    %665 = vmatpush1.xpose.msra.mxu0 0.0
    %666 = vmatprep.subr.mxu0 0.0
    %667 = vmatpush1.xpose.msra.mxu0 0.0
    %668 = vmatprep.subr.mxu0 0.0
    %669 = vmatpush1.xpose.msra.mxu0 0.0
    %670 = vmatprep.subr.mxu0 0.0
    %671 = vmatpush1.xpose.msra.mxu0 0.0
    %672 = vmatprep.subr.mxu0 0.0
    %673 = vmatpush1.xpose.msra.mxu0 0.0
    %674 = vmatprep.subr.mxu0 0.0
    %675 = vmatpush1.xpose.msra.mxu0 0.0
    %676 = vmatprep.subr.mxu0 0.0
    %677 = vmatpush1.xpose.msra.mxu0 0.0
    %678 = vmatprep.subr.mxu0 0.0
    %679 = vmatpush1.xpose.msra.mxu0 0.0
    %680 = vmatprep.subr.mxu0 0.0
    %681 = vmatpush1.xpose.msra.mxu0 0.0
    %682 = vmatprep.subr.mxu0 0.0
    %683 = vmatpush1.xpose.msra.mxu0 0.0
    %684 = vmatprep.subr.mxu0 0.0
    %685 = vmatpush1.xpose.msra.mxu0 0.0
    %686 = vmatprep.subr.mxu0 0.0
    %687 = vmatpush1.xpose.msra.mxu0 0.0
    %688 = vmatprep.subr.mxu0 0.0
    %689 = vmatpush1.xpose.msra.mxu0 0.0
    %690 = vmatprep.subr.mxu0 0.0
    %691 = vmatpush1.xpose.msra.mxu0 0.0
    %692 = vmatprep.subr.mxu0 0.0
    %693 = vmatpush1.xpose.msra.mxu0 0.0
    %694 = vmatprep.subr.mxu0 0.0
    %695 = vmatpush1.xpose.msra.mxu0 0.0
    %696 = vmatprep.subr.mxu0 0.0
    %697 = vmatpush1.xpose.msra.mxu0 0.0
    %698 = vmatprep.subr.mxu0 0.0
    %699 = vmatpush1.xpose.msra.mxu0 0.0
    %700 = vmatprep.subr.mxu0 0.0
    %701 = vmatpush1.xpose.msra.mxu0 0.0
    %702 = vmatprep.subr.mxu0 0.0
    %703 = vmatpush1.xpose.msra.mxu0 0.0
    %704 = vmatprep.subr.mxu0 0.0
    %705 = vmatpush1.xpose.msra.mxu0 0.0
    %706 = vmatprep.subr.mxu0 0.0
    %707 = vmatpush1.xpose.msra.mxu0 0.0
    %708 = vmatprep.mubr.f32.mxu0 0.0
    %709 = vmatmul.mubr.f32.gmra.mrb[0].mxu0 %v640
    %v710 = vpop.f32.mrb[0].mxu0
    %v711 = vadd.f32 0.0, %v710
    %v712 = vpop.f32.mrb[0].mxu0
    %713 = vdwg.mxu0
    %714 = vrot.lane.b32.xlu0 %v166, 104
    %v715 = vpop.permute.xlu0 %714
    %716 = vrot.lane.b32.xlu0 %v166, 72
    %v717 = vpop.permute.xlu0 %716
    %v718 = vsel %vm172, %v715, 0
    %v720 = vsel %vm172, %v717, 0
    %722 = vmatprep.subr.mxu0 0.0
    %723 = vmatpush1.xpose.msra.mxu0 %v720
    %724 = vmatprep.subr.mxu0 0.0
    %725 = vmatpush1.xpose.msra.mxu0 0.0
    %726 = vmatprep.subr.mxu0 0.0
    %727 = vmatpush1.xpose.msra.mxu0 0.0
    %728 = vmatprep.subr.mxu0 0.0
    %729 = vmatpush1.xpose.msra.mxu0 0.0
    %730 = vmatprep.subr.mxu0 0.0
    %731 = vmatpush1.xpose.msra.mxu0 0.0
    %732 = vmatprep.subr.mxu0 0.0
    %733 = vmatpush1.xpose.msra.mxu0 0.0
    %734 = vmatprep.subr.mxu0 0.0
    %735 = vmatpush1.xpose.msra.mxu0 0.0
    %736 = vmatprep.subr.mxu0 0.0
    %737 = vmatpush1.xpose.msra.mxu0 0.0
    %738 = vmatprep.subr.mxu0 0.0
    %739 = vmatpush1.xpose.msra.mxu0 0.0
    %740 = vmatprep.subr.mxu0 0.0
    %741 = vmatpush1.xpose.msra.mxu0 0.0
    %742 = vmatprep.subr.mxu0 0.0
    %743 = vmatpush1.xpose.msra.mxu0 0.0
    %744 = vmatprep.subr.mxu0 0.0
    %745 = vmatpush1.xpose.msra.mxu0 0.0
    %746 = vmatprep.subr.mxu0 0.0
    %747 = vmatpush1.xpose.msra.mxu0 0.0
    %748 = vmatprep.subr.mxu0 0.0
    %749 = vmatpush1.xpose.msra.mxu0 0.0
    %750 = vmatprep.subr.mxu0 0.0
    %751 = vmatpush1.xpose.msra.mxu0 0.0
    %752 = vmatprep.subr.mxu0 0.0
    %753 = vmatpush1.xpose.msra.mxu0 0.0
    %754 = vmatprep.subr.mxu0 0.0
    %755 = vmatpush1.xpose.msra.mxu0 0.0
    %756 = vmatprep.subr.mxu0 0.0
    %757 = vmatpush1.xpose.msra.mxu0 0.0
    %758 = vmatprep.subr.mxu0 0.0
    %759 = vmatpush1.xpose.msra.mxu0 0.0
    %760 = vmatprep.subr.mxu0 0.0
    %761 = vmatpush1.xpose.msra.mxu0 0.0
    %762 = vmatprep.subr.mxu0 0.0
    %763 = vmatpush1.xpose.msra.mxu0 0.0
    %764 = vmatprep.subr.mxu0 0.0
    %765 = vmatpush1.xpose.msra.mxu0 0.0
    %766 = vmatprep.subr.mxu0 0.0
    %767 = vmatpush1.xpose.msra.mxu0 0.0
    %768 = vmatprep.subr.mxu0 0.0
    %769 = vmatpush1.xpose.msra.mxu0 0.0
    %770 = vmatprep.subr.mxu0 0.0
    %771 = vmatpush1.xpose.msra.mxu0 0.0
    %772 = vmatprep.subr.mxu0 0.0
    %773 = vmatpush1.xpose.msra.mxu0 0.0
    %774 = vmatprep.subr.mxu0 0.0
    %775 = vmatpush1.xpose.msra.mxu0 0.0
    %776 = vmatprep.subr.mxu0 0.0
    %777 = vmatpush1.xpose.msra.mxu0 0.0
    %778 = vmatprep.subr.mxu0 0.0
    %779 = vmatpush1.xpose.msra.mxu0 0.0
    %780 = vmatprep.subr.mxu0 0.0
    %781 = vmatpush1.xpose.msra.mxu0 0.0
    %782 = vmatprep.subr.mxu0 0.0
    %783 = vmatpush1.xpose.msra.mxu0 0.0
    %784 = vmatprep.subr.mxu0 0.0
    %785 = vmatpush1.xpose.msra.mxu0 0.0
    %786 = vmatprep.mubr.f32.mxu0 0.0
    %787 = vmatmul.mubr.f32.gmra.mrb[0].mxu0 %v718
    %v788 = vpop.f32.mrb[0].mxu0
    %v789 = vadd.f32 0.0, %v788
    %v790 = vpop.f32.mrb[0].mxu0
    %791 = vdwg.mxu0
    %v792 = vadd.f32 %v244, %v25
    %v793 = vadd.f32 %v322, %v26
    %v794 = vadd.f32 %v400, %v27
    %v795 = vadd.f32 %v478, %v28
    %v796 = vadd.f32 %v555, %v29
    %v797 = vadd.f32 %v633, %v30
    %v798 = vadd.f32 %v711, %v31
    %v799 = vadd.f32 %v789, %v32
    %v800 = vsel %vm172, %v792, -inf
    %801 = vmax.xlane.f32.xlu0 %v800
    %v802 = vpop.xlane.xlu0 %801
    %v803 = vsel %vm172, %v793, -inf
    %804 = vmax.xlane.f32.xlu0 %v803
    %v805 = vpop.xlane.xlu0 %804
    %v806 = vsel %vm172, %v794, -inf
    %807 = vmax.xlane.f32.xlu0 %v806
    %v808 = vpop.xlane.xlu0 %807
    %v809 = vsel %vm172, %v795, -inf
    %810 = vmax.xlane.f32.xlu0 %v809
    %v811 = vpop.xlane.xlu0 %810
    %v812 = vsel %vm172, %v796, -inf
    %813 = vmax.xlane.f32.xlu0 %v812
    %v814 = vpop.xlane.xlu0 %813
    %v815 = vsel %vm172, %v797, -inf
    %816 = vmax.xlane.f32.xlu0 %v815
    %v817 = vpop.xlane.xlu0 %816
    %v818 = vsel %vm172, %v798, -inf
    %819 = vmax.xlane.f32.xlu0 %v818
    %v820 = vpop.xlane.xlu0 %819
    %v821 = vsel %vm172, %v799, -inf
    %822 = vmax.xlane.f32.xlu0 %v821
    %v823 = vpop.xlane.xlu0 %822
    %v824 = vsub.f32 %v792, %v802
    %v825 = vsub.f32 %v793, %v805
    %v826 = vsub.f32 %v794, %v808
    %v827 = vsub.f32 %v795, %v811
    %v828 = vsub.f32 %v796, %v814
    %v829 = vsub.f32 %v797, %v817
    %v830 = vsub.f32 %v798, %v820
    %v831 = vsub.f32 %v799, %v823
    %v832 = vmul.f32 %v824, 1.442695
    %v833 = vpow.pop %v832
    %v834 = vmul.f32 %v825, 1.442695
    %v835 = vpow.pop %v834
    %v836 = vmul.f32 %v826, 1.442695
    %v837 = vpow.pop %v836
    %v838 = vmul.f32 %v827, 1.442695
    %v839 = vpow.pop %v838
    %v840 = vmul.f32 %v828, 1.442695
    %v841 = vpow.pop %v840
    %v842 = vmul.f32 %v829, 1.442695
    %v843 = vpow.pop %v842
    %v844 = vmul.f32 %v830, 1.442695
    %v845 = vpow.pop %v844
    %v846 = vmul.f32 %v831, 1.442695
    %v847 = vpow.pop %v846
    %v848 = vsel %vm172, %v833, 0.0
    %849 = vadd.xlane.f32.xlu0 %v848
    %v850 = vpop.xlane.xlu0 %849
    %v851 = vsel %vm172, %v835, 0.0
    %852 = vadd.xlane.f32.xlu0 %v851
    %v853 = vpop.xlane.xlu0 %852
    %v854 = vsel %vm172, %v837, 0.0
    %855 = vadd.xlane.f32.xlu0 %v854
    %v856 = vpop.xlane.xlu0 %855
    %v857 = vsel %vm172, %v839, 0.0
    %858 = vadd.xlane.f32.xlu0 %v857
    %v859 = vpop.xlane.xlu0 %858
    %v860 = vsel %vm172, %v841, 0.0
    %861 = vadd.xlane.f32.xlu0 %v860
    %v862 = vpop.xlane.xlu0 %861
    %v863 = vsel %vm172, %v843, 0.0
    %864 = vadd.xlane.f32.xlu0 %v863
    %v865 = vpop.xlane.xlu0 %864
    %v866 = vsel %vm172, %v845, 0.0
    %867 = vadd.xlane.f32.xlu0 %v866
    %v868 = vpop.xlane.xlu0 %867
    %v869 = vsel %vm172, %v847, 0.0
    %870 = vadd.xlane.f32.xlu0 %v869
    %v871 = vpop.xlane.xlu0 %870
    %v872 = vrcp.pop %v850
    %v873 = vmul.f32 %v833, %v872
    %v874 = vrcp.pop %v853
    %v875 = vmul.f32 %v835, %v874
    %v876 = vrcp.pop %v856
    %v877 = vmul.f32 %v837, %v876
    %v878 = vrcp.pop %v859
    %v879 = vmul.f32 %v839, %v878
    %v880 = vrcp.pop %v862
    %v881 = vmul.f32 %v841, %v880
    %v882 = vrcp.pop %v865
    %v883 = vmul.f32 %v843, %v882
    %v884 = vrcp.pop %v868
    %v885 = vmul.f32 %v845, %v884
    %v886 = vrcp.pop %v871
    %v887 = vmul.f32 %v847, %v886
    %888 = vrot.lane.b32.xlu0 %v161, 64
    %v889 = vpop.permute.xlu0 %888
    %v892 = vsel %vm172, %v873, 0
    %894 = vmatprep.subr.mxu0 0.0
    %895 = vmatpush1.msra.mxu0 %v889
    %896 = vmatprep.subr.mxu0 0.0
    %897 = vmatpush1.msra.mxu0 0.0
    %898 = vmatprep.subr.mxu0 0.0
    %899 = vmatpush1.msra.mxu0 0.0
    %900 = vmatprep.subr.mxu0 0.0
    %901 = vmatpush1.msra.mxu0 0.0
    %902 = vmatprep.subr.mxu0 0.0
    %903 = vmatpush1.msra.mxu0 0.0
    %904 = vmatprep.subr.mxu0 0.0
    %905 = vmatpush1.msra.mxu0 0.0
    %906 = vmatprep.subr.mxu0 0.0
    %907 = vmatpush1.msra.mxu0 0.0
    %908 = vmatprep.subr.mxu0 0.0
    %909 = vmatpush1.msra.mxu0 0.0
    %910 = vmatprep.subr.mxu0 0.0
    %911 = vmatpush1.msra.mxu0 0.0
    %912 = vmatprep.subr.mxu0 0.0
    %913 = vmatpush1.msra.mxu0 0.0
    %914 = vmatprep.subr.mxu0 0.0
    %915 = vmatpush1.msra.mxu0 0.0
    %916 = vmatprep.subr.mxu0 0.0
    %917 = vmatpush1.msra.mxu0 0.0
    %918 = vmatprep.subr.mxu0 0.0
    %919 = vmatpush1.msra.mxu0 0.0
    %920 = vmatprep.subr.mxu0 0.0
    %921 = vmatpush1.msra.mxu0 0.0
    %922 = vmatprep.subr.mxu0 0.0
    %923 = vmatpush1.msra.mxu0 0.0
    %924 = vmatprep.subr.mxu0 0.0
    %925 = vmatpush1.msra.mxu0 0.0
    %926 = vmatprep.subr.mxu0 0.0
    %927 = vmatpush1.msra.mxu0 0.0
    %928 = vmatprep.subr.mxu0 0.0
    %929 = vmatpush1.msra.mxu0 0.0
    %930 = vmatprep.subr.mxu0 0.0
    %931 = vmatpush1.msra.mxu0 0.0
    %932 = vmatprep.subr.mxu0 0.0
    %933 = vmatpush1.msra.mxu0 0.0
    %934 = vmatprep.subr.mxu0 0.0
    %935 = vmatpush1.msra.mxu0 0.0
    %936 = vmatprep.subr.mxu0 0.0
    %937 = vmatpush1.msra.mxu0 0.0
    %938 = vmatprep.subr.mxu0 0.0
    %939 = vmatpush1.msra.mxu0 0.0
    %940 = vmatprep.subr.mxu0 0.0
    %941 = vmatpush1.msra.mxu0 0.0
    %942 = vmatprep.subr.mxu0 0.0
    %943 = vmatpush1.msra.mxu0 0.0
    %944 = vmatprep.subr.mxu0 0.0
    %945 = vmatpush1.msra.mxu0 0.0
    %946 = vmatprep.subr.mxu0 0.0
    %947 = vmatpush1.msra.mxu0 0.0
    %948 = vmatprep.subr.mxu0 0.0
    %949 = vmatpush1.msra.mxu0 0.0
    %950 = vmatprep.subr.mxu0 0.0
    %951 = vmatpush1.msra.mxu0 0.0
    %952 = vmatprep.subr.mxu0 0.0
    %953 = vmatpush1.msra.mxu0 0.0
    %954 = vmatprep.subr.mxu0 0.0
    %955 = vmatpush1.msra.mxu0 0.0
    %956 = vmatprep.subr.mxu0 0.0
    %957 = vmatpush1.msra.mxu0 0.0
    %958 = vmatprep.mubr.f32.mxu0 0.0
    %959 = vmatmul.mubr.f32.gmra.mrb[0].mxu0 %v892
    %v960 = vpop.f32.mrb[0].mxu0
    %v961 = vadd.f32 0.0, %v960
    %v962 = vpop.f32.mrb[0].mxu0
    %963 = vdwg.mxu0
    %964 = vst.msk [vmem:[#allocation2] sm:$0xff] %vm172, %v961
    %965 = vrot.lane.b32.xlu0 %v161, 56
    %v966 = vpop.permute.xlu0 %965
    %v969 = vsel %vm172, %v875, 0
    %971 = vmatprep.subr.mxu0 0.0
    %972 = vmatpush1.msra.mxu0 %v966
    %973 = vmatprep.subr.mxu0 0.0
    %974 = vmatpush1.msra.mxu0 0.0
    %975 = vmatprep.subr.mxu0 0.0
    %976 = vmatpush1.msra.mxu0 0.0
    %977 = vmatprep.subr.mxu0 0.0
    %978 = vmatpush1.msra.mxu0 0.0
    %979 = vmatprep.subr.mxu0 0.0
    %980 = vmatpush1.msra.mxu0 0.0
    %981 = vmatprep.subr.mxu0 0.0
    %982 = vmatpush1.msra.mxu0 0.0
    %983 = vmatprep.subr.mxu0 0.0
    %984 = vmatpush1.msra.mxu0 0.0
    %985 = vmatprep.subr.mxu0 0.0
    %986 = vmatpush1.msra.mxu0 0.0
    %987 = vmatprep.subr.mxu0 0.0
    %988 = vmatpush1.msra.mxu0 0.0
    %989 = vmatprep.subr.mxu0 0.0
    %990 = vmatpush1.msra.mxu0 0.0
    %991 = vmatprep.subr.mxu0 0.0
    %992 = vmatpush1.msra.mxu0 0.0
    %993 = vmatprep.subr.mxu0 0.0
    %994 = vmatpush1.msra.mxu0 0.0
    %995 = vmatprep.subr.mxu0 0.0
    %996 = vmatpush1.msra.mxu0 0.0
    %997 = vmatprep.subr.mxu0 0.0
    %998 = vmatpush1.msra.mxu0 0.0
    %999 = vmatprep.subr.mxu0 0.0
    %1000 = vmatpush1.msra.mxu0 0.0
    %1001 = vmatprep.subr.mxu0 0.0
    %1002 = vmatpush1.msra.mxu0 0.0
    %1003 = vmatprep.subr.mxu0 0.0
    %1004 = vmatpush1.msra.mxu0 0.0
    %1005 = vmatprep.subr.mxu0 0.0
    %1006 = vmatpush1.msra.mxu0 0.0
    %1007 = vmatprep.subr.mxu0 0.0
    %1008 = vmatpush1.msra.mxu0 0.0
    %1009 = vmatprep.subr.mxu0 0.0
    %1010 = vmatpush1.msra.mxu0 0.0
    %1011 = vmatprep.subr.mxu0 0.0
    %1012 = vmatpush1.msra.mxu0 0.0
    %1013 = vmatprep.subr.mxu0 0.0
    %1014 = vmatpush1.msra.mxu0 0.0
    %1015 = vmatprep.subr.mxu0 0.0
    %1016 = vmatpush1.msra.mxu0 0.0
    %1017 = vmatprep.subr.mxu0 0.0
    %1018 = vmatpush1.msra.mxu0 0.0
    %1019 = vmatprep.subr.mxu0 0.0
    %1020 = vmatpush1.msra.mxu0 0.0
    %1021 = vmatprep.subr.mxu0 0.0
    %1022 = vmatpush1.msra.mxu0 0.0
    %1023 = vmatprep.subr.mxu0 0.0
    %1024 = vmatpush1.msra.mxu0 0.0
    %1025 = vmatprep.subr.mxu0 0.0
    %1026 = vmatpush1.msra.mxu0 0.0
    %1027 = vmatprep.subr.mxu0 0.0
    %1028 = vmatpush1.msra.mxu0 0.0
    %1029 = vmatprep.subr.mxu0 0.0
    %1030 = vmatpush1.msra.mxu0 0.0
    %1031 = vmatprep.subr.mxu0 0.0
    %1032 = vmatpush1.msra.mxu0 0.0
    %1033 = vmatprep.subr.mxu0 0.0
    %1034 = vmatpush1.msra.mxu0 0.0
    %1035 = vmatprep.mubr.f32.mxu0 0.0
    %1036 = vmatmul.mubr.f32.gmra.mrb[0].mxu0 %v969
    %v1037 = vpop.f32.mrb[0].mxu0
    %v1038 = vadd.f32 0.0, %v1037
    %v1039 = vpop.f32.mrb[0].mxu0
    %1040 = vdwg.mxu0
    %1042 = vrot.lane.b32.xlu0 %v1038, 8
    %v1043 = vpop.permute.xlu0 %1042
    %vm1045 = vcmask 130112
    %1046 = vst.msk [vmem:[#allocation2] sm:$0xff] %vm1045, %v1043
    %1047 = vrot.lane.b32.xlu0 %v161, 48
    %v1048 = vpop.permute.xlu0 %1047
    %v1051 = vsel %vm172, %v877, 0
    %1053 = vmatprep.subr.mxu0 0.0
    %1054 = vmatpush1.msra.mxu0 %v1048
    %1055 = vmatprep.subr.mxu0 0.0
    %1056 = vmatpush1.msra.mxu0 0.0
    %1057 = vmatprep.subr.mxu0 0.0
    %1058 = vmatpush1.msra.mxu0 0.0
    %1059 = vmatprep.subr.mxu0 0.0
    %1060 = vmatpush1.msra.mxu0 0.0
    %1061 = vmatprep.subr.mxu0 0.0
    %1062 = vmatpush1.msra.mxu0 0.0
    %1063 = vmatprep.subr.mxu0 0.0
    %1064 = vmatpush1.msra.mxu0 0.0
    %1065 = vmatprep.subr.mxu0 0.0
    %1066 = vmatpush1.msra.mxu0 0.0
    %1067 = vmatprep.subr.mxu0 0.0
    %1068 = vmatpush1.msra.mxu0 0.0
    %1069 = vmatprep.subr.mxu0 0.0
    %1070 = vmatpush1.msra.mxu0 0.0
    %1071 = vmatprep.subr.mxu0 0.0
    %1072 = vmatpush1.msra.mxu0 0.0
    %1073 = vmatprep.subr.mxu0 0.0
    %1074 = vmatpush1.msra.mxu0 0.0
    %1075 = vmatprep.subr.mxu0 0.0
    %1076 = vmatpush1.msra.mxu0 0.0
    %1077 = vmatprep.subr.mxu0 0.0
    %1078 = vmatpush1.msra.mxu0 0.0
    %1079 = vmatprep.subr.mxu0 0.0
    %1080 = vmatpush1.msra.mxu0 0.0
    %1081 = vmatprep.subr.mxu0 0.0
    %1082 = vmatpush1.msra.mxu0 0.0
    %1083 = vmatprep.subr.mxu0 0.0
    %1084 = vmatpush1.msra.mxu0 0.0
    %1085 = vmatprep.subr.mxu0 0.0
    %1086 = vmatpush1.msra.mxu0 0.0
    %1087 = vmatprep.subr.mxu0 0.0
    %1088 = vmatpush1.msra.mxu0 0.0
    %1089 = vmatprep.subr.mxu0 0.0
    %1090 = vmatpush1.msra.mxu0 0.0
    %1091 = vmatprep.subr.mxu0 0.0
    %1092 = vmatpush1.msra.mxu0 0.0
    %1093 = vmatprep.subr.mxu0 0.0
    %1094 = vmatpush1.msra.mxu0 0.0
    %1095 = vmatprep.subr.mxu0 0.0
    %1096 = vmatpush1.msra.mxu0 0.0
    %1097 = vmatprep.subr.mxu0 0.0
    %1098 = vmatpush1.msra.mxu0 0.0
    %1099 = vmatprep.subr.mxu0 0.0
    %1100 = vmatpush1.msra.mxu0 0.0
    %1101 = vmatprep.subr.mxu0 0.0
    %1102 = vmatpush1.msra.mxu0 0.0
    %1103 = vmatprep.subr.mxu0 0.0
    %1104 = vmatpush1.msra.mxu0 0.0
    %1105 = vmatprep.subr.mxu0 0.0
    %1106 = vmatpush1.msra.mxu0 0.0
    %1107 = vmatprep.subr.mxu0 0.0
    %1108 = vmatpush1.msra.mxu0 0.0
    %1109 = vmatprep.subr.mxu0 0.0
    %1110 = vmatpush1.msra.mxu0 0.0
    %1111 = vmatprep.subr.mxu0 0.0
    %1112 = vmatpush1.msra.mxu0 0.0
    %1113 = vmatprep.subr.mxu0 0.0
    %1114 = vmatpush1.msra.mxu0 0.0
    %1115 = vmatprep.subr.mxu0 0.0
    %1116 = vmatpush1.msra.mxu0 0.0
    %1117 = vmatprep.mubr.f32.mxu0 0.0
    %1118 = vmatmul.mubr.f32.gmra.mrb[0].mxu0 %v1051
    %v1119 = vpop.f32.mrb[0].mxu0
    %v1120 = vadd.f32 0.0, %v1119
    %v1121 = vpop.f32.mrb[0].mxu0
    %1122 = vdwg.mxu0
    %1124 = vrot.lane.b32.xlu0 %v1120, 16
    %v1125 = vpop.permute.xlu0 %1124
    %vm1127 = vcmask 195712
    %1128 = vst.msk [vmem:[#allocation2] sm:$0xff] %vm1127, %v1125
    %1129 = vrot.lane.b32.xlu0 %v161, 40
    %v1130 = vpop.permute.xlu0 %1129
    %v1133 = vsel %vm172, %v879, 0
    %1135 = vmatprep.subr.mxu0 0.0
    %1136 = vmatpush1.msra.mxu0 %v1130
    %1137 = vmatprep.subr.mxu0 0.0
    %1138 = vmatpush1.msra.mxu0 0.0
    %1139 = vmatprep.subr.mxu0 0.0
    %1140 = vmatpush1.msra.mxu0 0.0
    %1141 = vmatprep.subr.mxu0 0.0
    %1142 = vmatpush1.msra.mxu0 0.0
    %1143 = vmatprep.subr.mxu0 0.0
    %1144 = vmatpush1.msra.mxu0 0.0
    %1145 = vmatprep.subr.mxu0 0.0
    %1146 = vmatpush1.msra.mxu0 0.0
    %1147 = vmatprep.subr.mxu0 0.0
    %1148 = vmatpush1.msra.mxu0 0.0
    %1149 = vmatprep.subr.mxu0 0.0
    %1150 = vmatpush1.msra.mxu0 0.0
    %1151 = vmatprep.subr.mxu0 0.0
    %1152 = vmatpush1.msra.mxu0 0.0
    %1153 = vmatprep.subr.mxu0 0.0
    %1154 = vmatpush1.msra.mxu0 0.0
    %1155 = vmatprep.subr.mxu0 0.0
    %1156 = vmatpush1.msra.mxu0 0.0
    %1157 = vmatprep.subr.mxu0 0.0
    %1158 = vmatpush1.msra.mxu0 0.0
    %1159 = vmatprep.subr.mxu0 0.0
    %1160 = vmatpush1.msra.mxu0 0.0
    %1161 = vmatprep.subr.mxu0 0.0
    %1162 = vmatpush1.msra.mxu0 0.0
    %1163 = vmatprep.subr.mxu0 0.0
    %1164 = vmatpush1.msra.mxu0 0.0
    %1165 = vmatprep.subr.mxu0 0.0
    %1166 = vmatpush1.msra.mxu0 0.0
    %1167 = vmatprep.subr.mxu0 0.0
    %1168 = vmatpush1.msra.mxu0 0.0
    %1169 = vmatprep.subr.mxu0 0.0
    %1170 = vmatpush1.msra.mxu0 0.0
    %1171 = vmatprep.subr.mxu0 0.0
    %1172 = vmatpush1.msra.mxu0 0.0
    %1173 = vmatprep.subr.mxu0 0.0
    %1174 = vmatpush1.msra.mxu0 0.0
    %1175 = vmatprep.subr.mxu0 0.0
    %1176 = vmatpush1.msra.mxu0 0.0
    %1177 = vmatprep.subr.mxu0 0.0
    %1178 = vmatpush1.msra.mxu0 0.0
    %1179 = vmatprep.subr.mxu0 0.0
    %1180 = vmatpush1.msra.mxu0 0.0
    %1181 = vmatprep.subr.mxu0 0.0
    %1182 = vmatpush1.msra.mxu0 0.0
    %1183 = vmatprep.subr.mxu0 0.0
    %1184 = vmatpush1.msra.mxu0 0.0
    %1185 = vmatprep.subr.mxu0 0.0
    %1186 = vmatpush1.msra.mxu0 0.0
    %1187 = vmatprep.subr.mxu0 0.0
    %1188 = vmatpush1.msra.mxu0 0.0
    %1189 = vmatprep.subr.mxu0 0.0
    %1190 = vmatpush1.msra.mxu0 0.0
    %1191 = vmatprep.subr.mxu0 0.0
    %1192 = vmatpush1.msra.mxu0 0.0
    %1193 = vmatprep.subr.mxu0 0.0
    %1194 = vmatpush1.msra.mxu0 0.0
    %1195 = vmatprep.subr.mxu0 0.0
    %1196 = vmatpush1.msra.mxu0 0.0
    %1197 = vmatprep.subr.mxu0 0.0
    %1198 = vmatpush1.msra.mxu0 0.0
    %1199 = vmatprep.mubr.f32.mxu0 0.0
    %1200 = vmatmul.mubr.f32.gmra.mrb[0].mxu0 %v1133
    %v1201 = vpop.f32.mrb[0].mxu0
    %v1202 = vadd.f32 0.0, %v1201
    %v1203 = vpop.f32.mrb[0].mxu0
    %1204 = vdwg.mxu0
    %1206 = vrot.lane.b32.xlu0 %v1202, 24
    %v1207 = vpop.permute.xlu0 %1206
    %vm1209 = vcmask 261312
    %1210 = vst.msk [vmem:[#allocation2] sm:$0xff] %vm1209, %v1207
    %1211 = vrot.lane.b32.xlu0 %v166, 64
    %v1212 = vpop.permute.xlu0 %1211
    %v1215 = vsel %vm172, %v881, 0
    %1217 = vmatprep.subr.mxu0 0.0
    %1218 = vmatpush1.msra.mxu0 %v1212
    %1219 = vmatprep.subr.mxu0 0.0
    %1220 = vmatpush1.msra.mxu0 0.0
    %1221 = vmatprep.subr.mxu0 0.0
    %1222 = vmatpush1.msra.mxu0 0.0
    %1223 = vmatprep.subr.mxu0 0.0
    %1224 = vmatpush1.msra.mxu0 0.0
    %1225 = vmatprep.subr.mxu0 0.0
    %1226 = vmatpush1.msra.mxu0 0.0
    %1227 = vmatprep.subr.mxu0 0.0
    %1228 = vmatpush1.msra.mxu0 0.0
    %1229 = vmatprep.subr.mxu0 0.0
    %1230 = vmatpush1.msra.mxu0 0.0
    %1231 = vmatprep.subr.mxu0 0.0
    %1232 = vmatpush1.msra.mxu0 0.0
    %1233 = vmatprep.subr.mxu0 0.0
    %1234 = vmatpush1.msra.mxu0 0.0
    %1235 = vmatprep.subr.mxu0 0.0
    %1236 = vmatpush1.msra.mxu0 0.0
    %1237 = vmatprep.subr.mxu0 0.0
    %1238 = vmatpush1.msra.mxu0 0.0
    %1239 = vmatprep.subr.mxu0 0.0
    %1240 = vmatpush1.msra.mxu0 0.0
    %1241 = vmatprep.subr.mxu0 0.0
    %1242 = vmatpush1.msra.mxu0 0.0
    %1243 = vmatprep.subr.mxu0 0.0
    %1244 = vmatpush1.msra.mxu0 0.0
    %1245 = vmatprep.subr.mxu0 0.0
    %1246 = vmatpush1.msra.mxu0 0.0
    %1247 = vmatprep.subr.mxu0 0.0
    %1248 = vmatpush1.msra.mxu0 0.0
    %1249 = vmatprep.subr.mxu0 0.0
    %1250 = vmatpush1.msra.mxu0 0.0
    %1251 = vmatprep.subr.mxu0 0.0
    %1252 = vmatpush1.msra.mxu0 0.0
    %1253 = vmatprep.subr.mxu0 0.0
    %1254 = vmatpush1.msra.mxu0 0.0
    %1255 = vmatprep.subr.mxu0 0.0
    %1256 = vmatpush1.msra.mxu0 0.0
    %1257 = vmatprep.subr.mxu0 0.0
    %1258 = vmatpush1.msra.mxu0 0.0
    %1259 = vmatprep.subr.mxu0 0.0
    %1260 = vmatpush1.msra.mxu0 0.0
    %1261 = vmatprep.subr.mxu0 0.0
    %1262 = vmatpush1.msra.mxu0 0.0
    %1263 = vmatprep.subr.mxu0 0.0
    %1264 = vmatpush1.msra.mxu0 0.0
    %1265 = vmatprep.subr.mxu0 0.0
    %1266 = vmatpush1.msra.mxu0 0.0
    %1267 = vmatprep.subr.mxu0 0.0
    %1268 = vmatpush1.msra.mxu0 0.0
    %1269 = vmatprep.subr.mxu0 0.0
    %1270 = vmatpush1.msra.mxu0 0.0
    %1271 = vmatprep.subr.mxu0 0.0
    %1272 = vmatpush1.msra.mxu0 0.0
    %1273 = vmatprep.subr.mxu0 0.0
    %1274 = vmatpush1.msra.mxu0 0.0
    %1275 = vmatprep.subr.mxu0 0.0
    %1276 = vmatpush1.msra.mxu0 0.0
    %1277 = vmatprep.subr.mxu0 0.0
    %1278 = vmatpush1.msra.mxu0 0.0
    %1279 = vmatprep.subr.mxu0 0.0
    %1280 = vmatpush1.msra.mxu0 0.0
    %1281 = vmatprep.mubr.f32.mxu0 0.0
    %1282 = vmatmul.mubr.f32.gmra.mrb[0].mxu0 %v1215
    %v1283 = vpop.f32.mrb[0].mxu0
    %v1284 = vadd.f32 0.0, %v1283
    %v1285 = vpop.f32.mrb[0].mxu0
    %1286 = vdwg.mxu0
    %1287 = vst.msk [vmem:[#allocation2 + $0x8] sm:$0xff] %vm172, %v1284
    %1288 = vrot.lane.b32.xlu0 %v166, 56
    %v1289 = vpop.permute.xlu0 %1288
    %v1292 = vsel %vm172, %v883, 0
    %1294 = vmatprep.subr.mxu0 0.0
    %1295 = vmatpush1.msra.mxu0 %v1289
    %1296 = vmatprep.subr.mxu0 0.0
    %1297 = vmatpush1.msra.mxu0 0.0
    %1298 = vmatprep.subr.mxu0 0.0
    %1299 = vmatpush1.msra.mxu0 0.0
    %1300 = vmatprep.subr.mxu0 0.0
    %1301 = vmatpush1.msra.mxu0 0.0
    %1302 = vmatprep.subr.mxu0 0.0
    %1303 = vmatpush1.msra.mxu0 0.0
    %1304 = vmatprep.subr.mxu0 0.0
    %1305 = vmatpush1.msra.mxu0 0.0
    %1306 = vmatprep.subr.mxu0 0.0
    %1307 = vmatpush1.msra.mxu0 0.0
    %1308 = vmatprep.subr.mxu0 0.0
    %1309 = vmatpush1.msra.mxu0 0.0
    %1310 = vmatprep.subr.mxu0 0.0
    %1311 = vmatpush1.msra.mxu0 0.0
    %1312 = vmatprep.subr.mxu0 0.0
    %1313 = vmatpush1.msra.mxu0 0.0
    %1314 = vmatprep.subr.mxu0 0.0
    %1315 = vmatpush1.msra.mxu0 0.0
    %1316 = vmatprep.subr.mxu0 0.0
    %1317 = vmatpush1.msra.mxu0 0.0
    %1318 = vmatprep.subr.mxu0 0.0
    %1319 = vmatpush1.msra.mxu0 0.0
    %1320 = vmatprep.subr.mxu0 0.0
    %1321 = vmatpush1.msra.mxu0 0.0
    %1322 = vmatprep.subr.mxu0 0.0
    %1323 = vmatpush1.msra.mxu0 0.0
    %1324 = vmatprep.subr.mxu0 0.0
    %1325 = vmatpush1.msra.mxu0 0.0
    %1326 = vmatprep.subr.mxu0 0.0
    %1327 = vmatpush1.msra.mxu0 0.0
    %1328 = vmatprep.subr.mxu0 0.0
    %1329 = vmatpush1.msra.mxu0 0.0
    %1330 = vmatprep.subr.mxu0 0.0
    %1331 = vmatpush1.msra.mxu0 0.0
    %1332 = vmatprep.subr.mxu0 0.0
    %1333 = vmatpush1.msra.mxu0 0.0
    %1334 = vmatprep.subr.mxu0 0.0
    %1335 = vmatpush1.msra.mxu0 0.0
    %1336 = vmatprep.subr.mxu0 0.0
    %1337 = vmatpush1.msra.mxu0 0.0
    %1338 = vmatprep.subr.mxu0 0.0
    %1339 = vmatpush1.msra.mxu0 0.0
    %1340 = vmatprep.subr.mxu0 0.0
    %1341 = vmatpush1.msra.mxu0 0.0
    %1342 = vmatprep.subr.mxu0 0.0
    %1343 = vmatpush1.msra.mxu0 0.0
    %1344 = vmatprep.subr.mxu0 0.0
    %1345 = vmatpush1.msra.mxu0 0.0
    %1346 = vmatprep.subr.mxu0 0.0
    %1347 = vmatpush1.msra.mxu0 0.0
    %1348 = vmatprep.subr.mxu0 0.0
    %1349 = vmatpush1.msra.mxu0 0.0
    %1350 = vmatprep.subr.mxu0 0.0
    %1351 = vmatpush1.msra.mxu0 0.0
    %1352 = vmatprep.subr.mxu0 0.0
    %1353 = vmatpush1.msra.mxu0 0.0
    %1354 = vmatprep.subr.mxu0 0.0
    %1355 = vmatpush1.msra.mxu0 0.0
    %1356 = vmatprep.subr.mxu0 0.0
    %1357 = vmatpush1.msra.mxu0 0.0
    %1358 = vmatprep.mubr.f32.mxu0 0.0
    %1359 = vmatmul.mubr.f32.gmra.mrb[0].mxu0 %v1292
    %v1360 = vpop.f32.mrb[0].mxu0
    %v1361 = vadd.f32 0.0, %v1360
    %v1362 = vpop.f32.mrb[0].mxu0
    %1363 = vdwg.mxu0
    %1365 = vrot.lane.b32.xlu0 %v1361, 8
    %v1366 = vpop.permute.xlu0 %1365
    %1368 = vst.msk [vmem:[#allocation2 + $0x8] sm:$0xff] %vm1045, %v1366
    %1369 = vrot.lane.b32.xlu0 %v166, 48
    %v1370 = vpop.permute.xlu0 %1369
    %v1373 = vsel %vm172, %v885, 0
    %1375 = vmatprep.subr.mxu0 0.0
    %1376 = vmatpush1.msra.mxu0 %v1370
    %1377 = vmatprep.subr.mxu0 0.0
    %1378 = vmatpush1.msra.mxu0 0.0
    %1379 = vmatprep.subr.mxu0 0.0
    %1380 = vmatpush1.msra.mxu0 0.0
    %1381 = vmatprep.subr.mxu0 0.0
    %1382 = vmatpush1.msra.mxu0 0.0
    %1383 = vmatprep.subr.mxu0 0.0
    %1384 = vmatpush1.msra.mxu0 0.0
    %1385 = vmatprep.subr.mxu0 0.0
    %1386 = vmatpush1.msra.mxu0 0.0
    %1387 = vmatprep.subr.mxu0 0.0
    %1388 = vmatpush1.msra.mxu0 0.0
    %1389 = vmatprep.subr.mxu0 0.0
    %1390 = vmatpush1.msra.mxu0 0.0
    %1391 = vmatprep.subr.mxu0 0.0
    %1392 = vmatpush1.msra.mxu0 0.0
    %1393 = vmatprep.subr.mxu0 0.0
    %1394 = vmatpush1.msra.mxu0 0.0
    %1395 = vmatprep.subr.mxu0 0.0
    %1396 = vmatpush1.msra.mxu0 0.0
    %1397 = vmatprep.subr.mxu0 0.0
    %1398 = vmatpush1.msra.mxu0 0.0
    %1399 = vmatprep.subr.mxu0 0.0
    %1400 = vmatpush1.msra.mxu0 0.0
    %1401 = vmatprep.subr.mxu0 0.0
    %1402 = vmatpush1.msra.mxu0 0.0
    %1403 = vmatprep.subr.mxu0 0.0
    %1404 = vmatpush1.msra.mxu0 0.0
    %1405 = vmatprep.subr.mxu0 0.0
    %1406 = vmatpush1.msra.mxu0 0.0
    %1407 = vmatprep.subr.mxu0 0.0
    %1408 = vmatpush1.msra.mxu0 0.0
    %1409 = vmatprep.subr.mxu0 0.0
    %1410 = vmatpush1.msra.mxu0 0.0
    %1411 = vmatprep.subr.mxu0 0.0
    %1412 = vmatpush1.msra.mxu0 0.0
    %1413 = vmatprep.subr.mxu0 0.0
    %1414 = vmatpush1.msra.mxu0 0.0
    %1415 = vmatprep.subr.mxu0 0.0
    %1416 = vmatpush1.msra.mxu0 0.0
    %1417 = vmatprep.subr.mxu0 0.0
    %1418 = vmatpush1.msra.mxu0 0.0
    %1419 = vmatprep.subr.mxu0 0.0
    %1420 = vmatpush1.msra.mxu0 0.0
    %1421 = vmatprep.subr.mxu0 0.0
    %1422 = vmatpush1.msra.mxu0 0.0
    %1423 = vmatprep.subr.mxu0 0.0
    %1424 = vmatpush1.msra.mxu0 0.0
    %1425 = vmatprep.subr.mxu0 0.0
    %1426 = vmatpush1.msra.mxu0 0.0
    %1427 = vmatprep.subr.mxu0 0.0
    %1428 = vmatpush1.msra.mxu0 0.0
    %1429 = vmatprep.subr.mxu0 0.0
    %1430 = vmatpush1.msra.mxu0 0.0
    %1431 = vmatprep.subr.mxu0 0.0
    %1432 = vmatpush1.msra.mxu0 0.0
    %1433 = vmatprep.subr.mxu0 0.0
    %1434 = vmatpush1.msra.mxu0 0.0
    %1435 = vmatprep.subr.mxu0 0.0
    %1436 = vmatpush1.msra.mxu0 0.0
    %1437 = vmatprep.subr.mxu0 0.0
    %1438 = vmatpush1.msra.mxu0 0.0
    %1439 = vmatprep.mubr.f32.mxu0 0.0
    %1440 = vmatmul.mubr.f32.gmra.mrb[0].mxu0 %v1373
    %v1441 = vpop.f32.mrb[0].mxu0
    %v1442 = vadd.f32 0.0, %v1441
    %v1443 = vpop.f32.mrb[0].mxu0
    %1444 = vdwg.mxu0
    %1446 = vrot.lane.b32.xlu0 %v1442, 16
    %v1447 = vpop.permute.xlu0 %1446
    %1449 = vst.msk [vmem:[#allocation2 + $0x8] sm:$0xff] %vm1127, %v1447
    %1450 = vrot.lane.b32.xlu0 %v166, 40
    %v1451 = vpop.permute.xlu0 %1450
    %v1454 = vsel %vm172, %v887, 0
    %1456 = vmatprep.subr.mxu0 0.0
    %1457 = vmatpush1.msra.mxu0 %v1451
    %1458 = vmatprep.subr.mxu0 0.0
    %1459 = vmatpush1.msra.mxu0 0.0
    %1460 = vmatprep.subr.mxu0 0.0
    %1461 = vmatpush1.msra.mxu0 0.0
    %1462 = vmatprep.subr.mxu0 0.0
    %1463 = vmatpush1.msra.mxu0 0.0
    %1464 = vmatprep.subr.mxu0 0.0
    %1465 = vmatpush1.msra.mxu0 0.0
    %1466 = vmatprep.subr.mxu0 0.0
    %1467 = vmatpush1.msra.mxu0 0.0
    %1468 = vmatprep.subr.mxu0 0.0
    %1469 = vmatpush1.msra.mxu0 0.0
    %1470 = vmatprep.subr.mxu0 0.0
    %1471 = vmatpush1.msra.mxu0 0.0
    %1472 = vmatprep.subr.mxu0 0.0
    %1473 = vmatpush1.msra.mxu0 0.0
    %1474 = vmatprep.subr.mxu0 0.0
    %1475 = vmatpush1.msra.mxu0 0.0
    %1476 = vmatprep.subr.mxu0 0.0
    %1477 = vmatpush1.msra.mxu0 0.0
    %1478 = vmatprep.subr.mxu0 0.0
    %1479 = vmatpush1.msra.mxu0 0.0
    %1480 = vmatprep.subr.mxu0 0.0
    %1481 = vmatpush1.msra.mxu0 0.0
    %1482 = vmatprep.subr.mxu0 0.0
    %1483 = vmatpush1.msra.mxu0 0.0
    %1484 = vmatprep.subr.mxu0 0.0
    %1485 = vmatpush1.msra.mxu0 0.0
    %1486 = vmatprep.subr.mxu0 0.0
    %1487 = vmatpush1.msra.mxu0 0.0
    %1488 = vmatprep.subr.mxu0 0.0
    %1489 = vmatpush1.msra.mxu0 0.0
    %1490 = vmatprep.subr.mxu0 0.0
    %1491 = vmatpush1.msra.mxu0 0.0
    %1492 = vmatprep.subr.mxu0 0.0
    %1493 = vmatpush1.msra.mxu0 0.0
    %1494 = vmatprep.subr.mxu0 0.0
    %1495 = vmatpush1.msra.mxu0 0.0
    %1496 = vmatprep.subr.mxu0 0.0
    %1497 = vmatpush1.msra.mxu0 0.0
    %1498 = vmatprep.subr.mxu0 0.0
    %1499 = vmatpush1.msra.mxu0 0.0
    %1500 = vmatprep.subr.mxu0 0.0
    %1501 = vmatpush1.msra.mxu0 0.0
    %1502 = vmatprep.subr.mxu0 0.0
    %1503 = vmatpush1.msra.mxu0 0.0
    %1504 = vmatprep.subr.mxu0 0.0
    %1505 = vmatpush1.msra.mxu0 0.0
    %1506 = vmatprep.subr.mxu0 0.0
    %1507 = vmatpush1.msra.mxu0 0.0
    %1508 = vmatprep.subr.mxu0 0.0
    %1509 = vmatpush1.msra.mxu0 0.0
    %1510 = vmatprep.subr.mxu0 0.0
    %1511 = vmatpush1.msra.mxu0 0.0
    %1512 = vmatprep.subr.mxu0 0.0
    %1513 = vmatpush1.msra.mxu0 0.0
    %1514 = vmatprep.subr.mxu0 0.0
    %1515 = vmatpush1.msra.mxu0 0.0
    %1516 = vmatprep.subr.mxu0 0.0
    %1517 = vmatpush1.msra.mxu0 0.0
    %1518 = vmatprep.subr.mxu0 0.0
    %1519 = vmatpush1.msra.mxu0 0.0
    %1520 = vmatprep.mubr.f32.mxu0 0.0
    %1521 = vmatmul.mubr.f32.gmra.mrb[0].mxu0 %v1454
    %v1522 = vpop.f32.mrb[0].mxu0
    %v1523 = vadd.f32 0.0, %v1522
    %v1524 = vpop.f32.mrb[0].mxu0
    %1525 = vdwg.mxu0
    %1527 = vrot.lane.b32.xlu0 %v1523, 24
    %v1528 = vpop.permute.xlu0 %1527
    %1530 = vst.msk [vmem:[#allocation2 + $0x8] sm:$0xff] %vm1209, %v1528
    %v1531 = vld [vmem:[#allocation2] sm:$0xff]
    %v1532 = vld [vmem:[#allocation2 + $0x8] sm:$0xff]
    %v1533 = vlaneseq
    %v1534 = vshrl.u32 %v1533, 7
    %v1535 = vsub.s32 1, %v1534
    %v1536 = vrot.slane %v83, %v1535
    %1541 = vrot.lane.b32.xlu0 %v75, 32
    %v1542 = vpop.permute.xlu0 %1541
    %1543 = vrot.lane.b32.xlu0 %v77, 32
    %v1544 = vpop.permute.xlu0 %1543
    %1545 = vrot.lane.b32.xlu0 %v79, 32
    %v1546 = vpop.permute.xlu0 %1545
    %1547 = vrot.lane.b32.xlu0 %v81, 32
    %v1548 = vpop.permute.xlu0 %1547
    %v1554 = vsel %vm35, %v1531, 0
    %v1557 = vsel %vm35, %v1532, 0
    %1559 = vmatprep.subr.mxu0 0.0
    %1560 = vmatpush1.msra.mxu0 %v1542
    %1561 = vmatprep.subr.mxu0 0.0
    %1562 = vmatpush1.msra.mxu0 %v1544
    %1563 = vmatprep.subr.mxu0 0.0
    %1564 = vmatpush1.msra.mxu0 %v1546
    %1565 = vmatprep.subr.mxu0 0.0
    %1566 = vmatpush1.msra.mxu0 %v1548
    %1567 = vmatprep.subr.mxu0 0.0
    %1568 = vmatpush1.msra.mxu0 0.0
    %1569 = vmatprep.subr.mxu0 0.0
    %1570 = vmatpush1.msra.mxu0 0.0
    %1571 = vmatprep.subr.mxu0 0.0
    %1572 = vmatpush1.msra.mxu0 0.0
    %1573 = vmatprep.subr.mxu0 0.0
    %1574 = vmatpush1.msra.mxu0 0.0
    %1575 = vmatprep.subr.mxu0 0.0
    %1576 = vmatpush1.msra.mxu0 0.0
    %1577 = vmatprep.subr.mxu0 0.0
    %1578 = vmatpush1.msra.mxu0 0.0
    %1579 = vmatprep.subr.mxu0 0.0
    %1580 = vmatpush1.msra.mxu0 0.0
    %1581 = vmatprep.subr.mxu0 0.0
    %1582 = vmatpush1.msra.mxu0 0.0
    %1583 = vmatprep.subr.mxu0 0.0
    %1584 = vmatpush1.msra.mxu0 0.0
    %1585 = vmatprep.subr.mxu0 0.0
    %1586 = vmatpush1.msra.mxu0 0.0
    %1587 = vmatprep.subr.mxu0 0.0
    %1588 = vmatpush1.msra.mxu0 0.0
    %1589 = vmatprep.subr.mxu0 0.0
    %1590 = vmatpush1.msra.mxu0 0.0
    %1591 = vmatprep.subr.mxu0 0.0
    %1592 = vmatpush1.msra.mxu0 0.0
    %1593 = vmatprep.subr.mxu0 0.0
    %1594 = vmatpush1.msra.mxu0 0.0
    %1595 = vmatprep.subr.mxu0 0.0
    %1596 = vmatpush1.msra.mxu0 0.0
    %1597 = vmatprep.subr.mxu0 0.0
    %1598 = vmatpush1.msra.mxu0 0.0
    %1599 = vmatprep.subr.mxu0 0.0
    %1600 = vmatpush1.msra.mxu0 0.0
    %1601 = vmatprep.subr.mxu0 0.0
    %1602 = vmatpush1.msra.mxu0 0.0
    %1603 = vmatprep.subr.mxu0 0.0
    %1604 = vmatpush1.msra.mxu0 0.0
    %1605 = vmatprep.subr.mxu0 0.0
    %1606 = vmatpush1.msra.mxu0 0.0
    %1607 = vmatprep.subr.mxu0 0.0
    %1608 = vmatpush1.msra.mxu0 0.0
    %1609 = vmatprep.subr.mxu0 0.0
    %1610 = vmatpush1.msra.mxu0 0.0
    %1611 = vmatprep.subr.mxu0 0.0
    %1612 = vmatpush1.msra.mxu0 0.0
    %1613 = vmatprep.subr.mxu0 0.0
    %1614 = vmatpush1.msra.mxu0 0.0
    %1615 = vmatprep.subr.mxu0 0.0
    %1616 = vmatpush1.msra.mxu0 0.0
    %1617 = vmatprep.subr.mxu0 0.0
    %1618 = vmatpush1.msra.mxu0 0.0
    %1619 = vmatprep.subr.mxu0 0.0
    %1620 = vmatpush1.msra.mxu0 0.0
    %1621 = vmatprep.subr.mxu0 0.0
    %1622 = vmatpush1.msra.mxu0 0.0
    %1623 = vmatprep.mubr.f32.mxu0 0.0
    %1624 = vmatmul.mubr.f32.gmra.mrb[0].mxu0 %v1554
    %v1625 = vpop.f32.mrb[0].mxu0
    %v1626 = vadd.f32 %v1536, %v1625
    %v1627 = vpop.f32.mrb[0].mxu0
    %1628 = vmatprep.mubr.f32.mxu0 0.0
    %1629 = vmatmul.mubr.f32.gmra.mrb[0].mxu0 %v1557
    %v1630 = vpop.f32.mrb[0].mxu0
    %v1631 = vadd.f32 %v1536, %v1630
    %v1632 = vpop.f32.mrb[0].mxu0
    %1633 = vdwg.mxu0
    %v1634 = vadd.f32 %v1626, %v73
    %v1635 = vadd.f32 %v1631, %v74
    %v1636 = vsel %vm35, %v1634, 0.0
    %1637 = vadd.xlane.f32.xlu0 %v1636
    %v1638 = vpop.xlane.xlu0 %1637
    %v1639 = vsel %vm35, %v1635, 0.0
    %1640 = vadd.xlane.f32.xlu0 %v1639
    %v1641 = vpop.xlane.xlu0 %1640
    %v1642 = vmul.f32 %v1638, %v42
    %v1643 = vmul.f32 %v1641, %v42
    %v1644 = vsub.f32 %v1634, %v1642
    %v1645 = vsub.f32 %v1635, %v1643
    %v1646 = vmul.f32 %v1644, %v1644
    %v1647 = vmul.f32 %v1645, %v1645
    %v1648 = vsel %vm35, %v1646, 0.0
    %1649 = vadd.xlane.f32.xlu0 %v1648
    %v1650 = vpop.xlane.xlu0 %1649
    %v1651 = vsel %vm35, %v1647, 0.0
    %1652 = vadd.xlane.f32.xlu0 %v1651
    %v1653 = vpop.xlane.xlu0 %1652
    %v1654 = vmul.f32 %v1650, %v42
    %v1655 = vmul.f32 %v1653, %v42
    %v1656 = vadd.f32 %v1654, 1e-05
    %v1657 = vadd.f32 %v1655, 1e-05
    %v1658 = vrsqrt.pop %v1656
    %v1659 = vrsqrt.pop %v1657
    %v1660 = vmul.f32 %v1644, %v1658
    %v1661 = vmul.f32 %v1645, %v1659
    %v1662 = vlaneseq
    %v1663 = vshrl.u32 %v1662, 7
    %v1664 = vsub.s32 2, %v1663
    %v1665 = vrot.slane %v83, %v1664
    %v1666 = vmul.f32 %v1660, %v1665
    %v1667 = vmul.f32 %v1661, %v1665
    %v1668 = vlaneseq
    %v1669 = vshrl.u32 %v1668, 7
    %v1670 = vsub.s32 3, %v1669
    %v1671 = vrot.slane %v83, %v1670
    %v1672 = vadd.f32 %v1666, %v1671
    %v1673 = vadd.f32 %v1667, %v1671
    %v1674 = vlaneseq
    %v1675 = vshrl.u32 %v1674, 7
    %v1676 = vsub.s32 4, %v1675
    %v1677 = vrot.slane %v83, %v1676
    %v1679 = vsel %vm35, %v1672, 0
    %v1682 = vsel %vm35, %v1673, 0
    %1684 = vmatprep.subr.mxu0 0.0
    %1685 = vmatpush1.msra.mxu0 %v76
    %1686 = vmatprep.subr.mxu0 0.0
    %1687 = vmatpush1.msra.mxu0 %v78
    %1688 = vmatprep.subr.mxu0 0.0
    %1689 = vmatpush1.msra.mxu0 %v80
    %1690 = vmatprep.subr.mxu0 0.0
    %1691 = vmatpush1.msra.mxu0 %v82
    %1692 = vmatprep.subr.mxu0 0.0
    %1693 = vmatpush1.msra.mxu0 0.0
    %1694 = vmatprep.subr.mxu0 0.0
    %1695 = vmatpush1.msra.mxu0 0.0
    %1696 = vmatprep.subr.mxu0 0.0
    %1697 = vmatpush1.msra.mxu0 0.0
    %1698 = vmatprep.subr.mxu0 0.0
    %1699 = vmatpush1.msra.mxu0 0.0
    %1700 = vmatprep.subr.mxu0 0.0
    %1701 = vmatpush1.msra.mxu0 0.0
    %1702 = vmatprep.subr.mxu0 0.0
    %1703 = vmatpush1.msra.mxu0 0.0
    %1704 = vmatprep.subr.mxu0 0.0
    %1705 = vmatpush1.msra.mxu0 0.0
    %1706 = vmatprep.subr.mxu0 0.0
    %1707 = vmatpush1.msra.mxu0 0.0
    %1708 = vmatprep.subr.mxu0 0.0
    %1709 = vmatpush1.msra.mxu0 0.0
    %1710 = vmatprep.subr.mxu0 0.0
    %1711 = vmatpush1.msra.mxu0 0.0
    %1712 = vmatprep.subr.mxu0 0.0
    %1713 = vmatpush1.msra.mxu0 0.0
    %1714 = vmatprep.subr.mxu0 0.0
    %1715 = vmatpush1.msra.mxu0 0.0
    %1716 = vmatprep.subr.mxu0 0.0
    %1717 = vmatpush1.msra.mxu0 0.0
    %1718 = vmatprep.subr.mxu0 0.0
    %1719 = vmatpush1.msra.mxu0 0.0
    %1720 = vmatprep.subr.mxu0 0.0
    %1721 = vmatpush1.msra.mxu0 0.0
    %1722 = vmatprep.subr.mxu0 0.0
    %1723 = vmatpush1.msra.mxu0 0.0
    %1724 = vmatprep.subr.mxu0 0.0
    %1725 = vmatpush1.msra.mxu0 0.0
    %1726 = vmatprep.subr.mxu0 0.0
    %1727 = vmatpush1.msra.mxu0 0.0
    %1728 = vmatprep.subr.mxu0 0.0
    %1729 = vmatpush1.msra.mxu0 0.0
    %1730 = vmatprep.subr.mxu0 0.0
    %1731 = vmatpush1.msra.mxu0 0.0
    %1732 = vmatprep.subr.mxu0 0.0
    %1733 = vmatpush1.msra.mxu0 0.0
    %1734 = vmatprep.subr.mxu0 0.0
    %1735 = vmatpush1.msra.mxu0 0.0
    %1736 = vmatprep.subr.mxu0 0.0
    %1737 = vmatpush1.msra.mxu0 0.0
    %1738 = vmatprep.subr.mxu0 0.0
    %1739 = vmatpush1.msra.mxu0 0.0
    %1740 = vmatprep.subr.mxu0 0.0
    %1741 = vmatpush1.msra.mxu0 0.0
    %1742 = vmatprep.subr.mxu0 0.0
    %1743 = vmatpush1.msra.mxu0 0.0
    %1744 = vmatprep.subr.mxu0 0.0
    %1745 = vmatpush1.msra.mxu0 0.0
    %1746 = vmatprep.subr.mxu0 0.0
    %1747 = vmatpush1.msra.mxu0 0.0
    %1748 = vmatprep.mubr.f32.mxu0 0.0
    %1749 = vmatmul.mubr.f32.gmra.mrb[0].mxu0 %v1679
    %v1750 = vpop.f32.mrb[0].mxu0
    %v1751 = vadd.f32 %v1677, %v1750
    %v1752 = vpop.f32.mrb[0].mxu0
    %1753 = vmatprep.mubr.f32.mxu0 0.0
    %1754 = vmatmul.mubr.f32.gmra.mrb[0].mxu0 %v1682
    %v1755 = vpop.f32.mrb[0].mxu0
    %v1756 = vadd.f32 %v1677, %v1755
    %v1757 = vpop.f32.mrb[0].mxu0
    %1758 = vdwg.mxu0
    %v1759 = vmul.f32 %v1751, 0.5
    %v1760 = vmul.f32 %v1756, 0.5
    %v1761 = vmul.f32 %v1751, 0.70710677
    %v1762 = vmul.f32 %v1756, 0.70710677
    %vm1763 = vcmp.lt.f32.partialorder %v1761, 0.0
    %vm1764 = vcmp.lt.f32.partialorder %v1762, 0.0
    %v1765 = vsel %vm1763, -1.0, 1.0
    %v1766 = vsel %vm1764, -1.0, 1.0
    %v1767 = vand.u32 2147483647, %v1761
    %v1768 = vand.u32 2147483647, %v1762
    %v1769 = vmul.f32 %v1767, 0.3275911
    %v1770 = vmul.f32 %v1768, 0.3275911
    %v1771 = vadd.f32 %v1769, 1.0
    %v1772 = vadd.f32 %v1770, 1.0
    %v1773 = vrcp.pop %v1771
    %v1774 = vmul.f32 1.0, %v1773
    %v1775 = vrcp.pop %v1772
    %v1776 = vmul.f32 1.0, %v1775
    %v1777 = vmul.f32 %v1774, 1.0614054
    %v1778 = vmul.f32 %v1776, 1.0614054
    %v1779 = vadd.f32 %v1777, -1.4531521
    %v1780 = vadd.f32 %v1778, -1.4531521
    %v1781 = vmul.f32 %v1779, %v1774
    %v1782 = vmul.f32 %v1780, %v1776
    %v1783 = vadd.f32 %v1781, 1.4214138
    %v1784 = vadd.f32 %v1782, 1.4214138
    %v1785 = vmul.f32 %v1783, %v1774
    %v1786 = vmul.f32 %v1784, %v1776
    %v1787 = vadd.f32 %v1785, -0.28449672
    %v1788 = vadd.f32 %v1786, -0.28449672
    %v1789 = vmul.f32 %v1787, %v1774
    %v1790 = vmul.f32 %v1788, %v1776
    %v1791 = vadd.f32 %v1789, 0.2548296
    %v1792 = vadd.f32 %v1790, 0.2548296
    %v1793 = vmul.f32 %v1791, %v1774
    %v1794 = vmul.f32 %v1792, %v1776
    %v1795 = vsub.f32 0.0, %v1767
    %v1796 = vsub.f32 0.0, %v1768
    %v1797 = vmul.f32 %v1795, %v1767
    %v1798 = vmul.f32 %v1796, %v1768
    %v1799 = vmul.f32 %v1797, 1.442695
    %v1800 = vpow.pop %v1799
    %v1801 = vmul.f32 %v1798, 1.442695
    %v1802 = vpow.pop %v1801
    %v1803 = vmul.f32 %v1793, %v1800
    %v1804 = vmul.f32 %v1794, %v1802
    %v1805 = vsub.f32 1.0, %v1803
    %v1806 = vsub.f32 1.0, %v1804
    %v1807 = vmul.f32 %v1765, %v1805
    %v1808 = vmul.f32 %v1766, %v1806
    %v1809 = vadd.f32 %v1807, 1.0
    %v1810 = vadd.f32 %v1808, 1.0
    %v1811 = vmul.f32 %v1759, %v1809
    %v1812 = vmul.f32 %v1760, %v1810
    %v1813 = vlaneseq
    %v1814 = vshrl.u32 %v1813, 7
    %v1815 = vsub.s32 5, %v1814
    %v1816 = vrot.slane %v83, %v1815
    %1821 = vrot.lane.b32.xlu0 %v76, 64
    %v1822 = vpop.permute.xlu0 %1821
    %1823 = vrot.lane.b32.xlu0 %v78, 64
    %v1824 = vpop.permute.xlu0 %1823
    %1825 = vrot.lane.b32.xlu0 %v80, 64
    %v1826 = vpop.permute.xlu0 %1825
    %1827 = vrot.lane.b32.xlu0 %v82, 64
    %v1828 = vpop.permute.xlu0 %1827
    %vm1829 = vcmask 523264
    %v1831 = vsel %vm1829, %v1811, 0
    %v1834 = vsel %vm1829, %v1812, 0
    %v1836 = vsel %vm1829, %v1822, 0
    %v1838 = vsel %vm1829, %v1824, 0
    %v1840 = vsel %vm1829, %v1826, 0
    %v1842 = vsel %vm1829, %v1828, 0
    %1844 = vmatprep.subr.mxu0 0.0
    %1845 = vmatpush1.xpose.msra.mxu0 %v1836
    %1846 = vmatprep.subr.mxu0 0.0
    %1847 = vmatpush1.xpose.msra.mxu0 %v1838
    %1848 = vmatprep.subr.mxu0 0.0
    %1849 = vmatpush1.xpose.msra.mxu0 %v1840
    %1850 = vmatprep.subr.mxu0 0.0
    %1851 = vmatpush1.xpose.msra.mxu0 %v1842
    %1852 = vmatprep.subr.mxu0 0.0
    %1853 = vmatpush1.xpose.msra.mxu0 0.0
    %1854 = vmatprep.subr.mxu0 0.0
    %1855 = vmatpush1.xpose.msra.mxu0 0.0
    %1856 = vmatprep.subr.mxu0 0.0
    %1857 = vmatpush1.xpose.msra.mxu0 0.0
    %1858 = vmatprep.subr.mxu0 0.0
    %1859 = vmatpush1.xpose.msra.mxu0 0.0
    %1860 = vmatprep.subr.mxu0 0.0
    %1861 = vmatpush1.xpose.msra.mxu0 0.0
    %1862 = vmatprep.subr.mxu0 0.0
    %1863 = vmatpush1.xpose.msra.mxu0 0.0
    %1864 = vmatprep.subr.mxu0 0.0
    %1865 = vmatpush1.xpose.msra.mxu0 0.0
    %1866 = vmatprep.subr.mxu0 0.0
    %1867 = vmatpush1.xpose.msra.mxu0 0.0
    %1868 = vmatprep.subr.mxu0 0.0
    %1869 = vmatpush1.xpose.msra.mxu0 0.0
    %1870 = vmatprep.subr.mxu0 0.0
    %1871 = vmatpush1.xpose.msra.mxu0 0.0
    %1872 = vmatprep.subr.mxu0 0.0
    %1873 = vmatpush1.xpose.msra.mxu0 0.0
    %1874 = vmatprep.subr.mxu0 0.0
    %1875 = vmatpush1.xpose.msra.mxu0 0.0
    %1876 = vmatprep.subr.mxu0 0.0
    %1877 = vmatpush1.xpose.msra.mxu0 0.0
    %1878 = vmatprep.subr.mxu0 0.0
    %1879 = vmatpush1.xpose.msra.mxu0 0.0
    %1880 = vmatprep.subr.mxu0 0.0
    %1881 = vmatpush1.xpose.msra.mxu0 0.0
    %1882 = vmatprep.subr.mxu0 0.0
    %1883 = vmatpush1.xpose.msra.mxu0 0.0
    %1884 = vmatprep.subr.mxu0 0.0
    %1885 = vmatpush1.xpose.msra.mxu0 0.0
    %1886 = vmatprep.subr.mxu0 0.0
    %1887 = vmatpush1.xpose.msra.mxu0 0.0
    %1888 = vmatprep.subr.mxu0 0.0
    %1889 = vmatpush1.xpose.msra.mxu0 0.0
    %1890 = vmatprep.subr.mxu0 0.0
    %1891 = vmatpush1.xpose.msra.mxu0 0.0
    %1892 = vmatprep.subr.mxu0 0.0
    %1893 = vmatpush1.xpose.msra.mxu0 0.0
    %1894 = vmatprep.subr.mxu0 0.0
    %1895 = vmatpush1.xpose.msra.mxu0 0.0
    %1896 = vmatprep.subr.mxu0 0.0
    %1897 = vmatpush1.xpose.msra.mxu0 0.0
    %1898 = vmatprep.subr.mxu0 0.0
    %1899 = vmatpush1.xpose.msra.mxu0 0.0
    %1900 = vmatprep.subr.mxu0 0.0
    %1901 = vmatpush1.xpose.msra.mxu0 0.0
    %1902 = vmatprep.subr.mxu0 0.0
    %1903 = vmatpush1.xpose.msra.mxu0 0.0
    %1904 = vmatprep.subr.mxu0 0.0
    %1905 = vmatpush1.xpose.msra.mxu0 0.0
    %1906 = vmatprep.subr.mxu0 0.0
    %1907 = vmatpush1.xpose.msra.mxu0 0.0
    %1908 = vmatprep.mubr.f32.mxu0 0.0
    %1909 = vmatmul.mubr.f32.gmra.mrb[0].mxu0 %v1831
    %v1910 = vpop.f32.mrb[0].mxu0
    %v1911 = vadd.f32 %v1816, %v1910
    %v1912 = vpop.f32.mrb[0].mxu0
    %1913 = vmatprep.mubr.f32.mxu0 0.0
    %1914 = vmatmul.mubr.f32.gmra.mrb[0].mxu0 %v1834
    %v1915 = vpop.f32.mrb[0].mxu0
    %v1916 = vadd.f32 %v1816, %v1915
    %v1917 = vpop.f32.mrb[0].mxu0
    %1918 = vdwg.mxu0
    %v1919 = vadd.f32 %v1911, %v1672
    %v1920 = vadd.f32 %v1916, %v1673
    %v1921 = vsel %vm35, %v1919, 0.0
    %1922 = vadd.xlane.f32.xlu0 %v1921
    %v1923 = vpop.xlane.xlu0 %1922
    %v1924 = vsel %vm35, %v1920, 0.0
    %1925 = vadd.xlane.f32.xlu0 %v1924
    %v1926 = vpop.xlane.xlu0 %1925
    %v1927 = vmul.f32 %v1923, %v42
    %v1928 = vmul.f32 %v1926, %v42
    %v1929 = vsub.f32 %v1919, %v1927
    %v1930 = vsub.f32 %v1920, %v1928
    %v1931 = vmul.f32 %v1929, %v1929
    %v1932 = vmul.f32 %v1930, %v1930
    %v1933 = vsel %vm35, %v1931, 0.0
    %1934 = vadd.xlane.f32.xlu0 %v1933
    %v1935 = vpop.xlane.xlu0 %1934
    %v1936 = vsel %vm35, %v1932, 0.0
    %1937 = vadd.xlane.f32.xlu0 %v1936
    %v1938 = vpop.xlane.xlu0 %1937
    %v1939 = vmul.f32 %v1935, %v42
    %v1940 = vmul.f32 %v1938, %v42
    %v1941 = vadd.f32 %v1939, 1e-05
    %v1942 = vadd.f32 %v1940, 1e-05
    %v1943 = vrsqrt.pop %v1941
    %v1944 = vrsqrt.pop %v1942
    %v1945 = vmul.f32 %v1929, %v1943
    %v1946 = vmul.f32 %v1930, %v1944
    %v1947 = vlaneseq
    %v1948 = vshrl.u32 %v1947, 7
    %v1949 = vsub.s32 6, %v1948
    %v1950 = vrot.slane %v83, %v1949
    %v1951 = vmul.f32 %v1945, %v1950
    %v1952 = vmul.f32 %v1946, %v1950
    %v1953 = vlaneseq
    %v1954 = vshrl.u32 %v1953, 7
    %v1955 = vsub.s32 7, %v1954
    %v1956 = vrot.slane %v83, %v1955
    %v1957 = vadd.f32 %v1951, %v1956
    %v1958 = vadd.f32 %v1952, %v1956
    %s1959 = scalar_lea.vmem %s2, 64
    %v1960 = vld [vmem:[%s1959] sm:$0xff]
    %v1961 = vld [vmem:[%s1959 + $0x8] sm:$0xff]
    %v1962 = vld [vmem:[%s1959 + $0x10] sm:$0xff]
    %v1963 = vld [vmem:[%s1959 + $0x18] sm:$0xff]
    %v1964 = vld [vmem:[%s1959 + $0x20] sm:$0xff]
    %v1965 = vld [vmem:[%s1959 + $0x28] sm:$0xff]
    %v1966 = vld [vmem:[%s1959 + $0x30] sm:$0xff]
    %v1967 = vld [vmem:[%s1959 + $0x38] sm:$0xff]
    %s1968 = scalar_lea.vmem %s3, 8
    %v1969 = vld [vmem:[%s1968] sm:$0xff]
    %v1970 = vlaneseq
    %v1971 = vshrl.u32 %v1970, 7
    %v1972 = vsub.s32 0, %v1971
    %v1973 = vrot.slane %v1969, %v1972
    %v1975 = vsel %vm35, %v1957, 0
    %v1978 = vsel %vm35, %v1958, 0
    %1980 = vmatprep.subr.mxu0 0.0
    %1981 = vmatpush1.msra.mxu0 %v1960
    %1982 = vmatprep.subr.mxu0 0.0
    %1983 = vmatpush1.msra.mxu0 %v1962
    %1984 = vmatprep.subr.mxu0 0.0
    %1985 = vmatpush1.msra.mxu0 %v1964
    %1986 = vmatprep.subr.mxu0 0.0
    %1987 = vmatpush1.msra.mxu0 %v1966
    %1988 = vmatprep.subr.mxu0 0.0
    %1989 = vmatpush1.msra.mxu0 0.0
    %1990 = vmatprep.subr.mxu0 0.0
    %1991 = vmatpush1.msra.mxu0 0.0
    %1992 = vmatprep.subr.mxu0 0.0
    %1993 = vmatpush1.msra.mxu0 0.0
    %1994 = vmatprep.subr.mxu0 0.0
    %1995 = vmatpush1.msra.mxu0 0.0
    %1996 = vmatprep.subr.mxu0 0.0
    %1997 = vmatpush1.msra.mxu0 0.0
    %1998 = vmatprep.subr.mxu0 0.0
    %1999 = vmatpush1.msra.mxu0 0.0
    %2000 = vmatprep.subr.mxu0 0.0
    %2001 = vmatpush1.msra.mxu0 0.0
    %2002 = vmatprep.subr.mxu0 0.0
    %2003 = vmatpush1.msra.mxu0 0.0
    %2004 = vmatprep.subr.mxu0 0.0
    %2005 = vmatpush1.msra.mxu0 0.0
    %2006 = vmatprep.subr.mxu0 0.0
    %2007 = vmatpush1.msra.mxu0 0.0
    %2008 = vmatprep.subr.mxu0 0.0
    %2009 = vmatpush1.msra.mxu0 0.0
    %2010 = vmatprep.subr.mxu0 0.0
    %2011 = vmatpush1.msra.mxu0 0.0
    %2012 = vmatprep.subr.mxu0 0.0
    %2013 = vmatpush1.msra.mxu0 0.0
    %2014 = vmatprep.subr.mxu0 0.0
    %2015 = vmatpush1.msra.mxu0 0.0
    %2016 = vmatprep.subr.mxu0 0.0
    %2017 = vmatpush1.msra.mxu0 0.0
    %2018 = vmatprep.subr.mxu0 0.0
    %2019 = vmatpush1.msra.mxu0 0.0
    %2020 = vmatprep.subr.mxu0 0.0
    %2021 = vmatpush1.msra.mxu0 0.0
    %2022 = vmatprep.subr.mxu0 0.0
    %2023 = vmatpush1.msra.mxu0 0.0
    %2024 = vmatprep.subr.mxu0 0.0
    %2025 = vmatpush1.msra.mxu0 0.0
    %2026 = vmatprep.subr.mxu0 0.0
    %2027 = vmatpush1.msra.mxu0 0.0
    %2028 = vmatprep.subr.mxu0 0.0
    %2029 = vmatpush1.msra.mxu0 0.0
    %2030 = vmatprep.subr.mxu0 0.0
    %2031 = vmatpush1.msra.mxu0 0.0
    %2032 = vmatprep.subr.mxu0 0.0
    %2033 = vmatpush1.msra.mxu0 0.0
    %2034 = vmatprep.subr.mxu0 0.0
    %2035 = vmatpush1.msra.mxu0 0.0
    %2036 = vmatprep.subr.mxu0 0.0
    %2037 = vmatpush1.msra.mxu0 0.0
    %2038 = vmatprep.subr.mxu0 0.0
    %2039 = vmatpush1.msra.mxu0 0.0
    %2040 = vmatprep.subr.mxu0 0.0
    %2041 = vmatpush1.msra.mxu0 0.0
    %2042 = vmatprep.subr.mxu0 0.0
    %2043 = vmatpush1.msra.mxu0 0.0
    %2044 = vmatprep.mubr.f32.mxu0 0.0
    %2045 = vmatmul.mubr.f32.gmra.mrb[0].mxu0 %v1975
    %v2046 = vpop.f32.mrb[0].mxu0
    %v2047 = vadd.f32 %v1973, %v2046
    %v2048 = vpop.f32.mrb[0].mxu0
    %2049 = vmatprep.mubr.f32.mxu0 0.0
    %2050 = vmatmul.mubr.f32.gmra.mrb[0].mxu0 %v1978
    %v2051 = vpop.f32.mrb[0].mxu0
    %v2052 = vadd.f32 %v1973, %v2051
    %v2053 = vpop.f32.mrb[0].mxu0
    %2054 = vdwg.mxu0
    %2056 = vrot.lane.b32.xlu0 %v2047, 96
    %v2057 = vpop.permute.xlu0 %2056
    %v2058 = vsel %vm172, %v2047, 0
    %v2060 = vsel %vm172, %v2057, 0
    %2062 = vmatprep.subr.mxu0 0.0
    %2063 = vmatpush1.xpose.msra.mxu0 %v2060
    %2064 = vmatprep.subr.mxu0 0.0
    %2065 = vmatpush1.xpose.msra.mxu0 0.0
    %2066 = vmatprep.subr.mxu0 0.0
    %2067 = vmatpush1.xpose.msra.mxu0 0.0
    %2068 = vmatprep.subr.mxu0 0.0
    %2069 = vmatpush1.xpose.msra.mxu0 0.0
    %2070 = vmatprep.subr.mxu0 0.0
    %2071 = vmatpush1.xpose.msra.mxu0 0.0
    %2072 = vmatprep.subr.mxu0 0.0
    %2073 = vmatpush1.xpose.msra.mxu0 0.0
    %2074 = vmatprep.subr.mxu0 0.0
    %2075 = vmatpush1.xpose.msra.mxu0 0.0
    %2076 = vmatprep.subr.mxu0 0.0
    %2077 = vmatpush1.xpose.msra.mxu0 0.0
    %2078 = vmatprep.subr.mxu0 0.0
    %2079 = vmatpush1.xpose.msra.mxu0 0.0
    %2080 = vmatprep.subr.mxu0 0.0
    %2081 = vmatpush1.xpose.msra.mxu0 0.0
    %2082 = vmatprep.subr.mxu0 0.0
    %2083 = vmatpush1.xpose.msra.mxu0 0.0
    %2084 = vmatprep.subr.mxu0 0.0
    %2085 = vmatpush1.xpose.msra.mxu0 0.0
    %2086 = vmatprep.subr.mxu0 0.0
    %2087 = vmatpush1.xpose.msra.mxu0 0.0
    %2088 = vmatprep.subr.mxu0 0.0
    %2089 = vmatpush1.xpose.msra.mxu0 0.0
    %2090 = vmatprep.subr.mxu0 0.0
    %2091 = vmatpush1.xpose.msra.mxu0 0.0
    %2092 = vmatprep.subr.mxu0 0.0
    %2093 = vmatpush1.xpose.msra.mxu0 0.0
    %2094 = vmatprep.subr.mxu0 0.0
    %2095 = vmatpush1.xpose.msra.mxu0 0.0
    %2096 = vmatprep.subr.mxu0 0.0
    %2097 = vmatpush1.xpose.msra.mxu0 0.0
    %2098 = vmatprep.subr.mxu0 0.0
    %2099 = vmatpush1.xpose.msra.mxu0 0.0
    %2100 = vmatprep.subr.mxu0 0.0
    %2101 = vmatpush1.xpose.msra.mxu0 0.0
    %2102 = vmatprep.subr.mxu0 0.0
    %2103 = vmatpush1.xpose.msra.mxu0 0.0
    %2104 = vmatprep.subr.mxu0 0.0
    %2105 = vmatpush1.xpose.msra.mxu0 0.0
    %2106 = vmatprep.subr.mxu0 0.0
    %2107 = vmatpush1.xpose.msra.mxu0 0.0
    %2108 = vmatprep.subr.mxu0 0.0
    %2109 = vmatpush1.xpose.msra.mxu0 0.0
    %2110 = vmatprep.subr.mxu0 0.0
    %2111 = vmatpush1.xpose.msra.mxu0 0.0
    %2112 = vmatprep.subr.mxu0 0.0
    %2113 = vmatpush1.xpose.msra.mxu0 0.0
    %2114 = vmatprep.subr.mxu0 0.0
    %2115 = vmatpush1.xpose.msra.mxu0 0.0
    %2116 = vmatprep.subr.mxu0 0.0
    %2117 = vmatpush1.xpose.msra.mxu0 0.0
    %2118 = vmatprep.subr.mxu0 0.0
    %2119 = vmatpush1.xpose.msra.mxu0 0.0
    %2120 = vmatprep.subr.mxu0 0.0
    %2121 = vmatpush1.xpose.msra.mxu0 0.0
    %2122 = vmatprep.subr.mxu0 0.0
    %2123 = vmatpush1.xpose.msra.mxu0 0.0
    %2124 = vmatprep.subr.mxu0 0.0
    %2125 = vmatpush1.xpose.msra.mxu0 0.0
    %2126 = vmatprep.mubr.f32.mxu0 0.0
    %2127 = vmatmul.mubr.f32.gmra.mrb[0].mxu0 %v2058
    %v2128 = vpop.f32.mrb[0].mxu0
    %v2129 = vadd.f32 0.0, %v2128
    %v2130 = vpop.f32.mrb[0].mxu0
    %2131 = vdwg.mxu0
    %2132 = vrot.lane.b32.xlu0 %v2047, 120
    %v2133 = vpop.permute.xlu0 %2132
    %2134 = vrot.lane.b32.xlu0 %v2047, 88
    %v2135 = vpop.permute.xlu0 %2134
    %v2136 = vsel %vm172, %v2133, 0
    %v2138 = vsel %vm172, %v2135, 0
    %2140 = vmatprep.subr.mxu0 0.0
    %2141 = vmatpush1.xpose.msra.mxu0 %v2138
    %2142 = vmatprep.subr.mxu0 0.0
    %2143 = vmatpush1.xpose.msra.mxu0 0.0
    %2144 = vmatprep.subr.mxu0 0.0
    %2145 = vmatpush1.xpose.msra.mxu0 0.0
    %2146 = vmatprep.subr.mxu0 0.0
    %2147 = vmatpush1.xpose.msra.mxu0 0.0
    %2148 = vmatprep.subr.mxu0 0.0
    %2149 = vmatpush1.xpose.msra.mxu0 0.0
    %2150 = vmatprep.subr.mxu0 0.0
    %2151 = vmatpush1.xpose.msra.mxu0 0.0
    %2152 = vmatprep.subr.mxu0 0.0
    %2153 = vmatpush1.xpose.msra.mxu0 0.0
    %2154 = vmatprep.subr.mxu0 0.0
    %2155 = vmatpush1.xpose.msra.mxu0 0.0
    %2156 = vmatprep.subr.mxu0 0.0
    %2157 = vmatpush1.xpose.msra.mxu0 0.0
    %2158 = vmatprep.subr.mxu0 0.0
    %2159 = vmatpush1.xpose.msra.mxu0 0.0
    %2160 = vmatprep.subr.mxu0 0.0
    %2161 = vmatpush1.xpose.msra.mxu0 0.0
    %2162 = vmatprep.subr.mxu0 0.0
    %2163 = vmatpush1.xpose.msra.mxu0 0.0
    %2164 = vmatprep.subr.mxu0 0.0
    %2165 = vmatpush1.xpose.msra.mxu0 0.0
    %2166 = vmatprep.subr.mxu0 0.0
    %2167 = vmatpush1.xpose.msra.mxu0 0.0
    %2168 = vmatprep.subr.mxu0 0.0
    %2169 = vmatpush1.xpose.msra.mxu0 0.0
    %2170 = vmatprep.subr.mxu0 0.0
    %2171 = vmatpush1.xpose.msra.mxu0 0.0
    %2172 = vmatprep.subr.mxu0 0.0
    %2173 = vmatpush1.xpose.msra.mxu0 0.0
    %2174 = vmatprep.subr.mxu0 0.0
    %2175 = vmatpush1.xpose.msra.mxu0 0.0
    %2176 = vmatprep.subr.mxu0 0.0
    %2177 = vmatpush1.xpose.msra.mxu0 0.0
    %2178 = vmatprep.subr.mxu0 0.0
    %2179 = vmatpush1.xpose.msra.mxu0 0.0
    %2180 = vmatprep.subr.mxu0 0.0
    %2181 = vmatpush1.xpose.msra.mxu0 0.0
    %2182 = vmatprep.subr.mxu0 0.0
    %2183 = vmatpush1.xpose.msra.mxu0 0.0
    %2184 = vmatprep.subr.mxu0 0.0
    %2185 = vmatpush1.xpose.msra.mxu0 0.0
    %2186 = vmatprep.subr.mxu0 0.0
    %2187 = vmatpush1.xpose.msra.mxu0 0.0
    %2188 = vmatprep.subr.mxu0 0.0
    %2189 = vmatpush1.xpose.msra.mxu0 0.0
    %2190 = vmatprep.subr.mxu0 0.0
    %2191 = vmatpush1.xpose.msra.mxu0 0.0
    %2192 = vmatprep.subr.mxu0 0.0
    %2193 = vmatpush1.xpose.msra.mxu0 0.0
    %2194 = vmatprep.subr.mxu0 0.0
    %2195 = vmatpush1.xpose.msra.mxu0 0.0
    %2196 = vmatprep.subr.mxu0 0.0
    %2197 = vmatpush1.xpose.msra.mxu0 0.0
    %2198 = vmatprep.subr.mxu0 0.0
    %2199 = vmatpush1.xpose.msra.mxu0 0.0
    %2200 = vmatprep.subr.mxu0 0.0
    %2201 = vmatpush1.xpose.msra.mxu0 0.0
    %2202 = vmatprep.subr.mxu0 0.0
    %2203 = vmatpush1.xpose.msra.mxu0 0.0
    %2204 = vmatprep.mubr.f32.mxu0 0.0
    %2205 = vmatmul.mubr.f32.gmra.mrb[0].mxu0 %v2136
    %v2206 = vpop.f32.mrb[0].mxu0
    %v2207 = vadd.f32 0.0, %v2206
    %v2208 = vpop.f32.mrb[0].mxu0
    %2209 = vdwg.mxu0
    %2210 = vrot.lane.b32.xlu0 %v2047, 112
    %v2211 = vpop.permute.xlu0 %2210
    %2212 = vrot.lane.b32.xlu0 %v2047, 80
    %v2213 = vpop.permute.xlu0 %2212
    %v2214 = vsel %vm172, %v2211, 0
    %v2216 = vsel %vm172, %v2213, 0
    %2218 = vmatprep.subr.mxu0 0.0
    %2219 = vmatpush1.xpose.msra.mxu0 %v2216
    %2220 = vmatprep.subr.mxu0 0.0
    %2221 = vmatpush1.xpose.msra.mxu0 0.0
    %2222 = vmatprep.subr.mxu0 0.0
    %2223 = vmatpush1.xpose.msra.mxu0 0.0
    %2224 = vmatprep.subr.mxu0 0.0
    %2225 = vmatpush1.xpose.msra.mxu0 0.0
    %2226 = vmatprep.subr.mxu0 0.0
    %2227 = vmatpush1.xpose.msra.mxu0 0.0
    %2228 = vmatprep.subr.mxu0 0.0
    %2229 = vmatpush1.xpose.msra.mxu0 0.0
    %2230 = vmatprep.subr.mxu0 0.0
    %2231 = vmatpush1.xpose.msra.mxu0 0.0
    %2232 = vmatprep.subr.mxu0 0.0
    %2233 = vmatpush1.xpose.msra.mxu0 0.0
    %2234 = vmatprep.subr.mxu0 0.0
    %2235 = vmatpush1.xpose.msra.mxu0 0.0
    %2236 = vmatprep.subr.mxu0 0.0
    %2237 = vmatpush1.xpose.msra.mxu0 0.0
    %2238 = vmatprep.subr.mxu0 0.0
    %2239 = vmatpush1.xpose.msra.mxu0 0.0
    %2240 = vmatprep.subr.mxu0 0.0
    %2241 = vmatpush1.xpose.msra.mxu0 0.0
    %2242 = vmatprep.subr.mxu0 0.0
    %2243 = vmatpush1.xpose.msra.mxu0 0.0
    %2244 = vmatprep.subr.mxu0 0.0
    %2245 = vmatpush1.xpose.msra.mxu0 0.0
    %2246 = vmatprep.subr.mxu0 0.0
    %2247 = vmatpush1.xpose.msra.mxu0 0.0
    %2248 = vmatprep.subr.mxu0 0.0
    %2249 = vmatpush1.xpose.msra.mxu0 0.0
    %2250 = vmatprep.subr.mxu0 0.0
    %2251 = vmatpush1.xpose.msra.mxu0 0.0
    %2252 = vmatprep.subr.mxu0 0.0
    %2253 = vmatpush1.xpose.msra.mxu0 0.0
    %2254 = vmatprep.subr.mxu0 0.0
    %2255 = vmatpush1.xpose.msra.mxu0 0.0
    %2256 = vmatprep.subr.mxu0 0.0
    %2257 = vmatpush1.xpose.msra.mxu0 0.0
    %2258 = vmatprep.subr.mxu0 0.0
    %2259 = vmatpush1.xpose.msra.mxu0 0.0
    %2260 = vmatprep.subr.mxu0 0.0
    %2261 = vmatpush1.xpose.msra.mxu0 0.0
    %2262 = vmatprep.subr.mxu0 0.0
    %2263 = vmatpush1.xpose.msra.mxu0 0.0
    %2264 = vmatprep.subr.mxu0 0.0
    %2265 = vmatpush1.xpose.msra.mxu0 0.0
    %2266 = vmatprep.subr.mxu0 0.0
    %2267 = vmatpush1.xpose.msra.mxu0 0.0
    %2268 = vmatprep.subr.mxu0 0.0
    %2269 = vmatpush1.xpose.msra.mxu0 0.0
    %2270 = vmatprep.subr.mxu0 0.0
    %2271 = vmatpush1.xpose.msra.mxu0 0.0
    %2272 = vmatprep.subr.mxu0 0.0
    %2273 = vmatpush1.xpose.msra.mxu0 0.0
    %2274 = vmatprep.subr.mxu0 0.0
    %2275 = vmatpush1.xpose.msra.mxu0 0.0
    %2276 = vmatprep.subr.mxu0 0.0
    %2277 = vmatpush1.xpose.msra.mxu0 0.0
    %2278 = vmatprep.subr.mxu0 0.0
    %2279 = vmatpush1.xpose.msra.mxu0 0.0
    %2280 = vmatprep.subr.mxu0 0.0
    %2281 = vmatpush1.xpose.msra.mxu0 0.0
    %2282 = vmatprep.mubr.f32.mxu0 0.0
    %2283 = vmatmul.mubr.f32.gmra.mrb[0].mxu0 %v2214
    %v2284 = vpop.f32.mrb[0].mxu0
    %v2285 = vadd.f32 0.0, %v2284
    %v2286 = vpop.f32.mrb[0].mxu0
    %2287 = vdwg.mxu0
    %2288 = vrot.lane.b32.xlu0 %v2047, 104
    %v2289 = vpop.permute.xlu0 %2288
    %2290 = vrot.lane.b32.xlu0 %v2047, 72
    %v2291 = vpop.permute.xlu0 %2290
    %v2292 = vsel %vm172, %v2289, 0
    %v2294 = vsel %vm172, %v2291, 0
    %2296 = vmatprep.subr.mxu0 0.0
    %2297 = vmatpush1.xpose.msra.mxu0 %v2294
    %2298 = vmatprep.subr.mxu0 0.0
    %2299 = vmatpush1.xpose.msra.mxu0 0.0
    %2300 = vmatprep.subr.mxu0 0.0
    %2301 = vmatpush1.xpose.msra.mxu0 0.0
    %2302 = vmatprep.subr.mxu0 0.0
    %2303 = vmatpush1.xpose.msra.mxu0 0.0
    %2304 = vmatprep.subr.mxu0 0.0
    %2305 = vmatpush1.xpose.msra.mxu0 0.0
    %2306 = vmatprep.subr.mxu0 0.0
    %2307 = vmatpush1.xpose.msra.mxu0 0.0
    %2308 = vmatprep.subr.mxu0 0.0
    %2309 = vmatpush1.xpose.msra.mxu0 0.0
    %2310 = vmatprep.subr.mxu0 0.0
    %2311 = vmatpush1.xpose.msra.mxu0 0.0
    %2312 = vmatprep.subr.mxu0 0.0
    %2313 = vmatpush1.xpose.msra.mxu0 0.0
    %2314 = vmatprep.subr.mxu0 0.0
    %2315 = vmatpush1.xpose.msra.mxu0 0.0
    %2316 = vmatprep.subr.mxu0 0.0
    %2317 = vmatpush1.xpose.msra.mxu0 0.0
    %2318 = vmatprep.subr.mxu0 0.0
    %2319 = vmatpush1.xpose.msra.mxu0 0.0
    %2320 = vmatprep.subr.mxu0 0.0
    %2321 = vmatpush1.xpose.msra.mxu0 0.0
    %2322 = vmatprep.subr.mxu0 0.0
    %2323 = vmatpush1.xpose.msra.mxu0 0.0
    %2324 = vmatprep.subr.mxu0 0.0
    %2325 = vmatpush1.xpose.msra.mxu0 0.0
    %2326 = vmatprep.subr.mxu0 0.0
    %2327 = vmatpush1.xpose.msra.mxu0 0.0
    %2328 = vmatprep.subr.mxu0 0.0
    %2329 = vmatpush1.xpose.msra.mxu0 0.0
    %2330 = vmatprep.subr.mxu0 0.0
    %2331 = vmatpush1.xpose.msra.mxu0 0.0
    %2332 = vmatprep.subr.mxu0 0.0
    %2333 = vmatpush1.xpose.msra.mxu0 0.0
    %2334 = vmatprep.subr.mxu0 0.0
    %2335 = vmatpush1.xpose.msra.mxu0 0.0
    %2336 = vmatprep.subr.mxu0 0.0
    %2337 = vmatpush1.xpose.msra.mxu0 0.0
    %2338 = vmatprep.subr.mxu0 0.0
    %2339 = vmatpush1.xpose.msra.mxu0 0.0
    %2340 = vmatprep.subr.mxu0 0.0
    %2341 = vmatpush1.xpose.msra.mxu0 0.0
    %2342 = vmatprep.subr.mxu0 0.0
    %2343 = vmatpush1.xpose.msra.mxu0 0.0
    %2344 = vmatprep.subr.mxu0 0.0
    %2345 = vmatpush1.xpose.msra.mxu0 0.0
    %2346 = vmatprep.subr.mxu0 0.0
    %2347 = vmatpush1.xpose.msra.mxu0 0.0
    %2348 = vmatprep.subr.mxu0 0.0
    %2349 = vmatpush1.xpose.msra.mxu0 0.0
    %2350 = vmatprep.subr.mxu0 0.0
    %2351 = vmatpush1.xpose.msra.mxu0 0.0
    %2352 = vmatprep.subr.mxu0 0.0
    %2353 = vmatpush1.xpose.msra.mxu0 0.0
    %2354 = vmatprep.subr.mxu0 0.0
    %2355 = vmatpush1.xpose.msra.mxu0 0.0
    %2356 = vmatprep.subr.mxu0 0.0
    %2357 = vmatpush1.xpose.msra.mxu0 0.0
    %2358 = vmatprep.subr.mxu0 0.0
    %2359 = vmatpush1.xpose.msra.mxu0 0.0
    %2360 = vmatprep.mubr.f32.mxu0 0.0
    %2361 = vmatmul.mubr.f32.gmra.mrb[0].mxu0 %v2292
    %v2362 = vpop.f32.mrb[0].mxu0
    %v2363 = vadd.f32 0.0, %v2362
    %v2364 = vpop.f32.mrb[0].mxu0
    %2365 = vdwg.mxu0
    %2367 = vrot.lane.b32.xlu0 %v2052, 96
    %v2368 = vpop.permute.xlu0 %2367
    %v2369 = vsel %vm172, %v2052, 0
    %v2371 = vsel %vm172, %v2368, 0
    %2373 = vmatprep.subr.mxu0 0.0
    %2374 = vmatpush1.xpose.msra.mxu0 %v2371
    %2375 = vmatprep.subr.mxu0 0.0
    %2376 = vmatpush1.xpose.msra.mxu0 0.0
    %2377 = vmatprep.subr.mxu0 0.0
    %2378 = vmatpush1.xpose.msra.mxu0 0.0
    %2379 = vmatprep.subr.mxu0 0.0
    %2380 = vmatpush1.xpose.msra.mxu0 0.0
    %2381 = vmatprep.subr.mxu0 0.0
    %2382 = vmatpush1.xpose.msra.mxu0 0.0
    %2383 = vmatprep.subr.mxu0 0.0
    %2384 = vmatpush1.xpose.msra.mxu0 0.0
    %2385 = vmatprep.subr.mxu0 0.0
    %2386 = vmatpush1.xpose.msra.mxu0 0.0
    %2387 = vmatprep.subr.mxu0 0.0
    %2388 = vmatpush1.xpose.msra.mxu0 0.0
    %2389 = vmatprep.subr.mxu0 0.0
    %2390 = vmatpush1.xpose.msra.mxu0 0.0
    %2391 = vmatprep.subr.mxu0 0.0
    %2392 = vmatpush1.xpose.msra.mxu0 0.0
    %2393 = vmatprep.subr.mxu0 0.0
    %2394 = vmatpush1.xpose.msra.mxu0 0.0
    %2395 = vmatprep.subr.mxu0 0.0
    %2396 = vmatpush1.xpose.msra.mxu0 0.0
    %2397 = vmatprep.subr.mxu0 0.0
    %2398 = vmatpush1.xpose.msra.mxu0 0.0
    %2399 = vmatprep.subr.mxu0 0.0
    %2400 = vmatpush1.xpose.msra.mxu0 0.0
    %2401 = vmatprep.subr.mxu0 0.0
    %2402 = vmatpush1.xpose.msra.mxu0 0.0
    %2403 = vmatprep.subr.mxu0 0.0
    %2404 = vmatpush1.xpose.msra.mxu0 0.0
    %2405 = vmatprep.subr.mxu0 0.0
    %2406 = vmatpush1.xpose.msra.mxu0 0.0
    %2407 = vmatprep.subr.mxu0 0.0
    %2408 = vmatpush1.xpose.msra.mxu0 0.0
    %2409 = vmatprep.subr.mxu0 0.0
    %2410 = vmatpush1.xpose.msra.mxu0 0.0
    %2411 = vmatprep.subr.mxu0 0.0
    %2412 = vmatpush1.xpose.msra.mxu0 0.0
    %2413 = vmatprep.subr.mxu0 0.0
    %2414 = vmatpush1.xpose.msra.mxu0 0.0
    %2415 = vmatprep.subr.mxu0 0.0
    %2416 = vmatpush1.xpose.msra.mxu0 0.0
    %2417 = vmatprep.subr.mxu0 0.0
    %2418 = vmatpush1.xpose.msra.mxu0 0.0
    %2419 = vmatprep.subr.mxu0 0.0
    %2420 = vmatpush1.xpose.msra.mxu0 0.0
    %2421 = vmatprep.subr.mxu0 0.0
    %2422 = vmatpush1.xpose.msra.mxu0 0.0
    %2423 = vmatprep.subr.mxu0 0.0
    %2424 = vmatpush1.xpose.msra.mxu0 0.0
    %2425 = vmatprep.subr.mxu0 0.0
    %2426 = vmatpush1.xpose.msra.mxu0 0.0
    %2427 = vmatprep.subr.mxu0 0.0
    %2428 = vmatpush1.xpose.msra.mxu0 0.0
    %2429 = vmatprep.subr.mxu0 0.0
    %2430 = vmatpush1.xpose.msra.mxu0 0.0
    %2431 = vmatprep.subr.mxu0 0.0
    %2432 = vmatpush1.xpose.msra.mxu0 0.0
    %2433 = vmatprep.subr.mxu0 0.0
    %2434 = vmatpush1.xpose.msra.mxu0 0.0
    %2435 = vmatprep.subr.mxu0 0.0
    %2436 = vmatpush1.xpose.msra.mxu0 0.0
    %2437 = vmatprep.mubr.f32.mxu0 0.0
    %2438 = vmatmul.mubr.f32.gmra.mrb[0].mxu0 %v2369
    %v2439 = vpop.f32.mrb[0].mxu0
    %v2440 = vadd.f32 0.0, %v2439
    %v2441 = vpop.f32.mrb[0].mxu0
    %2442 = vdwg.mxu0
    %2443 = vrot.lane.b32.xlu0 %v2052, 120
    %v2444 = vpop.permute.xlu0 %2443
    %2445 = vrot.lane.b32.xlu0 %v2052, 88
    %v2446 = vpop.permute.xlu0 %2445
    %v2447 = vsel %vm172, %v2444, 0
    %v2449 = vsel %vm172, %v2446, 0
    %2451 = vmatprep.subr.mxu0 0.0
    %2452 = vmatpush1.xpose.msra.mxu0 %v2449
    %2453 = vmatprep.subr.mxu0 0.0
    %2454 = vmatpush1.xpose.msra.mxu0 0.0
    %2455 = vmatprep.subr.mxu0 0.0
    %2456 = vmatpush1.xpose.msra.mxu0 0.0
    %2457 = vmatprep.subr.mxu0 0.0
    %2458 = vmatpush1.xpose.msra.mxu0 0.0
    %2459 = vmatprep.subr.mxu0 0.0
    %2460 = vmatpush1.xpose.msra.mxu0 0.0
    %2461 = vmatprep.subr.mxu0 0.0
    %2462 = vmatpush1.xpose.msra.mxu0 0.0
    %2463 = vmatprep.subr.mxu0 0.0
    %2464 = vmatpush1.xpose.msra.mxu0 0.0
    %2465 = vmatprep.subr.mxu0 0.0
    %2466 = vmatpush1.xpose.msra.mxu0 0.0
    %2467 = vmatprep.subr.mxu0 0.0
    %2468 = vmatpush1.xpose.msra.mxu0 0.0
    %2469 = vmatprep.subr.mxu0 0.0
    %2470 = vmatpush1.xpose.msra.mxu0 0.0
    %2471 = vmatprep.subr.mxu0 0.0
    %2472 = vmatpush1.xpose.msra.mxu0 0.0
    %2473 = vmatprep.subr.mxu0 0.0
    %2474 = vmatpush1.xpose.msra.mxu0 0.0
    %2475 = vmatprep.subr.mxu0 0.0
    %2476 = vmatpush1.xpose.msra.mxu0 0.0
    %2477 = vmatprep.subr.mxu0 0.0
    %2478 = vmatpush1.xpose.msra.mxu0 0.0
    %2479 = vmatprep.subr.mxu0 0.0
    %2480 = vmatpush1.xpose.msra.mxu0 0.0
    %2481 = vmatprep.subr.mxu0 0.0
    %2482 = vmatpush1.xpose.msra.mxu0 0.0
    %2483 = vmatprep.subr.mxu0 0.0
    %2484 = vmatpush1.xpose.msra.mxu0 0.0
    %2485 = vmatprep.subr.mxu0 0.0
    %2486 = vmatpush1.xpose.msra.mxu0 0.0
    %2487 = vmatprep.subr.mxu0 0.0
    %2488 = vmatpush1.xpose.msra.mxu0 0.0
    %2489 = vmatprep.subr.mxu0 0.0
    %2490 = vmatpush1.xpose.msra.mxu0 0.0
    %2491 = vmatprep.subr.mxu0 0.0
    %2492 = vmatpush1.xpose.msra.mxu0 0.0
    %2493 = vmatprep.subr.mxu0 0.0
    %2494 = vmatpush1.xpose.msra.mxu0 0.0
    %2495 = vmatprep.subr.mxu0 0.0
    %2496 = vmatpush1.xpose.msra.mxu0 0.0
    %2497 = vmatprep.subr.mxu0 0.0
    %2498 = vmatpush1.xpose.msra.mxu0 0.0
    %2499 = vmatprep.subr.mxu0 0.0
    %2500 = vmatpush1.xpose.msra.mxu0 0.0
    %2501 = vmatprep.subr.mxu0 0.0
    %2502 = vmatpush1.xpose.msra.mxu0 0.0
    %2503 = vmatprep.subr.mxu0 0.0
    %2504 = vmatpush1.xpose.msra.mxu0 0.0
    %2505 = vmatprep.subr.mxu0 0.0
    %2506 = vmatpush1.xpose.msra.mxu0 0.0
    %2507 = vmatprep.subr.mxu0 0.0
    %2508 = vmatpush1.xpose.msra.mxu0 0.0
    %2509 = vmatprep.subr.mxu0 0.0
    %2510 = vmatpush1.xpose.msra.mxu0 0.0
    %2511 = vmatprep.subr.mxu0 0.0
    %2512 = vmatpush1.xpose.msra.mxu0 0.0
    %2513 = vmatprep.subr.mxu0 0.0
    %2514 = vmatpush1.xpose.msra.mxu0 0.0
    %2515 = vmatprep.mubr.f32.mxu0 0.0
    %2516 = vmatmul.mubr.f32.gmra.mrb[0].mxu0 %v2447
    %v2517 = vpop.f32.mrb[0].mxu0
    %v2518 = vadd.f32 0.0, %v2517
    %v2519 = vpop.f32.mrb[0].mxu0
    %2520 = vdwg.mxu0
    %2521 = vrot.lane.b32.xlu0 %v2052, 112
    %v2522 = vpop.permute.xlu0 %2521
    %2523 = vrot.lane.b32.xlu0 %v2052, 80
    %v2524 = vpop.permute.xlu0 %2523
    %v2525 = vsel %vm172, %v2522, 0
    %v2527 = vsel %vm172, %v2524, 0
    %2529 = vmatprep.subr.mxu0 0.0
    %2530 = vmatpush1.xpose.msra.mxu0 %v2527
    %2531 = vmatprep.subr.mxu0 0.0
    %2532 = vmatpush1.xpose.msra.mxu0 0.0
    %2533 = vmatprep.subr.mxu0 0.0
    %2534 = vmatpush1.xpose.msra.mxu0 0.0
    %2535 = vmatprep.subr.mxu0 0.0
    %2536 = vmatpush1.xpose.msra.mxu0 0.0
    %2537 = vmatprep.subr.mxu0 0.0
    %2538 = vmatpush1.xpose.msra.mxu0 0.0
    %2539 = vmatprep.subr.mxu0 0.0
    %2540 = vmatpush1.xpose.msra.mxu0 0.0
    %2541 = vmatprep.subr.mxu0 0.0
    %2542 = vmatpush1.xpose.msra.mxu0 0.0
    %2543 = vmatprep.subr.mxu0 0.0
    %2544 = vmatpush1.xpose.msra.mxu0 0.0
    %2545 = vmatprep.subr.mxu0 0.0
    %2546 = vmatpush1.xpose.msra.mxu0 0.0
    %2547 = vmatprep.subr.mxu0 0.0
    %2548 = vmatpush1.xpose.msra.mxu0 0.0
    %2549 = vmatprep.subr.mxu0 0.0
    %2550 = vmatpush1.xpose.msra.mxu0 0.0
    %2551 = vmatprep.subr.mxu0 0.0
    %2552 = vmatpush1.xpose.msra.mxu0 0.0
    %2553 = vmatprep.subr.mxu0 0.0
    %2554 = vmatpush1.xpose.msra.mxu0 0.0
    %2555 = vmatprep.subr.mxu0 0.0
    %2556 = vmatpush1.xpose.msra.mxu0 0.0
    %2557 = vmatprep.subr.mxu0 0.0
    %2558 = vmatpush1.xpose.msra.mxu0 0.0
    %2559 = vmatprep.subr.mxu0 0.0
    %2560 = vmatpush1.xpose.msra.mxu0 0.0
    %2561 = vmatprep.subr.mxu0 0.0
    %2562 = vmatpush1.xpose.msra.mxu0 0.0
    %2563 = vmatprep.subr.mxu0 0.0
    %2564 = vmatpush1.xpose.msra.mxu0 0.0
    %2565 = vmatprep.subr.mxu0 0.0
    %2566 = vmatpush1.xpose.msra.mxu0 0.0
    %2567 = vmatprep.subr.mxu0 0.0
    %2568 = vmatpush1.xpose.msra.mxu0 0.0
    %2569 = vmatprep.subr.mxu0 0.0
    %2570 = vmatpush1.xpose.msra.mxu0 0.0
    %2571 = vmatprep.subr.mxu0 0.0
    %2572 = vmatpush1.xpose.msra.mxu0 0.0
    %2573 = vmatprep.subr.mxu0 0.0
    %2574 = vmatpush1.xpose.msra.mxu0 0.0
    %2575 = vmatprep.subr.mxu0 0.0
    %2576 = vmatpush1.xpose.msra.mxu0 0.0
    %2577 = vmatprep.subr.mxu0 0.0
    %2578 = vmatpush1.xpose.msra.mxu0 0.0
    %2579 = vmatprep.subr.mxu0 0.0
    %2580 = vmatpush1.xpose.msra.mxu0 0.0
    %2581 = vmatprep.subr.mxu0 0.0
    %2582 = vmatpush1.xpose.msra.mxu0 0.0
    %2583 = vmatprep.subr.mxu0 0.0
    %2584 = vmatpush1.xpose.msra.mxu0 0.0
    %2585 = vmatprep.subr.mxu0 0.0
    %2586 = vmatpush1.xpose.msra.mxu0 0.0
    %2587 = vmatprep.subr.mxu0 0.0
    %2588 = vmatpush1.xpose.msra.mxu0 0.0
    %2589 = vmatprep.subr.mxu0 0.0
    %2590 = vmatpush1.xpose.msra.mxu0 0.0
    %2591 = vmatprep.subr.mxu0 0.0
    %2592 = vmatpush1.xpose.msra.mxu0 0.0
    %2593 = vmatprep.mubr.f32.mxu0 0.0
    %2594 = vmatmul.mubr.f32.gmra.mrb[0].mxu0 %v2525
    %v2595 = vpop.f32.mrb[0].mxu0
    %v2596 = vadd.f32 0.0, %v2595
    %v2597 = vpop.f32.mrb[0].mxu0
    %2598 = vdwg.mxu0
    %2599 = vrot.lane.b32.xlu0 %v2052, 104
    %v2600 = vpop.permute.xlu0 %2599
    %2601 = vrot.lane.b32.xlu0 %v2052, 72
    %v2602 = vpop.permute.xlu0 %2601
    %v2603 = vsel %vm172, %v2600, 0
    %v2605 = vsel %vm172, %v2602, 0
    %2607 = vmatprep.subr.mxu0 0.0
    %2608 = vmatpush1.xpose.msra.mxu0 %v2605
    %2609 = vmatprep.subr.mxu0 0.0
    %2610 = vmatpush1.xpose.msra.mxu0 0.0
    %2611 = vmatprep.subr.mxu0 0.0
    %2612 = vmatpush1.xpose.msra.mxu0 0.0
    %2613 = vmatprep.subr.mxu0 0.0
    %2614 = vmatpush1.xpose.msra.mxu0 0.0
    %2615 = vmatprep.subr.mxu0 0.0
    %2616 = vmatpush1.xpose.msra.mxu0 0.0
    %2617 = vmatprep.subr.mxu0 0.0
    %2618 = vmatpush1.xpose.msra.mxu0 0.0
    %2619 = vmatprep.subr.mxu0 0.0
    %2620 = vmatpush1.xpose.msra.mxu0 0.0
    %2621 = vmatprep.subr.mxu0 0.0
    %2622 = vmatpush1.xpose.msra.mxu0 0.0
    %2623 = vmatprep.subr.mxu0 0.0
    %2624 = vmatpush1.xpose.msra.mxu0 0.0
    %2625 = vmatprep.subr.mxu0 0.0
    %2626 = vmatpush1.xpose.msra.mxu0 0.0
    %2627 = vmatprep.subr.mxu0 0.0
    %2628 = vmatpush1.xpose.msra.mxu0 0.0
    %2629 = vmatprep.subr.mxu0 0.0
    %2630 = vmatpush1.xpose.msra.mxu0 0.0
    %2631 = vmatprep.subr.mxu0 0.0
    %2632 = vmatpush1.xpose.msra.mxu0 0.0
    %2633 = vmatprep.subr.mxu0 0.0
    %2634 = vmatpush1.xpose.msra.mxu0 0.0
    %2635 = vmatprep.subr.mxu0 0.0
    %2636 = vmatpush1.xpose.msra.mxu0 0.0
    %2637 = vmatprep.subr.mxu0 0.0
    %2638 = vmatpush1.xpose.msra.mxu0 0.0
    %2639 = vmatprep.subr.mxu0 0.0
    %2640 = vmatpush1.xpose.msra.mxu0 0.0
    %2641 = vmatprep.subr.mxu0 0.0
    %2642 = vmatpush1.xpose.msra.mxu0 0.0
    %2643 = vmatprep.subr.mxu0 0.0
    %2644 = vmatpush1.xpose.msra.mxu0 0.0
    %2645 = vmatprep.subr.mxu0 0.0
    %2646 = vmatpush1.xpose.msra.mxu0 0.0
    %2647 = vmatprep.subr.mxu0 0.0
    %2648 = vmatpush1.xpose.msra.mxu0 0.0
    %2649 = vmatprep.subr.mxu0 0.0
    %2650 = vmatpush1.xpose.msra.mxu0 0.0
    %2651 = vmatprep.subr.mxu0 0.0
    %2652 = vmatpush1.xpose.msra.mxu0 0.0
    %2653 = vmatprep.subr.mxu0 0.0
    %2654 = vmatpush1.xpose.msra.mxu0 0.0
    %2655 = vmatprep.subr.mxu0 0.0
    %2656 = vmatpush1.xpose.msra.mxu0 0.0
    %2657 = vmatprep.subr.mxu0 0.0
    %2658 = vmatpush1.xpose.msra.mxu0 0.0
    %2659 = vmatprep.subr.mxu0 0.0
    %2660 = vmatpush1.xpose.msra.mxu0 0.0
    %2661 = vmatprep.subr.mxu0 0.0
    %2662 = vmatpush1.xpose.msra.mxu0 0.0
    %2663 = vmatprep.subr.mxu0 0.0
    %2664 = vmatpush1.xpose.msra.mxu0 0.0
    %2665 = vmatprep.subr.mxu0 0.0
    %2666 = vmatpush1.xpose.msra.mxu0 0.0
    %2667 = vmatprep.subr.mxu0 0.0
    %2668 = vmatpush1.xpose.msra.mxu0 0.0
    %2669 = vmatprep.subr.mxu0 0.0
    %2670 = vmatpush1.xpose.msra.mxu0 0.0
    %2671 = vmatprep.mubr.f32.mxu0 0.0
    %2672 = vmatmul.mubr.f32.gmra.mrb[0].mxu0 %v2603
    %v2673 = vpop.f32.mrb[0].mxu0
    %v2674 = vadd.f32 0.0, %v2673
    %v2675 = vpop.f32.mrb[0].mxu0
    %2676 = vdwg.mxu0
    %v2677 = vadd.f32 %v2129, %v25
    %v2678 = vadd.f32 %v2207, %v26
    %v2679 = vadd.f32 %v2285, %v27
    %v2680 = vadd.f32 %v2363, %v28
    %v2681 = vadd.f32 %v2440, %v29
    %v2682 = vadd.f32 %v2518, %v30
    %v2683 = vadd.f32 %v2596, %v31
    %v2684 = vadd.f32 %v2674, %v32
    %v2685 = vsel %vm172, %v2677, -inf
    %2686 = vmax.xlane.f32.xlu0 %v2685
    %v2687 = vpop.xlane.xlu0 %2686
    %v2688 = vsel %vm172, %v2678, -inf
    %2689 = vmax.xlane.f32.xlu0 %v2688
    %v2690 = vpop.xlane.xlu0 %2689
    %v2691 = vsel %vm172, %v2679, -inf
    %2692 = vmax.xlane.f32.xlu0 %v2691
    %v2693 = vpop.xlane.xlu0 %2692
    %v2694 = vsel %vm172, %v2680, -inf
    %2695 = vmax.xlane.f32.xlu0 %v2694
    %v2696 = vpop.xlane.xlu0 %2695
    %v2697 = vsel %vm172, %v2681, -inf
    %2698 = vmax.xlane.f32.xlu0 %v2697
    %v2699 = vpop.xlane.xlu0 %2698
    %v2700 = vsel %vm172, %v2682, -inf
    %2701 = vmax.xlane.f32.xlu0 %v2700
    %v2702 = vpop.xlane.xlu0 %2701
    %v2703 = vsel %vm172, %v2683, -inf
    %2704 = vmax.xlane.f32.xlu0 %v2703
    %v2705 = vpop.xlane.xlu0 %2704
    %v2706 = vsel %vm172, %v2684, -inf
    %2707 = vmax.xlane.f32.xlu0 %v2706
    %v2708 = vpop.xlane.xlu0 %2707
    %v2709 = vsub.f32 %v2677, %v2687
    %v2710 = vsub.f32 %v2678, %v2690
    %v2711 = vsub.f32 %v2679, %v2693
    %v2712 = vsub.f32 %v2680, %v2696
    %v2713 = vsub.f32 %v2681, %v2699
    %v2714 = vsub.f32 %v2682, %v2702
    %v2715 = vsub.f32 %v2683, %v2705
    %v2716 = vsub.f32 %v2684, %v2708
    %v2717 = vmul.f32 %v2709, 1.442695
    %v2718 = vpow.pop %v2717
    %v2719 = vmul.f32 %v2710, 1.442695
    %v2720 = vpow.pop %v2719
    %v2721 = vmul.f32 %v2711, 1.442695
    %v2722 = vpow.pop %v2721
    %v2723 = vmul.f32 %v2712, 1.442695
    %v2724 = vpow.pop %v2723
    %v2725 = vmul.f32 %v2713, 1.442695
    %v2726 = vpow.pop %v2725
    %v2727 = vmul.f32 %v2714, 1.442695
    %v2728 = vpow.pop %v2727
    %v2729 = vmul.f32 %v2715, 1.442695
    %v2730 = vpow.pop %v2729
    %v2731 = vmul.f32 %v2716, 1.442695
    %v2732 = vpow.pop %v2731
    %v2733 = vsel %vm172, %v2718, 0.0
    %2734 = vadd.xlane.f32.xlu0 %v2733
    %v2735 = vpop.xlane.xlu0 %2734
    %v2736 = vsel %vm172, %v2720, 0.0
    %2737 = vadd.xlane.f32.xlu0 %v2736
    %v2738 = vpop.xlane.xlu0 %2737
    %v2739 = vsel %vm172, %v2722, 0.0
    %2740 = vadd.xlane.f32.xlu0 %v2739
    %v2741 = vpop.xlane.xlu0 %2740
    %v2742 = vsel %vm172, %v2724, 0.0
    %2743 = vadd.xlane.f32.xlu0 %v2742
    %v2744 = vpop.xlane.xlu0 %2743
    %v2745 = vsel %vm172, %v2726, 0.0
    %2746 = vadd.xlane.f32.xlu0 %v2745
    %v2747 = vpop.xlane.xlu0 %2746
    %v2748 = vsel %vm172, %v2728, 0.0
    %2749 = vadd.xlane.f32.xlu0 %v2748
    %v2750 = vpop.xlane.xlu0 %2749
    %v2751 = vsel %vm172, %v2730, 0.0
    %2752 = vadd.xlane.f32.xlu0 %v2751
    %v2753 = vpop.xlane.xlu0 %2752
    %v2754 = vsel %vm172, %v2732, 0.0
    %2755 = vadd.xlane.f32.xlu0 %v2754
    %v2756 = vpop.xlane.xlu0 %2755
    %v2757 = vrcp.pop %v2735
    %v2758 = vmul.f32 %v2718, %v2757
    %v2759 = vrcp.pop %v2738
    %v2760 = vmul.f32 %v2720, %v2759
    %v2761 = vrcp.pop %v2741
    %v2762 = vmul.f32 %v2722, %v2761
    %v2763 = vrcp.pop %v2744
    %v2764 = vmul.f32 %v2724, %v2763
    %v2765 = vrcp.pop %v2747
    %v2766 = vmul.f32 %v2726, %v2765
    %v2767 = vrcp.pop %v2750
    %v2768 = vmul.f32 %v2728, %v2767
    %v2769 = vrcp.pop %v2753
    %v2770 = vmul.f32 %v2730, %v2769
    %v2771 = vrcp.pop %v2756
    %v2772 = vmul.f32 %v2732, %v2771
    %2773 = vrot.lane.b32.xlu0 %v2047, 64
    %v2774 = vpop.permute.xlu0 %2773
    %v2777 = vsel %vm172, %v2758, 0
    %2779 = vmatprep.subr.mxu0 0.0
    %2780 = vmatpush1.msra.mxu0 %v2774
    %2781 = vmatprep.subr.mxu0 0.0
    %2782 = vmatpush1.msra.mxu0 0.0
    %2783 = vmatprep.subr.mxu0 0.0
    %2784 = vmatpush1.msra.mxu0 0.0
    %2785 = vmatprep.subr.mxu0 0.0
    %2786 = vmatpush1.msra.mxu0 0.0
    %2787 = vmatprep.subr.mxu0 0.0
    %2788 = vmatpush1.msra.mxu0 0.0
    %2789 = vmatprep.subr.mxu0 0.0
    %2790 = vmatpush1.msra.mxu0 0.0
    %2791 = vmatprep.subr.mxu0 0.0
    %2792 = vmatpush1.msra.mxu0 0.0
    %2793 = vmatprep.subr.mxu0 0.0
    %2794 = vmatpush1.msra.mxu0 0.0
    %2795 = vmatprep.subr.mxu0 0.0
    %2796 = vmatpush1.msra.mxu0 0.0
    %2797 = vmatprep.subr.mxu0 0.0
    %2798 = vmatpush1.msra.mxu0 0.0
    %2799 = vmatprep.subr.mxu0 0.0
    %2800 = vmatpush1.msra.mxu0 0.0
    %2801 = vmatprep.subr.mxu0 0.0
    %2802 = vmatpush1.msra.mxu0 0.0
    %2803 = vmatprep.subr.mxu0 0.0
    %2804 = vmatpush1.msra.mxu0 0.0
    %2805 = vmatprep.subr.mxu0 0.0
    %2806 = vmatpush1.msra.mxu0 0.0
    %2807 = vmatprep.subr.mxu0 0.0
    %2808 = vmatpush1.msra.mxu0 0.0
    %2809 = vmatprep.subr.mxu0 0.0
    %2810 = vmatpush1.msra.mxu0 0.0
    %2811 = vmatprep.subr.mxu0 0.0
    %2812 = vmatpush1.msra.mxu0 0.0
    %2813 = vmatprep.subr.mxu0 0.0
    %2814 = vmatpush1.msra.mxu0 0.0
    %2815 = vmatprep.subr.mxu0 0.0
    %2816 = vmatpush1.msra.mxu0 0.0
    %2817 = vmatprep.subr.mxu0 0.0
    %2818 = vmatpush1.msra.mxu0 0.0
    %2819 = vmatprep.subr.mxu0 0.0
    %2820 = vmatpush1.msra.mxu0 0.0
    %2821 = vmatprep.subr.mxu0 0.0
    %2822 = vmatpush1.msra.mxu0 0.0
    %2823 = vmatprep.subr.mxu0 0.0
    %2824 = vmatpush1.msra.mxu0 0.0
    %2825 = vmatprep.subr.mxu0 0.0
    %2826 = vmatpush1.msra.mxu0 0.0
    %2827 = vmatprep.subr.mxu0 0.0
    %2828 = vmatpush1.msra.mxu0 0.0
    %2829 = vmatprep.subr.mxu0 0.0
    %2830 = vmatpush1.msra.mxu0 0.0
    %2831 = vmatprep.subr.mxu0 0.0
    %2832 = vmatpush1.msra.mxu0 0.0
    %2833 = vmatprep.subr.mxu0 0.0
    %2834 = vmatpush1.msra.mxu0 0.0
    %2835 = vmatprep.subr.mxu0 0.0
    %2836 = vmatpush1.msra.mxu0 0.0
    %2837 = vmatprep.subr.mxu0 0.0
    %2838 = vmatpush1.msra.mxu0 0.0
    %2839 = vmatprep.subr.mxu0 0.0
    %2840 = vmatpush1.msra.mxu0 0.0
    %2841 = vmatprep.subr.mxu0 0.0
    %2842 = vmatpush1.msra.mxu0 0.0
    %2843 = vmatprep.mubr.f32.mxu0 0.0
    %2844 = vmatmul.mubr.f32.gmra.mrb[0].mxu0 %v2777
    %v2845 = vpop.f32.mrb[0].mxu0
    %v2846 = vadd.f32 0.0, %v2845
    %v2847 = vpop.f32.mrb[0].mxu0
    %2848 = vdwg.mxu0
    %2849 = vst.msk [vmem:[#allocation2] sm:$0xff] %vm172, %v2846
    %2850 = vrot.lane.b32.xlu0 %v2047, 56
    %v2851 = vpop.permute.xlu0 %2850
    %v2854 = vsel %vm172, %v2760, 0
    %2856 = vmatprep.subr.mxu0 0.0
    %2857 = vmatpush1.msra.mxu0 %v2851
    %2858 = vmatprep.subr.mxu0 0.0
    %2859 = vmatpush1.msra.mxu0 0.0
    %2860 = vmatprep.subr.mxu0 0.0
    %2861 = vmatpush1.msra.mxu0 0.0
    %2862 = vmatprep.subr.mxu0 0.0
    %2863 = vmatpush1.msra.mxu0 0.0
    %2864 = vmatprep.subr.mxu0 0.0
    %2865 = vmatpush1.msra.mxu0 0.0
    %2866 = vmatprep.subr.mxu0 0.0
    %2867 = vmatpush1.msra.mxu0 0.0
    %2868 = vmatprep.subr.mxu0 0.0
    %2869 = vmatpush1.msra.mxu0 0.0
    %2870 = vmatprep.subr.mxu0 0.0
    %2871 = vmatpush1.msra.mxu0 0.0
    %2872 = vmatprep.subr.mxu0 0.0
    %2873 = vmatpush1.msra.mxu0 0.0
    %2874 = vmatprep.subr.mxu0 0.0
    %2875 = vmatpush1.msra.mxu0 0.0
    %2876 = vmatprep.subr.mxu0 0.0
    %2877 = vmatpush1.msra.mxu0 0.0
    %2878 = vmatprep.subr.mxu0 0.0
    %2879 = vmatpush1.msra.mxu0 0.0
    %2880 = vmatprep.subr.mxu0 0.0
    %2881 = vmatpush1.msra.mxu0 0.0
    %2882 = vmatprep.subr.mxu0 0.0
    %2883 = vmatpush1.msra.mxu0 0.0
    %2884 = vmatprep.subr.mxu0 0.0
    %2885 = vmatpush1.msra.mxu0 0.0
    %2886 = vmatprep.subr.mxu0 0.0
    %2887 = vmatpush1.msra.mxu0 0.0
    %2888 = vmatprep.subr.mxu0 0.0
    %2889 = vmatpush1.msra.mxu0 0.0
    %2890 = vmatprep.subr.mxu0 0.0
    %2891 = vmatpush1.msra.mxu0 0.0
    %2892 = vmatprep.subr.mxu0 0.0
    %2893 = vmatpush1.msra.mxu0 0.0
    %2894 = vmatprep.subr.mxu0 0.0
    %2895 = vmatpush1.msra.mxu0 0.0
    %2896 = vmatprep.subr.mxu0 0.0
    %2897 = vmatpush1.msra.mxu0 0.0
    %2898 = vmatprep.subr.mxu0 0.0
    %2899 = vmatpush1.msra.mxu0 0.0
    %2900 = vmatprep.subr.mxu0 0.0
    %2901 = vmatpush1.msra.mxu0 0.0
    %2902 = vmatprep.subr.mxu0 0.0
    %2903 = vmatpush1.msra.mxu0 0.0
    %2904 = vmatprep.subr.mxu0 0.0
    %2905 = vmatpush1.msra.mxu0 0.0
    %2906 = vmatprep.subr.mxu0 0.0
    %2907 = vmatpush1.msra.mxu0 0.0
    %2908 = vmatprep.subr.mxu0 0.0
    %2909 = vmatpush1.msra.mxu0 0.0
    %2910 = vmatprep.subr.mxu0 0.0
    %2911 = vmatpush1.msra.mxu0 0.0
    %2912 = vmatprep.subr.mxu0 0.0
    %2913 = vmatpush1.msra.mxu0 0.0
    %2914 = vmatprep.subr.mxu0 0.0
    %2915 = vmatpush1.msra.mxu0 0.0
    %2916 = vmatprep.subr.mxu0 0.0
    %2917 = vmatpush1.msra.mxu0 0.0
    %2918 = vmatprep.subr.mxu0 0.0
    %2919 = vmatpush1.msra.mxu0 0.0
    %2920 = vmatprep.mubr.f32.mxu0 0.0
    %2921 = vmatmul.mubr.f32.gmra.mrb[0].mxu0 %v2854
    %v2922 = vpop.f32.mrb[0].mxu0
    %v2923 = vadd.f32 0.0, %v2922
    %v2924 = vpop.f32.mrb[0].mxu0
    %2925 = vdwg.mxu0
    %2927 = vrot.lane.b32.xlu0 %v2923, 8
    %v2928 = vpop.permute.xlu0 %2927
    %2930 = vst.msk [vmem:[#allocation2] sm:$0xff] %vm1045, %v2928
    %2931 = vrot.lane.b32.xlu0 %v2047, 48
    %v2932 = vpop.permute.xlu0 %2931
    %v2935 = vsel %vm172, %v2762, 0
    %2937 = vmatprep.subr.mxu0 0.0
    %2938 = vmatpush1.msra.mxu0 %v2932
    %2939 = vmatprep.subr.mxu0 0.0
    %2940 = vmatpush1.msra.mxu0 0.0
    %2941 = vmatprep.subr.mxu0 0.0
    %2942 = vmatpush1.msra.mxu0 0.0
    %2943 = vmatprep.subr.mxu0 0.0
    %2944 = vmatpush1.msra.mxu0 0.0
    %2945 = vmatprep.subr.mxu0 0.0
    %2946 = vmatpush1.msra.mxu0 0.0
    %2947 = vmatprep.subr.mxu0 0.0
    %2948 = vmatpush1.msra.mxu0 0.0
    %2949 = vmatprep.subr.mxu0 0.0
    %2950 = vmatpush1.msra.mxu0 0.0
    %2951 = vmatprep.subr.mxu0 0.0
    %2952 = vmatpush1.msra.mxu0 0.0
    %2953 = vmatprep.subr.mxu0 0.0
    %2954 = vmatpush1.msra.mxu0 0.0
    %2955 = vmatprep.subr.mxu0 0.0
    %2956 = vmatpush1.msra.mxu0 0.0
    %2957 = vmatprep.subr.mxu0 0.0
    %2958 = vmatpush1.msra.mxu0 0.0
    %2959 = vmatprep.subr.mxu0 0.0
    %2960 = vmatpush1.msra.mxu0 0.0
    %2961 = vmatprep.subr.mxu0 0.0
    %2962 = vmatpush1.msra.mxu0 0.0
    %2963 = vmatprep.subr.mxu0 0.0
    %2964 = vmatpush1.msra.mxu0 0.0
    %2965 = vmatprep.subr.mxu0 0.0
    %2966 = vmatpush1.msra.mxu0 0.0
    %2967 = vmatprep.subr.mxu0 0.0
    %2968 = vmatpush1.msra.mxu0 0.0
    %2969 = vmatprep.subr.mxu0 0.0
    %2970 = vmatpush1.msra.mxu0 0.0
    %2971 = vmatprep.subr.mxu0 0.0
    %2972 = vmatpush1.msra.mxu0 0.0
    %2973 = vmatprep.subr.mxu0 0.0
    %2974 = vmatpush1.msra.mxu0 0.0
    %2975 = vmatprep.subr.mxu0 0.0
    %2976 = vmatpush1.msra.mxu0 0.0
    %2977 = vmatprep.subr.mxu0 0.0
    %2978 = vmatpush1.msra.mxu0 0.0
    %2979 = vmatprep.subr.mxu0 0.0
    %2980 = vmatpush1.msra.mxu0 0.0
    %2981 = vmatprep.subr.mxu0 0.0
    %2982 = vmatpush1.msra.mxu0 0.0
    %2983 = vmatprep.subr.mxu0 0.0
    %2984 = vmatpush1.msra.mxu0 0.0
    %2985 = vmatprep.subr.mxu0 0.0
    %2986 = vmatpush1.msra.mxu0 0.0
    %2987 = vmatprep.subr.mxu0 0.0
    %2988 = vmatpush1.msra.mxu0 0.0
    %2989 = vmatprep.subr.mxu0 0.0
    %2990 = vmatpush1.msra.mxu0 0.0
    %2991 = vmatprep.subr.mxu0 0.0
    %2992 = vmatpush1.msra.mxu0 0.0
    %2993 = vmatprep.subr.mxu0 0.0
    %2994 = vmatpush1.msra.mxu0 0.0
    %2995 = vmatprep.subr.mxu0 0.0
    %2996 = vmatpush1.msra.mxu0 0.0
    %2997 = vmatprep.subr.mxu0 0.0
    %2998 = vmatpush1.msra.mxu0 0.0
    %2999 = vmatprep.subr.mxu0 0.0
    %3000 = vmatpush1.msra.mxu0 0.0
    %3001 = vmatprep.mubr.f32.mxu0 0.0
    %3002 = vmatmul.mubr.f32.gmra.mrb[0].mxu0 %v2935
    %v3003 = vpop.f32.mrb[0].mxu0
    %v3004 = vadd.f32 0.0, %v3003
    %v3005 = vpop.f32.mrb[0].mxu0
    %3006 = vdwg.mxu0
    %3008 = vrot.lane.b32.xlu0 %v3004, 16
    %v3009 = vpop.permute.xlu0 %3008
    %3011 = vst.msk [vmem:[#allocation2] sm:$0xff] %vm1127, %v3009
    %3012 = vrot.lane.b32.xlu0 %v2047, 40
    %v3013 = vpop.permute.xlu0 %3012
    %v3016 = vsel %vm172, %v2764, 0
    %3018 = vmatprep.subr.mxu0 0.0
    %3019 = vmatpush1.msra.mxu0 %v3013
    %3020 = vmatprep.subr.mxu0 0.0
    %3021 = vmatpush1.msra.mxu0 0.0
    %3022 = vmatprep.subr.mxu0 0.0
    %3023 = vmatpush1.msra.mxu0 0.0
    %3024 = vmatprep.subr.mxu0 0.0
    %3025 = vmatpush1.msra.mxu0 0.0
    %3026 = vmatprep.subr.mxu0 0.0
    %3027 = vmatpush1.msra.mxu0 0.0
    %3028 = vmatprep.subr.mxu0 0.0
    %3029 = vmatpush1.msra.mxu0 0.0
    %3030 = vmatprep.subr.mxu0 0.0
    %3031 = vmatpush1.msra.mxu0 0.0
    %3032 = vmatprep.subr.mxu0 0.0
    %3033 = vmatpush1.msra.mxu0 0.0
    %3034 = vmatprep.subr.mxu0 0.0
    %3035 = vmatpush1.msra.mxu0 0.0
    %3036 = vmatprep.subr.mxu0 0.0
    %3037 = vmatpush1.msra.mxu0 0.0
    %3038 = vmatprep.subr.mxu0 0.0
    %3039 = vmatpush1.msra.mxu0 0.0
    %3040 = vmatprep.subr.mxu0 0.0
    %3041 = vmatpush1.msra.mxu0 0.0
    %3042 = vmatprep.subr.mxu0 0.0
    %3043 = vmatpush1.msra.mxu0 0.0
    %3044 = vmatprep.subr.mxu0 0.0
    %3045 = vmatpush1.msra.mxu0 0.0
    %3046 = vmatprep.subr.mxu0 0.0
    %3047 = vmatpush1.msra.mxu0 0.0
    %3048 = vmatprep.subr.mxu0 0.0
    %3049 = vmatpush1.msra.mxu0 0.0
    %3050 = vmatprep.subr.mxu0 0.0
    %3051 = vmatpush1.msra.mxu0 0.0
    %3052 = vmatprep.subr.mxu0 0.0
    %3053 = vmatpush1.msra.mxu0 0.0
    %3054 = vmatprep.subr.mxu0 0.0
    %3055 = vmatpush1.msra.mxu0 0.0
    %3056 = vmatprep.subr.mxu0 0.0
    %3057 = vmatpush1.msra.mxu0 0.0
    %3058 = vmatprep.subr.mxu0 0.0
    %3059 = vmatpush1.msra.mxu0 0.0
    %3060 = vmatprep.subr.mxu0 0.0
    %3061 = vmatpush1.msra.mxu0 0.0
    %3062 = vmatprep.subr.mxu0 0.0
    %3063 = vmatpush1.msra.mxu0 0.0
    %3064 = vmatprep.subr.mxu0 0.0
    %3065 = vmatpush1.msra.mxu0 0.0
    %3066 = vmatprep.subr.mxu0 0.0
    %3067 = vmatpush1.msra.mxu0 0.0
    %3068 = vmatprep.subr.mxu0 0.0
    %3069 = vmatpush1.msra.mxu0 0.0
    %3070 = vmatprep.subr.mxu0 0.0
    %3071 = vmatpush1.msra.mxu0 0.0
    %3072 = vmatprep.subr.mxu0 0.0
    %3073 = vmatpush1.msra.mxu0 0.0
    %3074 = vmatprep.subr.mxu0 0.0
    %3075 = vmatpush1.msra.mxu0 0.0
    %3076 = vmatprep.subr.mxu0 0.0
    %3077 = vmatpush1.msra.mxu0 0.0
    %3078 = vmatprep.subr.mxu0 0.0
    %3079 = vmatpush1.msra.mxu0 0.0
    %3080 = vmatprep.subr.mxu0 0.0
    %3081 = vmatpush1.msra.mxu0 0.0
    %3082 = vmatprep.mubr.f32.mxu0 0.0
    %3083 = vmatmul.mubr.f32.gmra.mrb[0].mxu0 %v3016
    %v3084 = vpop.f32.mrb[0].mxu0
    %v3085 = vadd.f32 0.0, %v3084
    %v3086 = vpop.f32.mrb[0].mxu0
    %3087 = vdwg.mxu0
    %3089 = vrot.lane.b32.xlu0 %v3085, 24
    %v3090 = vpop.permute.xlu0 %3089
    %3092 = vst.msk [vmem:[#allocation2] sm:$0xff] %vm1209, %v3090
    %3093 = vrot.lane.b32.xlu0 %v2052, 64
    %v3094 = vpop.permute.xlu0 %3093
    %v3097 = vsel %vm172, %v2766, 0
    %3099 = vmatprep.subr.mxu0 0.0
    %3100 = vmatpush1.msra.mxu0 %v3094
    %3101 = vmatprep.subr.mxu0 0.0
    %3102 = vmatpush1.msra.mxu0 0.0
    %3103 = vmatprep.subr.mxu0 0.0
    %3104 = vmatpush1.msra.mxu0 0.0
    %3105 = vmatprep.subr.mxu0 0.0
    %3106 = vmatpush1.msra.mxu0 0.0
    %3107 = vmatprep.subr.mxu0 0.0
    %3108 = vmatpush1.msra.mxu0 0.0
    %3109 = vmatprep.subr.mxu0 0.0
    %3110 = vmatpush1.msra.mxu0 0.0
    %3111 = vmatprep.subr.mxu0 0.0
    %3112 = vmatpush1.msra.mxu0 0.0
    %3113 = vmatprep.subr.mxu0 0.0
    %3114 = vmatpush1.msra.mxu0 0.0
    %3115 = vmatprep.subr.mxu0 0.0
    %3116 = vmatpush1.msra.mxu0 0.0
    %3117 = vmatprep.subr.mxu0 0.0
    %3118 = vmatpush1.msra.mxu0 0.0
    %3119 = vmatprep.subr.mxu0 0.0
    %3120 = vmatpush1.msra.mxu0 0.0
    %3121 = vmatprep.subr.mxu0 0.0
    %3122 = vmatpush1.msra.mxu0 0.0
    %3123 = vmatprep.subr.mxu0 0.0
    %3124 = vmatpush1.msra.mxu0 0.0
    %3125 = vmatprep.subr.mxu0 0.0
    %3126 = vmatpush1.msra.mxu0 0.0
    %3127 = vmatprep.subr.mxu0 0.0
    %3128 = vmatpush1.msra.mxu0 0.0
    %3129 = vmatprep.subr.mxu0 0.0
    %3130 = vmatpush1.msra.mxu0 0.0
    %3131 = vmatprep.subr.mxu0 0.0
    %3132 = vmatpush1.msra.mxu0 0.0
    %3133 = vmatprep.subr.mxu0 0.0
    %3134 = vmatpush1.msra.mxu0 0.0
    %3135 = vmatprep.subr.mxu0 0.0
    %3136 = vmatpush1.msra.mxu0 0.0
    %3137 = vmatprep.subr.mxu0 0.0
    %3138 = vmatpush1.msra.mxu0 0.0
    %3139 = vmatprep.subr.mxu0 0.0
    %3140 = vmatpush1.msra.mxu0 0.0
    %3141 = vmatprep.subr.mxu0 0.0
    %3142 = vmatpush1.msra.mxu0 0.0
    %3143 = vmatprep.subr.mxu0 0.0
    %3144 = vmatpush1.msra.mxu0 0.0
    %3145 = vmatprep.subr.mxu0 0.0
    %3146 = vmatpush1.msra.mxu0 0.0
    %3147 = vmatprep.subr.mxu0 0.0
    %3148 = vmatpush1.msra.mxu0 0.0
    %3149 = vmatprep.subr.mxu0 0.0
    %3150 = vmatpush1.msra.mxu0 0.0
    %3151 = vmatprep.subr.mxu0 0.0
    %3152 = vmatpush1.msra.mxu0 0.0
    %3153 = vmatprep.subr.mxu0 0.0
    %3154 = vmatpush1.msra.mxu0 0.0
    %3155 = vmatprep.subr.mxu0 0.0
    %3156 = vmatpush1.msra.mxu0 0.0
    %3157 = vmatprep.subr.mxu0 0.0
    %3158 = vmatpush1.msra.mxu0 0.0
    %3159 = vmatprep.subr.mxu0 0.0
    %3160 = vmatpush1.msra.mxu0 0.0
    %3161 = vmatprep.subr.mxu0 0.0
    %3162 = vmatpush1.msra.mxu0 0.0
    %3163 = vmatprep.mubr.f32.mxu0 0.0
    %3164 = vmatmul.mubr.f32.gmra.mrb[0].mxu0 %v3097
    %v3165 = vpop.f32.mrb[0].mxu0
    %v3166 = vadd.f32 0.0, %v3165
    %v3167 = vpop.f32.mrb[0].mxu0
    %3168 = vdwg.mxu0
    %3169 = vst.msk [vmem:[#allocation2 + $0x8] sm:$0xff] %vm172, %v3166
    %3170 = vrot.lane.b32.xlu0 %v2052, 56
    %v3171 = vpop.permute.xlu0 %3170
    %v3174 = vsel %vm172, %v2768, 0
    %3176 = vmatprep.subr.mxu0 0.0
    %3177 = vmatpush1.msra.mxu0 %v3171
    %3178 = vmatprep.subr.mxu0 0.0
    %3179 = vmatpush1.msra.mxu0 0.0
    %3180 = vmatprep.subr.mxu0 0.0
    %3181 = vmatpush1.msra.mxu0 0.0
    %3182 = vmatprep.subr.mxu0 0.0
    %3183 = vmatpush1.msra.mxu0 0.0
    %3184 = vmatprep.subr.mxu0 0.0
    %3185 = vmatpush1.msra.mxu0 0.0
    %3186 = vmatprep.subr.mxu0 0.0
    %3187 = vmatpush1.msra.mxu0 0.0
    %3188 = vmatprep.subr.mxu0 0.0
    %3189 = vmatpush1.msra.mxu0 0.0
    %3190 = vmatprep.subr.mxu0 0.0
    %3191 = vmatpush1.msra.mxu0 0.0
    %3192 = vmatprep.subr.mxu0 0.0
    %3193 = vmatpush1.msra.mxu0 0.0
    %3194 = vmatprep.subr.mxu0 0.0
    %3195 = vmatpush1.msra.mxu0 0.0
    %3196 = vmatprep.subr.mxu0 0.0
    %3197 = vmatpush1.msra.mxu0 0.0
    %3198 = vmatprep.subr.mxu0 0.0
    %3199 = vmatpush1.msra.mxu0 0.0
    %3200 = vmatprep.subr.mxu0 0.0
    %3201 = vmatpush1.msra.mxu0 0.0
    %3202 = vmatprep.subr.mxu0 0.0
    %3203 = vmatpush1.msra.mxu0 0.0
    %3204 = vmatprep.subr.mxu0 0.0
    %3205 = vmatpush1.msra.mxu0 0.0
    %3206 = vmatprep.subr.mxu0 0.0
    %3207 = vmatpush1.msra.mxu0 0.0
    %3208 = vmatprep.subr.mxu0 0.0
    %3209 = vmatpush1.msra.mxu0 0.0
    %3210 = vmatprep.subr.mxu0 0.0
    %3211 = vmatpush1.msra.mxu0 0.0
    %3212 = vmatprep.subr.mxu0 0.0
    %3213 = vmatpush1.msra.mxu0 0.0
    %3214 = vmatprep.subr.mxu0 0.0
    %3215 = vmatpush1.msra.mxu0 0.0
    %3216 = vmatprep.subr.mxu0 0.0
    %3217 = vmatpush1.msra.mxu0 0.0
    %3218 = vmatprep.subr.mxu0 0.0
    %3219 = vmatpush1.msra.mxu0 0.0
    %3220 = vmatprep.subr.mxu0 0.0
    %3221 = vmatpush1.msra.mxu0 0.0
    %3222 = vmatprep.subr.mxu0 0.0
    %3223 = vmatpush1.msra.mxu0 0.0
    %3224 = vmatprep.subr.mxu0 0.0
    %3225 = vmatpush1.msra.mxu0 0.0
    %3226 = vmatprep.subr.mxu0 0.0
    %3227 = vmatpush1.msra.mxu0 0.0
    %3228 = vmatprep.subr.mxu0 0.0
    %3229 = vmatpush1.msra.mxu0 0.0
    %3230 = vmatprep.subr.mxu0 0.0
    %3231 = vmatpush1.msra.mxu0 0.0
    %3232 = vmatprep.subr.mxu0 0.0
    %3233 = vmatpush1.msra.mxu0 0.0
    %3234 = vmatprep.subr.mxu0 0.0
    %3235 = vmatpush1.msra.mxu0 0.0
    %3236 = vmatprep.subr.mxu0 0.0
    %3237 = vmatpush1.msra.mxu0 0.0
    %3238 = vmatprep.subr.mxu0 0.0
    %3239 = vmatpush1.msra.mxu0 0.0
    %3240 = vmatprep.mubr.f32.mxu0 0.0
    %3241 = vmatmul.mubr.f32.gmra.mrb[0].mxu0 %v3174
    %v3242 = vpop.f32.mrb[0].mxu0
    %v3243 = vadd.f32 0.0, %v3242
    %v3244 = vpop.f32.mrb[0].mxu0
    %3245 = vdwg.mxu0
    %3247 = vrot.lane.b32.xlu0 %v3243, 8
    %v3248 = vpop.permute.xlu0 %3247
    %3250 = vst.msk [vmem:[#allocation2 + $0x8] sm:$0xff] %vm1045, %v3248
    %3251 = vrot.lane.b32.xlu0 %v2052, 48
    %v3252 = vpop.permute.xlu0 %3251
    %v3255 = vsel %vm172, %v2770, 0
    %3257 = vmatprep.subr.mxu0 0.0
    %3258 = vmatpush1.msra.mxu0 %v3252
    %3259 = vmatprep.subr.mxu0 0.0
    %3260 = vmatpush1.msra.mxu0 0.0
    %3261 = vmatprep.subr.mxu0 0.0
    %3262 = vmatpush1.msra.mxu0 0.0
    %3263 = vmatprep.subr.mxu0 0.0
    %3264 = vmatpush1.msra.mxu0 0.0
    %3265 = vmatprep.subr.mxu0 0.0
    %3266 = vmatpush1.msra.mxu0 0.0
    %3267 = vmatprep.subr.mxu0 0.0
    %3268 = vmatpush1.msra.mxu0 0.0
    %3269 = vmatprep.subr.mxu0 0.0
    %3270 = vmatpush1.msra.mxu0 0.0
    %3271 = vmatprep.subr.mxu0 0.0
    %3272 = vmatpush1.msra.mxu0 0.0
    %3273 = vmatprep.subr.mxu0 0.0
    %3274 = vmatpush1.msra.mxu0 0.0
    %3275 = vmatprep.subr.mxu0 0.0
    %3276 = vmatpush1.msra.mxu0 0.0
    %3277 = vmatprep.subr.mxu0 0.0
    %3278 = vmatpush1.msra.mxu0 0.0
    %3279 = vmatprep.subr.mxu0 0.0
    %3280 = vmatpush1.msra.mxu0 0.0
    %3281 = vmatprep.subr.mxu0 0.0
    %3282 = vmatpush1.msra.mxu0 0.0
    %3283 = vmatprep.subr.mxu0 0.0
    %3284 = vmatpush1.msra.mxu0 0.0
    %3285 = vmatprep.subr.mxu0 0.0
    %3286 = vmatpush1.msra.mxu0 0.0
    %3287 = vmatprep.subr.mxu0 0.0
    %3288 = vmatpush1.msra.mxu0 0.0
    %3289 = vmatprep.subr.mxu0 0.0
    %3290 = vmatpush1.msra.mxu0 0.0
    %3291 = vmatprep.subr.mxu0 0.0
    %3292 = vmatpush1.msra.mxu0 0.0
    %3293 = vmatprep.subr.mxu0 0.0
    %3294 = vmatpush1.msra.mxu0 0.0
    %3295 = vmatprep.subr.mxu0 0.0
    %3296 = vmatpush1.msra.mxu0 0.0
    %3297 = vmatprep.subr.mxu0 0.0
    %3298 = vmatpush1.msra.mxu0 0.0
    %3299 = vmatprep.subr.mxu0 0.0
    %3300 = vmatpush1.msra.mxu0 0.0
    %3301 = vmatprep.subr.mxu0 0.0
    %3302 = vmatpush1.msra.mxu0 0.0
    %3303 = vmatprep.subr.mxu0 0.0
    %3304 = vmatpush1.msra.mxu0 0.0
    %3305 = vmatprep.subr.mxu0 0.0
    %3306 = vmatpush1.msra.mxu0 0.0
    %3307 = vmatprep.subr.mxu0 0.0
    %3308 = vmatpush1.msra.mxu0 0.0
    %3309 = vmatprep.subr.mxu0 0.0
    %3310 = vmatpush1.msra.mxu0 0.0
    %3311 = vmatprep.subr.mxu0 0.0
    %3312 = vmatpush1.msra.mxu0 0.0
    %3313 = vmatprep.subr.mxu0 0.0
    %3314 = vmatpush1.msra.mxu0 0.0
    %3315 = vmatprep.subr.mxu0 0.0
    %3316 = vmatpush1.msra.mxu0 0.0
    %3317 = vmatprep.subr.mxu0 0.0
    %3318 = vmatpush1.msra.mxu0 0.0
    %3319 = vmatprep.subr.mxu0 0.0
    %3320 = vmatpush1.msra.mxu0 0.0
    %3321 = vmatprep.mubr.f32.mxu0 0.0
    %3322 = vmatmul.mubr.f32.gmra.mrb[0].mxu0 %v3255
    %v3323 = vpop.f32.mrb[0].mxu0
    %v3324 = vadd.f32 0.0, %v3323
    %v3325 = vpop.f32.mrb[0].mxu0
    %3326 = vdwg.mxu0
    %3328 = vrot.lane.b32.xlu0 %v3324, 16
    %v3329 = vpop.permute.xlu0 %3328
    %3331 = vst.msk [vmem:[#allocation2 + $0x8] sm:$0xff] %vm1127, %v3329
    %3332 = vrot.lane.b32.xlu0 %v2052, 40
    %v3333 = vpop.permute.xlu0 %3332
    %v3336 = vsel %vm172, %v2772, 0
    %3338 = vmatprep.subr.mxu0 0.0
    %3339 = vmatpush1.msra.mxu0 %v3333
    %3340 = vmatprep.subr.mxu0 0.0
    %3341 = vmatpush1.msra.mxu0 0.0
    %3342 = vmatprep.subr.mxu0 0.0
    %3343 = vmatpush1.msra.mxu0 0.0
    %3344 = vmatprep.subr.mxu0 0.0
    %3345 = vmatpush1.msra.mxu0 0.0
    %3346 = vmatprep.subr.mxu0 0.0
    %3347 = vmatpush1.msra.mxu0 0.0
    %3348 = vmatprep.subr.mxu0 0.0
    %3349 = vmatpush1.msra.mxu0 0.0
    %3350 = vmatprep.subr.mxu0 0.0
    %3351 = vmatpush1.msra.mxu0 0.0
    %3352 = vmatprep.subr.mxu0 0.0
    %3353 = vmatpush1.msra.mxu0 0.0
    %3354 = vmatprep.subr.mxu0 0.0
    %3355 = vmatpush1.msra.mxu0 0.0
    %3356 = vmatprep.subr.mxu0 0.0
    %3357 = vmatpush1.msra.mxu0 0.0
    %3358 = vmatprep.subr.mxu0 0.0
    %3359 = vmatpush1.msra.mxu0 0.0
    %3360 = vmatprep.subr.mxu0 0.0
    %3361 = vmatpush1.msra.mxu0 0.0
    %3362 = vmatprep.subr.mxu0 0.0
    %3363 = vmatpush1.msra.mxu0 0.0
    %3364 = vmatprep.subr.mxu0 0.0
    %3365 = vmatpush1.msra.mxu0 0.0
    %3366 = vmatprep.subr.mxu0 0.0
    %3367 = vmatpush1.msra.mxu0 0.0
    %3368 = vmatprep.subr.mxu0 0.0
    %3369 = vmatpush1.msra.mxu0 0.0
    %3370 = vmatprep.subr.mxu0 0.0
    %3371 = vmatpush1.msra.mxu0 0.0
    %3372 = vmatprep.subr.mxu0 0.0
    %3373 = vmatpush1.msra.mxu0 0.0
    %3374 = vmatprep.subr.mxu0 0.0
    %3375 = vmatpush1.msra.mxu0 0.0
    %3376 = vmatprep.subr.mxu0 0.0
    %3377 = vmatpush1.msra.mxu0 0.0
    %3378 = vmatprep.subr.mxu0 0.0
    %3379 = vmatpush1.msra.mxu0 0.0
    %3380 = vmatprep.subr.mxu0 0.0
    %3381 = vmatpush1.msra.mxu0 0.0
    %3382 = vmatprep.subr.mxu0 0.0
    %3383 = vmatpush1.msra.mxu0 0.0
    %3384 = vmatprep.subr.mxu0 0.0
    %3385 = vmatpush1.msra.mxu0 0.0
    %3386 = vmatprep.subr.mxu0 0.0
    %3387 = vmatpush1.msra.mxu0 0.0
    %3388 = vmatprep.subr.mxu0 0.0
    %3389 = vmatpush1.msra.mxu0 0.0
    %3390 = vmatprep.subr.mxu0 0.0
    %3391 = vmatpush1.msra.mxu0 0.0
    %3392 = vmatprep.subr.mxu0 0.0
    %3393 = vmatpush1.msra.mxu0 0.0
    %3394 = vmatprep.subr.mxu0 0.0
    %3395 = vmatpush1.msra.mxu0 0.0
    %3396 = vmatprep.subr.mxu0 0.0
    %3397 = vmatpush1.msra.mxu0 0.0
    %3398 = vmatprep.subr.mxu0 0.0
    %3399 = vmatpush1.msra.mxu0 0.0
    %3400 = vmatprep.subr.mxu0 0.0
    %3401 = vmatpush1.msra.mxu0 0.0
    %3402 = vmatprep.mubr.f32.mxu0 0.0
    %3403 = vmatmul.mubr.f32.gmra.mrb[0].mxu0 %v3336
    %v3404 = vpop.f32.mrb[0].mxu0
    %v3405 = vadd.f32 0.0, %v3404
    %v3406 = vpop.f32.mrb[0].mxu0
    %3407 = vdwg.mxu0
    %3409 = vrot.lane.b32.xlu0 %v3405, 24
    %v3410 = vpop.permute.xlu0 %3409
    %3412 = vst.msk [vmem:[#allocation2 + $0x8] sm:$0xff] %vm1209, %v3410
    %v3413 = vld [vmem:[#allocation2] sm:$0xff]
    %v3414 = vld [vmem:[#allocation2 + $0x8] sm:$0xff]
    %v3415 = vlaneseq
    %v3416 = vshrl.u32 %v3415, 7
    %v3417 = vsub.s32 1, %v3416
    %v3418 = vrot.slane %v1969, %v3417
    %3423 = vrot.lane.b32.xlu0 %v1960, 32
    %v3424 = vpop.permute.xlu0 %3423
    %3425 = vrot.lane.b32.xlu0 %v1962, 32
    %v3426 = vpop.permute.xlu0 %3425
    %3427 = vrot.lane.b32.xlu0 %v1964, 32
    %v3428 = vpop.permute.xlu0 %3427
    %3429 = vrot.lane.b32.xlu0 %v1966, 32
    %v3430 = vpop.permute.xlu0 %3429
    %v3436 = vsel %vm35, %v3413, 0
    %v3439 = vsel %vm35, %v3414, 0
    %3441 = vmatprep.subr.mxu0 0.0
    %3442 = vmatpush1.msra.mxu0 %v3424
    %3443 = vmatprep.subr.mxu0 0.0
    %3444 = vmatpush1.msra.mxu0 %v3426
    %3445 = vmatprep.subr.mxu0 0.0
    %3446 = vmatpush1.msra.mxu0 %v3428
    %3447 = vmatprep.subr.mxu0 0.0
    %3448 = vmatpush1.msra.mxu0 %v3430
    %3449 = vmatprep.subr.mxu0 0.0
    %3450 = vmatpush1.msra.mxu0 0.0
    %3451 = vmatprep.subr.mxu0 0.0
    %3452 = vmatpush1.msra.mxu0 0.0
    %3453 = vmatprep.subr.mxu0 0.0
    %3454 = vmatpush1.msra.mxu0 0.0
    %3455 = vmatprep.subr.mxu0 0.0
    %3456 = vmatpush1.msra.mxu0 0.0
    %3457 = vmatprep.subr.mxu0 0.0
    %3458 = vmatpush1.msra.mxu0 0.0
    %3459 = vmatprep.subr.mxu0 0.0
    %3460 = vmatpush1.msra.mxu0 0.0
    %3461 = vmatprep.subr.mxu0 0.0
    %3462 = vmatpush1.msra.mxu0 0.0
    %3463 = vmatprep.subr.mxu0 0.0
    %3464 = vmatpush1.msra.mxu0 0.0
    %3465 = vmatprep.subr.mxu0 0.0
    %3466 = vmatpush1.msra.mxu0 0.0
    %3467 = vmatprep.subr.mxu0 0.0
    %3468 = vmatpush1.msra.mxu0 0.0
    %3469 = vmatprep.subr.mxu0 0.0
    %3470 = vmatpush1.msra.mxu0 0.0
    %3471 = vmatprep.subr.mxu0 0.0
    %3472 = vmatpush1.msra.mxu0 0.0
    %3473 = vmatprep.subr.mxu0 0.0
    %3474 = vmatpush1.msra.mxu0 0.0
    %3475 = vmatprep.subr.mxu0 0.0
    %3476 = vmatpush1.msra.mxu0 0.0
    %3477 = vmatprep.subr.mxu0 0.0
    %3478 = vmatpush1.msra.mxu0 0.0
    %3479 = vmatprep.subr.mxu0 0.0
    %3480 = vmatpush1.msra.mxu0 0.0
    %3481 = vmatprep.subr.mxu0 0.0
    %3482 = vmatpush1.msra.mxu0 0.0
    %3483 = vmatprep.subr.mxu0 0.0
    %3484 = vmatpush1.msra.mxu0 0.0
    %3485 = vmatprep.subr.mxu0 0.0
    %3486 = vmatpush1.msra.mxu0 0.0
    %3487 = vmatprep.subr.mxu0 0.0
    %3488 = vmatpush1.msra.mxu0 0.0
    %3489 = vmatprep.subr.mxu0 0.0
    %3490 = vmatpush1.msra.mxu0 0.0
    %3491 = vmatprep.subr.mxu0 0.0
    %3492 = vmatpush1.msra.mxu0 0.0
    %3493 = vmatprep.subr.mxu0 0.0
    %3494 = vmatpush1.msra.mxu0 0.0
    %3495 = vmatprep.subr.mxu0 0.0
    %3496 = vmatpush1.msra.mxu0 0.0
    %3497 = vmatprep.subr.mxu0 0.0
    %3498 = vmatpush1.msra.mxu0 0.0
    %3499 = vmatprep.subr.mxu0 0.0
    %3500 = vmatpush1.msra.mxu0 0.0
    %3501 = vmatprep.subr.mxu0 0.0
    %3502 = vmatpush1.msra.mxu0 0.0
    %3503 = vmatprep.subr.mxu0 0.0
    %3504 = vmatpush1.msra.mxu0 0.0
    %3505 = vmatprep.mubr.f32.mxu0 0.0
    %3506 = vmatmul.mubr.f32.gmra.mrb[0].mxu0 %v3436
    %v3507 = vpop.f32.mrb[0].mxu0
    %v3508 = vadd.f32 %v3418, %v3507
    %v3509 = vpop.f32.mrb[0].mxu0
    %3510 = vmatprep.mubr.f32.mxu0 0.0
    %3511 = vmatmul.mubr.f32.gmra.mrb[0].mxu0 %v3439
    %v3512 = vpop.f32.mrb[0].mxu0
    %v3513 = vadd.f32 %v3418, %v3512
    %v3514 = vpop.f32.mrb[0].mxu0
    %3515 = vdwg.mxu0
    %v3516 = vadd.f32 %v3508, %v1957
    %v3517 = vadd.f32 %v3513, %v1958
    %v3518 = vsel %vm35, %v3516, 0.0
    %3519 = vadd.xlane.f32.xlu0 %v3518
    %v3520 = vpop.xlane.xlu0 %3519
    %v3521 = vsel %vm35, %v3517, 0.0
    %3522 = vadd.xlane.f32.xlu0 %v3521
    %v3523 = vpop.xlane.xlu0 %3522
    %v3524 = vmul.f32 %v3520, %v42
    %v3525 = vmul.f32 %v3523, %v42
    %v3526 = vsub.f32 %v3516, %v3524
    %v3527 = vsub.f32 %v3517, %v3525
    %v3528 = vmul.f32 %v3526, %v3526
    %v3529 = vmul.f32 %v3527, %v3527
    %v3530 = vsel %vm35, %v3528, 0.0
    %3531 = vadd.xlane.f32.xlu0 %v3530
    %v3532 = vpop.xlane.xlu0 %3531
    %v3533 = vsel %vm35, %v3529, 0.0
    %3534 = vadd.xlane.f32.xlu0 %v3533
    %v3535 = vpop.xlane.xlu0 %3534
    %v3536 = vmul.f32 %v3532, %v42
    %v3537 = vmul.f32 %v3535, %v42
    %v3538 = vadd.f32 %v3536, 1e-05
    %v3539 = vadd.f32 %v3537, 1e-05
    %v3540 = vrsqrt.pop %v3538
    %v3541 = vrsqrt.pop %v3539
    %v3542 = vmul.f32 %v3526, %v3540
    %v3543 = vmul.f32 %v3527, %v3541
    %v3544 = vlaneseq
    %v3545 = vshrl.u32 %v3544, 7
    %v3546 = vsub.s32 2, %v3545
    %v3547 = vrot.slane %v1969, %v3546
    %v3548 = vmul.f32 %v3542, %v3547
    %v3549 = vmul.f32 %v3543, %v3547
    %v3550 = vlaneseq
    %v3551 = vshrl.u32 %v3550, 7
    %v3552 = vsub.s32 3, %v3551
    %v3553 = vrot.slane %v1969, %v3552
    %v3554 = vadd.f32 %v3548, %v3553
    %v3555 = vadd.f32 %v3549, %v3553
    %v3556 = vlaneseq
    %v3557 = vshrl.u32 %v3556, 7
    %v3558 = vsub.s32 4, %v3557
    %v3559 = vrot.slane %v1969, %v3558
    %v3561 = vsel %vm35, %v3554, 0
    %v3564 = vsel %vm35, %v3555, 0
    %3566 = vmatprep.subr.mxu0 0.0
    %3567 = vmatpush1.msra.mxu0 %v1961
    %3568 = vmatprep.subr.mxu0 0.0
    %3569 = vmatpush1.msra.mxu0 %v1963
    %3570 = vmatprep.subr.mxu0 0.0
    %3571 = vmatpush1.msra.mxu0 %v1965
    %3572 = vmatprep.subr.mxu0 0.0
    %3573 = vmatpush1.msra.mxu0 %v1967
    %3574 = vmatprep.subr.mxu0 0.0
    %3575 = vmatpush1.msra.mxu0 0.0
    %3576 = vmatprep.subr.mxu0 0.0
    %3577 = vmatpush1.msra.mxu0 0.0
    %3578 = vmatprep.subr.mxu0 0.0
    %3579 = vmatpush1.msra.mxu0 0.0
    %3580 = vmatprep.subr.mxu0 0.0
    %3581 = vmatpush1.msra.mxu0 0.0
    %3582 = vmatprep.subr.mxu0 0.0
    %3583 = vmatpush1.msra.mxu0 0.0
    %3584 = vmatprep.subr.mxu0 0.0
    %3585 = vmatpush1.msra.mxu0 0.0
    %3586 = vmatprep.subr.mxu0 0.0
    %3587 = vmatpush1.msra.mxu0 0.0
    %3588 = vmatprep.subr.mxu0 0.0
    %3589 = vmatpush1.msra.mxu0 0.0
    %3590 = vmatprep.subr.mxu0 0.0
    %3591 = vmatpush1.msra.mxu0 0.0
    %3592 = vmatprep.subr.mxu0 0.0
    %3593 = vmatpush1.msra.mxu0 0.0
    %3594 = vmatprep.subr.mxu0 0.0
    %3595 = vmatpush1.msra.mxu0 0.0
    %3596 = vmatprep.subr.mxu0 0.0
    %3597 = vmatpush1.msra.mxu0 0.0
    %3598 = vmatprep.subr.mxu0 0.0
    %3599 = vmatpush1.msra.mxu0 0.0
    %3600 = vmatprep.subr.mxu0 0.0
    %3601 = vmatpush1.msra.mxu0 0.0
    %3602 = vmatprep.subr.mxu0 0.0
    %3603 = vmatpush1.msra.mxu0 0.0
    %3604 = vmatprep.subr.mxu0 0.0
    %3605 = vmatpush1.msra.mxu0 0.0
    %3606 = vmatprep.subr.mxu0 0.0
    %3607 = vmatpush1.msra.mxu0 0.0
    %3608 = vmatprep.subr.mxu0 0.0
    %3609 = vmatpush1.msra.mxu0 0.0
    %3610 = vmatprep.subr.mxu0 0.0
    %3611 = vmatpush1.msra.mxu0 0.0
    %3612 = vmatprep.subr.mxu0 0.0
    %3613 = vmatpush1.msra.mxu0 0.0
    %3614 = vmatprep.subr.mxu0 0.0
    %3615 = vmatpush1.msra.mxu0 0.0
    %3616 = vmatprep.subr.mxu0 0.0
    %3617 = vmatpush1.msra.mxu0 0.0
    %3618 = vmatprep.subr.mxu0 0.0
    %3619 = vmatpush1.msra.mxu0 0.0
    %3620 = vmatprep.subr.mxu0 0.0
    %3621 = vmatpush1.msra.mxu0 0.0
    %3622 = vmatprep.subr.mxu0 0.0
    %3623 = vmatpush1.msra.mxu0 0.0
    %3624 = vmatprep.subr.mxu0 0.0
    %3625 = vmatpush1.msra.mxu0 0.0
    %3626 = vmatprep.subr.mxu0 0.0
    %3627 = vmatpush1.msra.mxu0 0.0
    %3628 = vmatprep.subr.mxu0 0.0
    %3629 = vmatpush1.msra.mxu0 0.0
    %3630 = vmatprep.mubr.f32.mxu0 0.0
    %3631 = vmatmul.mubr.f32.gmra.mrb[0].mxu0 %v3561
    %v3632 = vpop.f32.mrb[0].mxu0
    %v3633 = vadd.f32 %v3559, %v3632
    %v3634 = vpop.f32.mrb[0].mxu0
    %3635 = vmatprep.mubr.f32.mxu0 0.0
    %3636 = vmatmul.mubr.f32.gmra.mrb[0].mxu0 %v3564
    %v3637 = vpop.f32.mrb[0].mxu0
    %v3638 = vadd.f32 %v3559, %v3637
    %v3639 = vpop.f32.mrb[0].mxu0
    %3640 = vdwg.mxu0
    %v3641 = vmul.f32 %v3633, 0.5
    %v3642 = vmul.f32 %v3638, 0.5
    %v3643 = vmul.f32 %v3633, 0.70710677
    %v3644 = vmul.f32 %v3638, 0.70710677
    %vm3645 = vcmp.lt.f32.partialorder %v3643, 0.0
    %vm3646 = vcmp.lt.f32.partialorder %v3644, 0.0
    %v3647 = vsel %vm3645, -1.0, 1.0
    %v3648 = vsel %vm3646, -1.0, 1.0
    %v3649 = vand.u32 2147483647, %v3643
    %v3650 = vand.u32 2147483647, %v3644
    %v3651 = vmul.f32 %v3649, 0.3275911
    %v3652 = vmul.f32 %v3650, 0.3275911
    %v3653 = vadd.f32 %v3651, 1.0
    %v3654 = vadd.f32 %v3652, 1.0
    %v3655 = vrcp.pop %v3653
    %v3656 = vmul.f32 1.0, %v3655
    %v3657 = vrcp.pop %v3654
    %v3658 = vmul.f32 1.0, %v3657
    %v3659 = vmul.f32 %v3656, 1.0614054
    %v3660 = vmul.f32 %v3658, 1.0614054
    %v3661 = vadd.f32 %v3659, -1.4531521
    %v3662 = vadd.f32 %v3660, -1.4531521
    %v3663 = vmul.f32 %v3661, %v3656
    %v3664 = vmul.f32 %v3662, %v3658
    %v3665 = vadd.f32 %v3663, 1.4214138
    %v3666 = vadd.f32 %v3664, 1.4214138
    %v3667 = vmul.f32 %v3665, %v3656
    %v3668 = vmul.f32 %v3666, %v3658
    %v3669 = vadd.f32 %v3667, -0.28449672
    %v3670 = vadd.f32 %v3668, -0.28449672
    %v3671 = vmul.f32 %v3669, %v3656
    %v3672 = vmul.f32 %v3670, %v3658
    %v3673 = vadd.f32 %v3671, 0.2548296
    %v3674 = vadd.f32 %v3672, 0.2548296
    %v3675 = vmul.f32 %v3673, %v3656
    %v3676 = vmul.f32 %v3674, %v3658
    %v3677 = vsub.f32 0.0, %v3649
    %v3678 = vsub.f32 0.0, %v3650
    %v3679 = vmul.f32 %v3677, %v3649
    %v3680 = vmul.f32 %v3678, %v3650
    %v3681 = vmul.f32 %v3679, 1.442695
    %v3682 = vpow.pop %v3681
    %v3683 = vmul.f32 %v3680, 1.442695
    %v3684 = vpow.pop %v3683
    %v3685 = vmul.f32 %v3675, %v3682
    %v3686 = vmul.f32 %v3676, %v3684
    %v3687 = vsub.f32 1.0, %v3685
    %v3688 = vsub.f32 1.0, %v3686
    %v3689 = vmul.f32 %v3647, %v3687
    %v3690 = vmul.f32 %v3648, %v3688
    %v3691 = vadd.f32 %v3689, 1.0
    %v3692 = vadd.f32 %v3690, 1.0
    %v3693 = vmul.f32 %v3641, %v3691
    %v3694 = vmul.f32 %v3642, %v3692
    %v3695 = vlaneseq
    %v3696 = vshrl.u32 %v3695, 7
    %v3697 = vsub.s32 5, %v3696
    %v3698 = vrot.slane %v1969, %v3697
    %3703 = vrot.lane.b32.xlu0 %v1961, 64
    %v3704 = vpop.permute.xlu0 %3703
    %3705 = vrot.lane.b32.xlu0 %v1963, 64
    %v3706 = vpop.permute.xlu0 %3705
    %3707 = vrot.lane.b32.xlu0 %v1965, 64
    %v3708 = vpop.permute.xlu0 %3707
    %3709 = vrot.lane.b32.xlu0 %v1967, 64
    %v3710 = vpop.permute.xlu0 %3709
    %v3712 = vsel %vm1829, %v3693, 0
    %v3715 = vsel %vm1829, %v3694, 0
    %v3717 = vsel %vm1829, %v3704, 0
    %v3719 = vsel %vm1829, %v3706, 0
    %v3721 = vsel %vm1829, %v3708, 0
    %v3723 = vsel %vm1829, %v3710, 0
    %3725 = vmatprep.subr.mxu0 0.0
    %3726 = vmatpush1.xpose.msra.mxu0 %v3717
    %3727 = vmatprep.subr.mxu0 0.0
    %3728 = vmatpush1.xpose.msra.mxu0 %v3719
    %3729 = vmatprep.subr.mxu0 0.0
    %3730 = vmatpush1.xpose.msra.mxu0 %v3721
    %3731 = vmatprep.subr.mxu0 0.0
    %3732 = vmatpush1.xpose.msra.mxu0 %v3723
    %3733 = vmatprep.subr.mxu0 0.0
    %3734 = vmatpush1.xpose.msra.mxu0 0.0
    %3735 = vmatprep.subr.mxu0 0.0
    %3736 = vmatpush1.xpose.msra.mxu0 0.0
    %3737 = vmatprep.subr.mxu0 0.0
    %3738 = vmatpush1.xpose.msra.mxu0 0.0
    %3739 = vmatprep.subr.mxu0 0.0
    %3740 = vmatpush1.xpose.msra.mxu0 0.0
    %3741 = vmatprep.subr.mxu0 0.0
    %3742 = vmatpush1.xpose.msra.mxu0 0.0
    %3743 = vmatprep.subr.mxu0 0.0
    %3744 = vmatpush1.xpose.msra.mxu0 0.0
    %3745 = vmatprep.subr.mxu0 0.0
    %3746 = vmatpush1.xpose.msra.mxu0 0.0
    %3747 = vmatprep.subr.mxu0 0.0
    %3748 = vmatpush1.xpose.msra.mxu0 0.0
    %3749 = vmatprep.subr.mxu0 0.0
    %3750 = vmatpush1.xpose.msra.mxu0 0.0
    %3751 = vmatprep.subr.mxu0 0.0
    %3752 = vmatpush1.xpose.msra.mxu0 0.0
    %3753 = vmatprep.subr.mxu0 0.0
    %3754 = vmatpush1.xpose.msra.mxu0 0.0
    %3755 = vmatprep.subr.mxu0 0.0
    %3756 = vmatpush1.xpose.msra.mxu0 0.0
    %3757 = vmatprep.subr.mxu0 0.0
    %3758 = vmatpush1.xpose.msra.mxu0 0.0
    %3759 = vmatprep.subr.mxu0 0.0
    %3760 = vmatpush1.xpose.msra.mxu0 0.0
    %3761 = vmatprep.subr.mxu0 0.0
    %3762 = vmatpush1.xpose.msra.mxu0 0.0
    %3763 = vmatprep.subr.mxu0 0.0
    %3764 = vmatpush1.xpose.msra.mxu0 0.0
    %3765 = vmatprep.subr.mxu0 0.0
    %3766 = vmatpush1.xpose.msra.mxu0 0.0
    %3767 = vmatprep.subr.mxu0 0.0
    %3768 = vmatpush1.xpose.msra.mxu0 0.0
    %3769 = vmatprep.subr.mxu0 0.0
    %3770 = vmatpush1.xpose.msra.mxu0 0.0
    %3771 = vmatprep.subr.mxu0 0.0
    %3772 = vmatpush1.xpose.msra.mxu0 0.0
    %3773 = vmatprep.subr.mxu0 0.0
    %3774 = vmatpush1.xpose.msra.mxu0 0.0
    %3775 = vmatprep.subr.mxu0 0.0
    %3776 = vmatpush1.xpose.msra.mxu0 0.0
    %3777 = vmatprep.subr.mxu0 0.0
    %3778 = vmatpush1.xpose.msra.mxu0 0.0
    %3779 = vmatprep.subr.mxu0 0.0
    %3780 = vmatpush1.xpose.msra.mxu0 0.0
    %3781 = vmatprep.subr.mxu0 0.0
    %3782 = vmatpush1.xpose.msra.mxu0 0.0
    %3783 = vmatprep.subr.mxu0 0.0
    %3784 = vmatpush1.xpose.msra.mxu0 0.0
    %3785 = vmatprep.subr.mxu0 0.0
    %3786 = vmatpush1.xpose.msra.mxu0 0.0
    %3787 = vmatprep.subr.mxu0 0.0
    %3788 = vmatpush1.xpose.msra.mxu0 0.0
    %3789 = vmatprep.mubr.f32.mxu0 0.0
    %3790 = vmatmul.mubr.f32.gmra.mrb[0].mxu0 %v3712
    %v3791 = vpop.f32.mrb[0].mxu0
    %v3792 = vadd.f32 %v3698, %v3791
    %v3793 = vpop.f32.mrb[0].mxu0
    %3794 = vmatprep.mubr.f32.mxu0 0.0
    %3795 = vmatmul.mubr.f32.gmra.mrb[0].mxu0 %v3715
    %v3796 = vpop.f32.mrb[0].mxu0
    %v3797 = vadd.f32 %v3698, %v3796
    %v3798 = vpop.f32.mrb[0].mxu0
    %3799 = vdwg.mxu0
    %v3800 = vadd.f32 %v3792, %v3554
    %v3801 = vadd.f32 %v3797, %v3555
    %v3802 = vsel %vm35, %v3800, 0.0
    %3803 = vadd.xlane.f32.xlu0 %v3802
    %v3804 = vpop.xlane.xlu0 %3803
    %v3805 = vsel %vm35, %v3801, 0.0
    %3806 = vadd.xlane.f32.xlu0 %v3805
    %v3807 = vpop.xlane.xlu0 %3806
    %v3808 = vmul.f32 %v3804, %v42
    %v3809 = vmul.f32 %v3807, %v42
    %v3810 = vsub.f32 %v3800, %v3808
    %v3811 = vsub.f32 %v3801, %v3809
    %v3812 = vmul.f32 %v3810, %v3810
    %v3813 = vmul.f32 %v3811, %v3811
    %v3814 = vsel %vm35, %v3812, 0.0
    %3815 = vadd.xlane.f32.xlu0 %v3814
    %v3816 = vpop.xlane.xlu0 %3815
    %v3817 = vsel %vm35, %v3813, 0.0
    %3818 = vadd.xlane.f32.xlu0 %v3817
    %v3819 = vpop.xlane.xlu0 %3818
    %v3820 = vmul.f32 %v3816, %v42
    %v3821 = vmul.f32 %v3819, %v42
    %v3822 = vadd.f32 %v3820, 1e-05
    %v3823 = vadd.f32 %v3821, 1e-05
    %v3824 = vrsqrt.pop %v3822
    %v3825 = vrsqrt.pop %v3823
    %v3826 = vmul.f32 %v3810, %v3824
    %v3827 = vmul.f32 %v3811, %v3825
    %v3828 = vlaneseq
    %v3829 = vshrl.u32 %v3828, 7
    %v3830 = vsub.s32 6, %v3829
    %v3831 = vrot.slane %v1969, %v3830
    %v3832 = vmul.f32 %v3826, %v3831
    %v3833 = vmul.f32 %v3827, %v3831
    %v3834 = vlaneseq
    %v3835 = vshrl.u32 %v3834, 7
    %v3836 = vsub.s32 7, %v3835
    %v3837 = vrot.slane %v1969, %v3836
    %v3838 = vadd.f32 %v3832, %v3837
    %v3839 = vadd.f32 %v3833, %v3837
    %v3840 = vld [vmem:[%s4] sm:$0xff]
    %v3841 = vld [vmem:[%s4 + $0x8] sm:$0xff]
    %v3842 = vld [vmem:[%s4 + $0x10] sm:$0xff]
    %v3843 = vld [vmem:[%s4 + $0x18] sm:$0xff]
    %v3844 = vld [vmem:[%s4 + $0x20] sm:$0xff]
    %v3845 = vld [vmem:[%s4 + $0x28] sm:$0xff]
    %v3846 = vld [vmem:[%s4 + $0x30] sm:$0xff]
    %v3847 = vld [vmem:[%s4 + $0x38] sm:$0xff]
    %v3849 = vrot.slane %v3839, 7
    %vm3851 = vcmask 1040384
    %v3852 = vsel %vm3851, %v3838, %v3849
    %v3853 = vlaneseq
    %v3854 = vshrl.u32 %v3853, 7
    %v3855 = vsub.s32 2, %v3854
    %v3856 = vrot.slane %v24, %v3855
    %v3858 = vsel %vm35, %v3852, 0
    %3860 = vmatprep.subr.mxu0 0.0
    %3861 = vmatpush1.msra.mxu0 %v3840
    %3862 = vmatprep.subr.mxu0 0.0
    %3863 = vmatpush1.msra.mxu0 %v3842
    %3864 = vmatprep.subr.mxu0 0.0
    %3865 = vmatpush1.msra.mxu0 %v3844
    %3866 = vmatprep.subr.mxu0 0.0
    %3867 = vmatpush1.msra.mxu0 %v3846
    %3868 = vmatprep.subr.mxu0 0.0
    %3869 = vmatpush1.msra.mxu0 0.0
    %3870 = vmatprep.subr.mxu0 0.0
    %3871 = vmatpush1.msra.mxu0 0.0
    %3872 = vmatprep.subr.mxu0 0.0
    %3873 = vmatpush1.msra.mxu0 0.0
    %3874 = vmatprep.subr.mxu0 0.0
    %3875 = vmatpush1.msra.mxu0 0.0
    %3876 = vmatprep.subr.mxu0 0.0
    %3877 = vmatpush1.msra.mxu0 0.0
    %3878 = vmatprep.subr.mxu0 0.0
    %3879 = vmatpush1.msra.mxu0 0.0
    %3880 = vmatprep.subr.mxu0 0.0
    %3881 = vmatpush1.msra.mxu0 0.0
    %3882 = vmatprep.subr.mxu0 0.0
    %3883 = vmatpush1.msra.mxu0 0.0
    %3884 = vmatprep.subr.mxu0 0.0
    %3885 = vmatpush1.msra.mxu0 0.0
    %3886 = vmatprep.subr.mxu0 0.0
    %3887 = vmatpush1.msra.mxu0 0.0
    %3888 = vmatprep.subr.mxu0 0.0
    %3889 = vmatpush1.msra.mxu0 0.0
    %3890 = vmatprep.subr.mxu0 0.0
    %3891 = vmatpush1.msra.mxu0 0.0
    %3892 = vmatprep.subr.mxu0 0.0
    %3893 = vmatpush1.msra.mxu0 0.0
    %3894 = vmatprep.subr.mxu0 0.0
    %3895 = vmatpush1.msra.mxu0 0.0
    %3896 = vmatprep.subr.mxu0 0.0
    %3897 = vmatpush1.msra.mxu0 0.0
    %3898 = vmatprep.subr.mxu0 0.0
    %3899 = vmatpush1.msra.mxu0 0.0
    %3900 = vmatprep.subr.mxu0 0.0
    %3901 = vmatpush1.msra.mxu0 0.0
    %3902 = vmatprep.subr.mxu0 0.0
    %3903 = vmatpush1.msra.mxu0 0.0
    %3904 = vmatprep.subr.mxu0 0.0
    %3905 = vmatpush1.msra.mxu0 0.0
    %3906 = vmatprep.subr.mxu0 0.0
    %3907 = vmatpush1.msra.mxu0 0.0
    %3908 = vmatprep.subr.mxu0 0.0
    %3909 = vmatpush1.msra.mxu0 0.0
    %3910 = vmatprep.subr.mxu0 0.0
    %3911 = vmatpush1.msra.mxu0 0.0
    %3912 = vmatprep.subr.mxu0 0.0
    %3913 = vmatpush1.msra.mxu0 0.0
    %3914 = vmatprep.subr.mxu0 0.0
    %3915 = vmatpush1.msra.mxu0 0.0
    %3916 = vmatprep.subr.mxu0 0.0
    %3917 = vmatpush1.msra.mxu0 0.0
    %3918 = vmatprep.subr.mxu0 0.0
    %3919 = vmatpush1.msra.mxu0 0.0
    %3920 = vmatprep.subr.mxu0 0.0
    %3921 = vmatpush1.msra.mxu0 0.0
    %3922 = vmatprep.subr.mxu0 0.0
    %3923 = vmatpush1.msra.mxu0 0.0
    %3924 = vmatprep.mubr.f32.mxu0 0.0
    %3925 = vmatmul.mubr.f32.gmra.mrb[0].mxu0 %v3858
    %v3926 = vpop.f32.mrb[0].mxu0
    %v3927 = vadd.f32 %v3856, %v3926
    %v3928 = vpop.f32.mrb[0].mxu0
    %3929 = vdwg.mxu0
    %v3930 = vtanh.pop %v3927
    %v3931 = vlaneseq
    %v3932 = vshrl.u32 %v3931, 7
    %v3933 = vsub.s32 3, %v3932
    %v3934 = vrot.slane %v24, %v3933
    %3943 = vrot.lane.b32.xlu0 %v3840, 96
    %v3944 = vpop.permute.xlu0 %3943
    %3945 = vrot.lane.b32.xlu0 %v3841, 96
    %v3946 = vpop.permute.xlu0 %3945
    %3947 = vrot.lane.b32.xlu0 %v3842, 96
    %v3948 = vpop.permute.xlu0 %3947
    %3949 = vrot.lane.b32.xlu0 %v3843, 96
    %v3950 = vpop.permute.xlu0 %3949
    %3951 = vrot.lane.b32.xlu0 %v3844, 96
    %v3952 = vpop.permute.xlu0 %3951
    %3953 = vrot.lane.b32.xlu0 %v3845, 96
    %v3954 = vpop.permute.xlu0 %3953
    %3955 = vrot.lane.b32.xlu0 %v3846, 96
    %v3956 = vpop.permute.xlu0 %3955
    %3957 = vrot.lane.b32.xlu0 %v3847, 96
    %v3958 = vpop.permute.xlu0 %3957
    %vm3959 = vcmask 785408
    %v3960 = vsel %vm3959, %v3944, %v3946
    %v3961 = vsel %vm3959, %v3948, %v3950
    %v3962 = vsel %vm3959, %v3952, %v3954
    %v3963 = vsel %vm3959, %v3956, %v3958
    %v3969 = vsel %vm35, %v3930, 0
    %3971 = vmatprep.subr.mxu0 0.0
    %3972 = vmatpush1.msra.mxu0 %v3960
    %3973 = vmatprep.subr.mxu0 0.0
    %3974 = vmatpush1.msra.mxu0 %v3961
    %3975 = vmatprep.subr.mxu0 0.0
    %3976 = vmatpush1.msra.mxu0 %v3962
    %3977 = vmatprep.subr.mxu0 0.0
    %3978 = vmatpush1.msra.mxu0 %v3963
    %3979 = vmatprep.subr.mxu0 0.0
    %3980 = vmatpush1.msra.mxu0 0.0
    %3981 = vmatprep.subr.mxu0 0.0
    %3982 = vmatpush1.msra.mxu0 0.0
    %3983 = vmatprep.subr.mxu0 0.0
    %3984 = vmatpush1.msra.mxu0 0.0
    %3985 = vmatprep.subr.mxu0 0.0
    %3986 = vmatpush1.msra.mxu0 0.0
    %3987 = vmatprep.subr.mxu0 0.0
    %3988 = vmatpush1.msra.mxu0 0.0
    %3989 = vmatprep.subr.mxu0 0.0
    %3990 = vmatpush1.msra.mxu0 0.0
    %3991 = vmatprep.subr.mxu0 0.0
    %3992 = vmatpush1.msra.mxu0 0.0
    %3993 = vmatprep.subr.mxu0 0.0
    %3994 = vmatpush1.msra.mxu0 0.0
    %3995 = vmatprep.subr.mxu0 0.0
    %3996 = vmatpush1.msra.mxu0 0.0
    %3997 = vmatprep.subr.mxu0 0.0
    %3998 = vmatpush1.msra.mxu0 0.0
    %3999 = vmatprep.subr.mxu0 0.0
    %4000 = vmatpush1.msra.mxu0 0.0
    %4001 = vmatprep.subr.mxu0 0.0
    %4002 = vmatpush1.msra.mxu0 0.0
    %4003 = vmatprep.subr.mxu0 0.0
    %4004 = vmatpush1.msra.mxu0 0.0
    %4005 = vmatprep.subr.mxu0 0.0
    %4006 = vmatpush1.msra.mxu0 0.0
    %4007 = vmatprep.subr.mxu0 0.0
    %4008 = vmatpush1.msra.mxu0 0.0
    %4009 = vmatprep.subr.mxu0 0.0
    %4010 = vmatpush1.msra.mxu0 0.0
    %4011 = vmatprep.subr.mxu0 0.0
    %4012 = vmatpush1.msra.mxu0 0.0
    %4013 = vmatprep.subr.mxu0 0.0
    %4014 = vmatpush1.msra.mxu0 0.0
    %4015 = vmatprep.subr.mxu0 0.0
    %4016 = vmatpush1.msra.mxu0 0.0
    %4017 = vmatprep.subr.mxu0 0.0
    %4018 = vmatpush1.msra.mxu0 0.0
    %4019 = vmatprep.subr.mxu0 0.0
    %4020 = vmatpush1.msra.mxu0 0.0
    %4021 = vmatprep.subr.mxu0 0.0
    %4022 = vmatpush1.msra.mxu0 0.0
    %4023 = vmatprep.subr.mxu0 0.0
    %4024 = vmatpush1.msra.mxu0 0.0
    %4025 = vmatprep.subr.mxu0 0.0
    %4026 = vmatpush1.msra.mxu0 0.0
    %4027 = vmatprep.subr.mxu0 0.0
    %4028 = vmatpush1.msra.mxu0 0.0
    %4029 = vmatprep.subr.mxu0 0.0
    %4030 = vmatpush1.msra.mxu0 0.0
    %4031 = vmatprep.subr.mxu0 0.0
    %4032 = vmatpush1.msra.mxu0 0.0
    %4033 = vmatprep.subr.mxu0 0.0
    %4034 = vmatpush1.msra.mxu0 0.0
    %4035 = vmatprep.mubr.f32.mxu0 0.0
    %4036 = vmatmul.mubr.f32.gmra.mrb[0].mxu0 %v3969
    %v4037 = vpop.f32.mrb[0].mxu0
    %v4038 = vadd.f32 %v3934, %v4037
    %v4039 = vpop.f32.mrb[0].mxu0
    %4040 = vdwg.mxu0
    %v4041 = vxor.u32 %v4038, 2147483648
    %v4042 = vmul.f32 %v4041, 1.442695
    %v4043 = vpow.pop %v4042
    %v4044 = vadd.f32 %v4043, 1.0
    %v4045 = vrcp.pop %v4044
    %v4046 = vmul.f32 1.0, %v4045
    %4047 = vst [vmem:[#allocation3] sm:$0x3] %v4046
    // Predicated region
    $region26: #{herbert_forward.1} parent=1 // pred_check
      _
    $region27: #{herbert_forward.1} parent=1 // pred_check_branch
      %4049 = sbr.rel (0) target = $region29
    $region28: #{herbert_forward.1} parent=1 // pred_region
      %s4051 = ssub.s32 32, 32
      %4052 = vsyncadd [#allocation4], %s4051
      %s4054 = sshll.u32 [#allocation3], 4
      %s4055 = int_to_ptr.vmem [resolvable:$true] %s4054
      %4057 = dma.vmem_to_hbm [thread:$0]  %s4055, 32, %s6, [#allocation4]
    $region29: #{herbert_forward.1} parent=1 // pred_fallthru
      _
    // Predicated region
    $region30: #{herbert_forward.1} parent=1 // pred_check
      _
    $region31: #{herbert_forward.1} parent=1 // pred_check_branch
      %4059 = sbr.rel (0) target = $region33
    $region32: #{herbert_forward.1} parent=1 // pred_region
      %4060 = dma.done [#allocation4], 32
    $region33: #{herbert_forward.1} parent=1 // pred_fallthru
      _
    %4061 = vsyncpa [#allocation4], 1

</llo_original>
